<compile_context>
chip_gen: v7x
topology: tpu7x:2x2x1
jax: 0.10.0
libtpu: 0.0.40
codegen_flags: <defaults>
</compile_context>

<pallas_src>
import functools

import jax
import jax.numpy as jnp
from jax import lax
from jax.experimental import pallas as pl
from jax.experimental.pallas import tpu as pltpu

NEG_SLOPE = 0.2      # GATv2Conv default negative_slope
LN_EPS = 1e-5        # torch.nn.LayerNorm default eps
LANE = 128           # TPU lane width
SLOT = 32            # fixed 32-lane slots inside the packed projection slab

_VMEM = pl.BlockSpec(memory_space=pltpu.MemorySpace.VMEM)


def _round_up(x, m):
    return (x + m - 1) // m * m


# ----------------------------------------------------------------------------
# Fused kernel: all GATv2 layers + residual/LayerNorm/ReLU + mean-pool + dense
# ----------------------------------------------------------------------------
def _fused_forward_kernel(*refs, num_layers, hidden):
    # refs = (x, adj_bias,
    #         [w_slab, b_slab, att_m, b_conv, gamma, beta] * num_layers,
    #         pool, w_final, out)
    x_ref, adjb_ref = refs[0], refs[1]
    layer_refs = refs[2:2 + 6 * num_layers]
    pool_ref, wfin_ref, o_ref = refs[-3], refs[-2], refs[-1]

    x = x_ref[...]                                   # [Np, 128]  f32 node feats
    adj_bias = adjb_ref[...]                         # [Np, Np]   0 (edge) / -1e30
    n = x.shape[0]

    # lane mask selecting the real `hidden` channels (slot 0)
    lane = lax.broadcasted_iota(jnp.int32, (1, LANE), 1)
    m0 = (lane < hidden).astype(jnp.float32)
    inv_h = 1.0 / float(hidden)

    for l in range(num_layers):                      # static unroll over layers
        w_slab = layer_refs[6 * l + 0][...]          # [128,128] bf16: wl|wl|res|wr
        b_slab = layer_refs[6 * l + 1][...]          # [1,128]   f32 matching biases
        att_m = layer_refs[6 * l + 2][...]           # [128,128] bf16 score matrix
        b_cv = layer_refs[6 * l + 3][...]            # [1,128]   f32 conv bias
        gamma = layer_refs[6 * l + 4][...]           # [1,128]   f32
        beta = layer_refs[6 * l + 5][...]            # [1,128]   f32

        # fused source / pairing / residual / target projections: ONE MXU matmul
        proj = jnp.dot(x.astype(jnp.bfloat16), w_slab,
                       preferred_element_type=jnp.float32) + b_slab   # [Np,128]

        # shift-64 roll swaps slots 0<->2 and 1<->3 (direction-convention free):
        #   q slot0 = residual, q slot1 = lin_r output.
        q = pltpu.roll(proj, 64, axis=1)

        xl = proj * m0                               # slot0: aggregation values (f32)
        res = q * m0                                 # slot0: residual branch   (f32)
        # score pairing operands live in slot1; garbage in other lanes is
        # annihilated by att_m's zero rows, so no extra masking is needed.
        xl_p = proj.astype(jnp.bfloat16)
        xr_p = q.astype(jnp.bfloat16)

        # GATv2 scores, all heads at once: e[i,j,h] = att_h . LeakyReLU(xr_i+xl_j).
        # The bf16 pairwise tensor feeds one MXU matmul whose RHS both reduces
        # each head's channels (rows = slot1) and replicates the head score
        # across that head's channel lanes (cols = slot0).
        s = xr_p[:, None, :] + xl_p[None, :, :]      # [Np, Np, 128] bf16
        s = jnp.where(s > 0, s, NEG_SLOPE * s)       # LeakyReLU (bf16)
        e = jnp.dot(s.reshape(n * n, LANE), att_m,
                    preferred_element_type=jnp.float32).reshape(n, n, LANE)

        # masked softmax over incoming sources j (additive mask, fp32 stats)
        e = e + adj_bias[:, :, None]
        e = e - jnp.max(e, axis=1, keepdims=True)
        p = jnp.exp(e)
        alpha = p * pl.reciprocal(jnp.sum(p, axis=1, keepdims=True), approx=True)

        # head-wise aggregation: conv[i,k] = sum_j alpha[i,j,head(k)] * xl[j,k]
        conv = jnp.sum(alpha * xl[None, :, :], axis=1) + b_cv

        # residual add + LayerNorm (stats on masked real channels) + ReLU
        y = (conv + res) * m0
        mu = jnp.sum(y, axis=-1, keepdims=True) * inv_h
        d = (y - mu) * m0
        var = jnp.sum(d * d, axis=-1, keepdims=True) * inv_h
        x = jnp.maximum(d * lax.rsqrt(var + LN_EPS) * gamma + beta, 0.0)

    # global_mean_pool (normalized pooling matrix) + final Linear (bias=False)
    pooled = jnp.dot(pool_ref[...], x.astype(jnp.bfloat16),
                     preferred_element_type=jnp.float32)              # [Gp, 128]
    o_ref[...] = jnp.dot(pooled.astype(jnp.bfloat16), wfin_ref[...],
                         preferred_element_type=jnp.float32)          # [Gp, 128]


# ----------------------------------------------------------------------------
# Host-side packing: fuse + zero-pad every weight, pre-cast matmul RHS to bf16
# ----------------------------------------------------------------------------
def _pad2d(a, rows, cols, dtype=jnp.float32):
    a = jnp.asarray(a, jnp.float32)
    out = jnp.zeros((rows, cols), jnp.float32).at[:a.shape[0], :a.shape[1]].set(a)
    return out.astype(dtype)


def _build_att_matrix(att, head_dim, row_off, col_off):
    """[128,128] A with A[row_off+h*C+c, col_off+h*C+c'] = att[h,c]."""
    num_heads = att.shape[0]
    a = jnp.zeros((LANE, LANE), jnp.float32)
    for h in range(num_heads):
        r, c = row_off + h * head_dim, col_off + h * head_dim
        blk = jnp.broadcast_to(att[h][:, None], (head_dim, head_dim))
        a = a.at[r:r + head_dim, c:c + head_dim].set(blk)
    return a.astype(jnp.bfloat16)


def pack_params(params, num_heads):
    packed = []
    for p in params["layers"]:
        hidden = p["wl"].shape[1]
        assert hidden <= SLOT, "compact 4-slot packing needs hidden <= 32"
        head_dim = hidden // num_heads
        in_dim = p["wl"].shape[0]

        w = jnp.zeros((LANE, LANE), jnp.float32)
        w = w.at[:in_dim, 0 * SLOT:0 * SLOT + hidden].set(p["wl"])    # slot0: values
        w = w.at[:in_dim, 1 * SLOT:1 * SLOT + hidden].set(p["wl"])    # slot1: pairing copy
        w = w.at[:in_dim, 2 * SLOT:2 * SLOT + hidden].set(p["wres"])  # slot2: residual
        w = w.at[:in_dim, 3 * SLOT:3 * SLOT + hidden].set(p["wr"])    # slot3: lin_r
        b = jnp.zeros((1, LANE), jnp.float32)
        b = b.at[:, 0 * SLOT:0 * SLOT + hidden].set(p["bl"])
        b = b.at[:, 1 * SLOT:1 * SLOT + hidden].set(p["bl"])
        b = b.at[:, 2 * SLOT:2 * SLOT + hidden].set(p["bres"])
        b = b.at[:, 3 * SLOT:3 * SLOT + hidden].set(p["br"])

        att_m = _build_att_matrix(p["att"], head_dim, row_off=SLOT, col_off=0)
        packed += [w.astype(jnp.bfloat16), b, att_m,
                   _pad2d(p["bconv"], 1, LANE), _pad2d(p["gamma"], 1, LANE),
                   _pad2d(p["beta"], 1, LANE)]
    w_final = _pad2d(params["final_w"], LANE, LANE, dtype=jnp.bfloat16)
    return packed, w_final


# ----------------------------------------------------------------------------
# Forward wrapper
# ----------------------------------------------------------------------------
def graph_attn_transformer_forward(node_feats, edge_index, batch, params,
                                   num_heads, num_graphs):
    n = node_feats.shape[0]
    hidden = params["layers"][0]["wl"].shape[1]
    num_layers = len(params["layers"])
    out_size = params["final_w"].shape[1]

    n_pad = _round_up(n, 8)
    g_pad = _round_up(num_graphs, 8)

    # node features, zero-padded to [n_pad, 128]
    x_pad = _pad2d(node_feats.astype(jnp.float32), n_pad, LANE)

    # additive softmax mask (0 on edges incl. self-loops, -1e30 elsewhere),
    # built ONCE and reused by every head of every layer.
    src, dst = edge_index[0], edge_index[1]
    adj = jnp.zeros((n_pad, n_pad), jnp.float32).at[dst, src].set(1.0)
    adj = jnp.maximum(adj, jnp.eye(n_pad, dtype=jnp.float32))   # add self-loops
    adj_bias = (adj - 1.0) * 1e30

    # normalized mean-pool matrix, bf16, padded to [g_pad, n_pad]
    onehot = (batch[None, :] == jnp.arange(num_graphs)[:, None]).astype(jnp.float32)
    counts = jnp.maximum(jnp.sum(onehot, axis=1, keepdims=True), 1.0)
    pool = _pad2d(onehot / counts, g_pad, n_pad, dtype=jnp.bfloat16)

    layer_args, w_final = pack_params(params, num_heads)
    args = [x_pad, adj_bias] + layer_args + [pool, w_final]

    kernel = functools.partial(_fused_forward_kernel,
                               num_layers=num_layers, hidden=hidden)
    out_pad = pl.pallas_call(
        kernel,
        out_shape=jax.ShapeDtypeStruct((g_pad, LANE), jnp.float32),
        in_specs=[_VMEM] * len(args),
        out_specs=_VMEM,
        compiler_params=pltpu.CompilerParams(vmem_limit_bytes=32 * 1024 * 1024),
    )(*args)

    return out_pad[:num_graphs, :out_size]


# ----------------------------------------------------------------------------
# Pure-JAX reference (fp32) for validation
# ----------------------------------------------------------------------------
def reference_forward(node_feats, edge_index, batch, params, num_heads, num_graphs):
    x = node_feats.astype(jnp.float32)
    n = x.shape[0]
    src, dst = edge_index[0], edge_index[1]
    adj = jnp.zeros((n, n), jnp.float32).at[dst, src].set(1.0)
    adj = jnp.maximum(adj, jnp.eye(n, dtype=jnp.float32))
    for p in params["layers"]:
        hidden = p["wl"].shape[1]
        c = hidden // num_heads
        xl = x @ p["wl"] + p["bl"][0]
        xr = x @ p["wr"] + p["br"][0]
        res = x @ p["wres"] + p["bres"][0]
        xl_h = xl.reshape(n, num_heads, c)
        xr_h = xr.reshape(n, num_heads, c)
        s = xr_h[:, None] + xl_h[None, :, :, :]            # [i, j, H, C]
        s = jnp.where(s > 0, s, NEG_SLOPE * s)
        e = jnp.einsum("ijhc,hc->ijh", s, p["att"])
        e = jnp.where(adj[:, :, None] > 0, e, -jnp.inf)
        a = jax.nn.softmax(e, axis=1)
        conv = jnp.einsum("ijh,jhc->ihc", a, xl_h).reshape(n, hidden) + p["bconv"][0]
        y = conv + res
        mu = y.mean(-1, keepdims=True)
        var = jnp.mean((y - mu) ** 2, axis=-1, keepdims=True)
        x = jnp.maximum((y - mu) / jnp.sqrt(var + LN_EPS) * p["gamma"][0] + p["beta"][0],
                        0.0)
    onehot = (batch[None, :] == jnp.arange(num_graphs)[:, None]).astype(jnp.float32)
    pooled = (onehot @ x) / jnp.maximum(onehot.sum(1, keepdims=True), 1.0)
    return pooled @ params["final_w"]


# ----------------------------------------------------------------------------
# Deterministic parameter init (synthetic; mirrors module __init__ shapes)
# ----------------------------------------------------------------------------
def init_layer_params(key, in_dim, hidden, num_heads):
    ks = jax.random.split(key, 8)
    s = 0.1
    head_dim = hidden // num_heads
    return dict(
        wl=s * jax.random.normal(ks[0], (in_dim, hidden), jnp.float32),
        bl=s * jax.random.normal(ks[1], (1, hidden), jnp.float32),
        wr=s * jax.random.normal(ks[2], (in_dim, hidden), jnp.float32),
        br=s * jax.random.normal(ks[3], (1, hidden), jnp.float32),
        att=s * jax.random.normal(ks[4], (num_heads, head_dim), jnp.float32),
        bconv=s * jax.random.normal(ks[5], (1, hidden), jnp.float32),
        wres=s * jax.random.normal(ks[6], (in_dim, hidden), jnp.float32),
        bres=s * jax.random.normal(ks[7], (1, hidden), jnp.float32),
        gamma=jnp.ones((1, hidden), jnp.float32),   # LayerNorm default init
        beta=jnp.zeros((1, hidden), jnp.float32),
    )


def init_model_params(key, input_size, hidden_size, output_size, num_layers, num_heads):
    keys = jax.random.split(key, num_layers + 1)
    layers = [init_layer_params(keys[0], input_size, hidden_size, num_heads)]
    for i in range(num_layers - 1):
        layers.append(init_layer_params(keys[i + 1], hidden_size, hidden_size, num_heads))
    final_w = 0.1 * jax.random.normal(keys[-1], (hidden_size, output_size), jnp.float32)
    return dict(layers=layers, final_w=final_w)


# ----------------------------------------------------------------------------
if __name__ == "__main__":
    # model config: GraphAttnTransformer(input_size=8, hidden_size=32, output_size=4,
    #                                    num_layers=2, num_heads=4, dropout=0.0, type=1)
    INPUT_SIZE, HIDDEN_SIZE, OUTPUT_SIZE = 8, 32, 4
    NUM_LAYERS, NUM_HEADS = 2, 4
    NUM_GRAPHS, NODES_PER_GRAPH = 2, 8
    N = NUM_GRAPHS * NODES_PER_GRAPH

    key = jax.random.PRNGKey(0)
    k_feat, k_e0, k_e1, k_params = jax.random.split(key, 4)

    # synthetic graph batch (2 graphs of 8 nodes each), node features [N, input_size]
    node_feats = jax.random.normal(k_feat, (N, INPUT_SIZE), jnp.float32)
    src0 = jax.random.randint(k_e0, (16,), 0, NODES_PER_GRAPH)
    dst0 = jax.random.randint(k_e1, (16,), 0, NODES_PER_GRAPH)
    src = jnp.concatenate([src0, src0 + NODES_PER_GRAPH])
    dst = jnp.concatenate([dst0, dst0 + NODES_PER_GRAPH])
    edge_index = jnp.stack([src, dst])                           # [2, 32]
    batch = jnp.repeat(jnp.arange(NUM_GRAPHS), NODES_PER_GRAPH)  # [N]

    params = init_model_params(k_params, INPUT_SIZE, HIDDEN_SIZE, OUTPUT_SIZE,
                               NUM_LAYERS, NUM_HEADS)

    out = graph_attn_transformer_forward(node_feats, edge_index, batch, params,
                                         NUM_HEADS, NUM_GRAPHS)
    out = jax.block_until_ready(out)
    assert out.shape == (NUM_GRAPHS, OUTPUT_SIZE) and out.dtype == jnp.float32
    assert bool(jnp.all(jnp.isfinite(out)))

    # fp32 reference check (loose tolerance: kernel uses bf16 MXU inputs and an
    # approximate EUP reciprocal for the softmax denominator)
    ref = reference_forward(node_feats, edge_index, batch, params,
                            NUM_HEADS, NUM_GRAPHS)
    err = float(jnp.max(jnp.abs(out - ref)))
    assert err < 0.15, f"kernel vs reference mismatch: max abs err {err}"
    print("KERNEL_OK")
</pallas_src>

<mosaic_0001>
module attributes {stable_mosaic.version = 11 : i64} {
  func.func @_fused_forward_kernel(%arg0: memref<16x128xf32, #tpu.memory_space<vmem>>, %arg1: memref<16x16xf32, #tpu.memory_space<vmem>>, %arg2: memref<128x128xbf16, #tpu.memory_space<vmem>>, %arg3: memref<1x128xf32, #tpu.memory_space<vmem>>, %arg4: memref<128x128xbf16, #tpu.memory_space<vmem>>, %arg5: memref<1x128xf32, #tpu.memory_space<vmem>>, %arg6: memref<1x128xf32, #tpu.memory_space<vmem>>, %arg7: memref<1x128xf32, #tpu.memory_space<vmem>>, %arg8: memref<128x128xbf16, #tpu.memory_space<vmem>>, %arg9: memref<1x128xf32, #tpu.memory_space<vmem>>, %arg10: memref<128x128xbf16, #tpu.memory_space<vmem>>, %arg11: memref<1x128xf32, #tpu.memory_space<vmem>>, %arg12: memref<1x128xf32, #tpu.memory_space<vmem>>, %arg13: memref<1x128xf32, #tpu.memory_space<vmem>>, %arg14: memref<8x16xbf16, #tpu.memory_space<vmem>>, %arg15: memref<128x128xbf16, #tpu.memory_space<vmem>>, %arg16: memref<8x128xf32, #tpu.memory_space<vmem>>) attributes {dimension_semantics = [], scalar_prefetch = 0 : i64, scratch_operands = 0 : i64, tpu.core_type = #tpu.core_type<tc>} {
    %c0 = arith.constant 0 : index
    %c0_0 = arith.constant 0 : index
    %0 = vector.load %arg0[%c0, %c0_0] : memref<16x128xf32, #tpu.memory_space<vmem>>, vector<16x128xf32>
    %c0_1 = arith.constant 0 : index
    %c0_2 = arith.constant 0 : index
    %1 = vector.load %arg1[%c0_1, %c0_2] : memref<16x16xf32, #tpu.memory_space<vmem>>, vector<16x16xf32>
    %2 = tpu.iota {dimensions = array<i32: 1>} : vector<1x128xi32>
    %c32_i32 = arith.constant 32 : i32
    %3 = vector.broadcast %c32_i32 : i32 to vector<1x128xi32>
    %4 = arith.cmpi slt, %2, %3 : vector<1x128xi32>
    %5 = arith.extui %4 : vector<1x128xi1> to vector<1x128xi32>
    %6 = arith.sitofp %5 : vector<1x128xi32> to vector<1x128xf32>
    %c0_3 = arith.constant 0 : index
    %c0_4 = arith.constant 0 : index
    %7 = vector.load %arg2[%c0_3, %c0_4] : memref<128x128xbf16, #tpu.memory_space<vmem>>, vector<128x128xbf16>
    %c0_5 = arith.constant 0 : index
    %c0_6 = arith.constant 0 : index
    %8 = vector.load %arg3[%c0_5, %c0_6] : memref<1x128xf32, #tpu.memory_space<vmem>>, vector<1x128xf32>
    %c0_7 = arith.constant 0 : index
    %c0_8 = arith.constant 0 : index
    %9 = vector.load %arg4[%c0_7, %c0_8] : memref<128x128xbf16, #tpu.memory_space<vmem>>, vector<128x128xbf16>
    %c0_9 = arith.constant 0 : index
    %c0_10 = arith.constant 0 : index
    %10 = vector.load %arg5[%c0_9, %c0_10] : memref<1x128xf32, #tpu.memory_space<vmem>>, vector<1x128xf32>
    %c0_11 = arith.constant 0 : index
    %c0_12 = arith.constant 0 : index
    %11 = vector.load %arg6[%c0_11, %c0_12] : memref<1x128xf32, #tpu.memory_space<vmem>>, vector<1x128xf32>
    %c0_13 = arith.constant 0 : index
    %c0_14 = arith.constant 0 : index
    %12 = vector.load %arg7[%c0_13, %c0_14] : memref<1x128xf32, #tpu.memory_space<vmem>>, vector<1x128xf32>
    %13 = arith.truncf %0 : vector<16x128xf32> to vector<16x128xbf16>
    %cst = arith.constant dense<0.000000e+00> : vector<16x128xf32>
    %14 = tpu.matmul %13, %7, %cst {dimension_numbers = #tpu.dot_dimension_numbers<[1], [0], [0], [1], [0, 0, 1, 1], [], []>} : vector<16x128xbf16>, vector<128x128xbf16>, vector<16x128xf32> -> vector<16x128xf32>
    %15 = vector.broadcast %8 : vector<1x128xf32> to vector<16x128xf32>
    %16 = arith.addf %14, %15 : vector<16x128xf32>
    %c64_i32 = arith.constant 64 : i32
    %17 = tpu.dynamic_rotate %16 by %c64_i32 dim 1 : vector<16x128xf32>, i32 -> vector<16x128xf32>
    %18 = vector.broadcast %6 : vector<1x128xf32> to vector<16x128xf32>
    %19 = arith.mulf %16, %18 : vector<16x128xf32>
    %20 = vector.broadcast %6 : vector<1x128xf32> to vector<16x128xf32>
    %21 = arith.mulf %17, %20 : vector<16x128xf32>
    %22 = arith.truncf %16 : vector<16x128xf32> to vector<16x128xbf16>
    %23 = arith.truncf %17 : vector<16x128xf32> to vector<16x128xbf16>
    %24 = vector.shape_cast %23 : vector<16x128xbf16> to vector<16x1x128xbf16>
    %25 = vector.shape_cast %22 : vector<16x128xbf16> to vector<1x16x128xbf16>
    %26 = vector.broadcast %24 : vector<16x1x128xbf16> to vector<16x16x128xbf16>
    %27 = vector.broadcast %25 : vector<1x16x128xbf16> to vector<16x16x128xbf16>
    %28 = arith.addf %26, %27 : vector<16x16x128xbf16>
    %cst_15 = arith.constant 0.000000e+00 : bf16
    %29 = vector.broadcast %cst_15 : bf16 to vector<16x16x128xbf16>
    %30 = arith.cmpf ogt, %28, %29 : vector<16x16x128xbf16>
    %cst_16 = arith.constant 2.001950e-01 : bf16
    %31 = vector.broadcast %cst_16 : bf16 to vector<16x16x128xbf16>
    %32 = arith.mulf %31, %28 : vector<16x16x128xbf16>
    %33 = arith.select %30, %28, %32 : vector<16x16x128xi1>, vector<16x16x128xbf16>
    %34 = vector.shape_cast %33 : vector<16x16x128xbf16> to vector<256x128xbf16>
    %cst_17 = arith.constant dense<0.000000e+00> : vector<256x128xf32>
    %35 = tpu.matmul %34, %9, %cst_17 {dimension_numbers = #tpu.dot_dimension_numbers<[1], [0], [0], [1], [0, 0, 1, 1], [], []>} : vector<256x128xbf16>, vector<128x128xbf16>, vector<256x128xf32> -> vector<256x128xf32>
    %36 = vector.shape_cast %35 : vector<256x128xf32> to vector<16x16x128xf32>
    %37 = vector.shape_cast %1 : vector<16x16xf32> to vector<16x16x1xf32>
    %38 = vector.broadcast %37 : vector<16x16x1xf32> to vector<16x16x128xf32>
    %39 = arith.addf %36, %38 : vector<16x16x128xf32>
    %cst_18 = arith.constant dense<0xFF800000> : vector<16x128xf32>
    %40 = vector.multi_reduction <maximumf>, %39, %cst_18 [1] : vector<16x16x128xf32> to vector<16x128xf32>
    %41 = vector.shape_cast %40 : vector<16x128xf32> to vector<16x1x128xf32>
    %42 = vector.broadcast %41 : vector<16x1x128xf32> to vector<16x16x128xf32>
    %43 = arith.subf %39, %42 : vector<16x16x128xf32>
    %44 = math.exp %43 : vector<16x16x128xf32>
    %cst_19 = arith.constant dense<0.000000e+00> : vector<16x128xf32>
    %45 = vector.multi_reduction <add>, %44, %cst_19 [1] : vector<16x16x128xf32> to vector<16x128xf32>
    %46 = vector.shape_cast %45 : vector<16x128xf32> to vector<16x1x128xf32>
    %47 = tpu.reciprocal %46 {approx = true} : vector<16x1x128xf32> -> vector<16x1x128xf32>
    %48 = vector.broadcast %47 : vector<16x1x128xf32> to vector<16x16x128xf32>
    %49 = arith.mulf %44, %48 : vector<16x16x128xf32>
    %50 = vector.shape_cast %19 : vector<16x128xf32> to vector<1x16x128xf32>
    %51 = vector.broadcast %50 : vector<1x16x128xf32> to vector<16x16x128xf32>
    %52 = arith.mulf %49, %51 : vector<16x16x128xf32>
    %cst_20 = arith.constant dense<0.000000e+00> : vector<16x128xf32>
    %53 = vector.multi_reduction <add>, %52, %cst_20 [1] : vector<16x16x128xf32> to vector<16x128xf32>
    %54 = vector.broadcast %10 : vector<1x128xf32> to vector<16x128xf32>
    %55 = arith.addf %53, %54 : vector<16x128xf32>
    %56 = arith.addf %55, %21 : vector<16x128xf32>
    %57 = vector.broadcast %6 : vector<1x128xf32> to vector<16x128xf32>
    %58 = arith.mulf %56, %57 : vector<16x128xf32>
    %cst_21 = arith.constant dense<0.000000e+00> : vector<16xf32>
    %59 = vector.multi_reduction <add>, %58, %cst_21 [1] : vector<16x128xf32> to vector<16xf32>
    %60 = vector.shape_cast %59 : vector<16xf32> to vector<16x1xf32>
    %cst_22 = arith.constant 3.125000e-02 : f32
    %61 = vector.broadcast %cst_22 : f32 to vector<16x1xf32>
    %62 = arith.mulf %60, %61 : vector<16x1xf32>
    %63 = vector.broadcast %62 : vector<16x1xf32> to vector<16x128xf32>
    %64 = arith.subf %58, %63 : vector<16x128xf32>
    %65 = vector.broadcast %6 : vector<1x128xf32> to vector<16x128xf32>
    %66 = arith.mulf %64, %65 : vector<16x128xf32>
    %67 = arith.mulf %66, %66 : vector<16x128xf32>
    %cst_23 = arith.constant dense<0.000000e+00> : vector<16xf32>
    %68 = vector.multi_reduction <add>, %67, %cst_23 [1] : vector<16x128xf32> to vector<16xf32>
    %69 = vector.shape_cast %68 : vector<16xf32> to vector<16x1xf32>
    %cst_24 = arith.constant 3.125000e-02 : f32
    %70 = vector.broadcast %cst_24 : f32 to vector<16x1xf32>
    %71 = arith.mulf %69, %70 : vector<16x1xf32>
    %cst_25 = arith.constant 9.99999974E-6 : f32
    %72 = vector.broadcast %cst_25 : f32 to vector<16x1xf32>
    %73 = arith.addf %71, %72 : vector<16x1xf32>
    %74 = math.rsqrt %73 : vector<16x1xf32>
    %75 = vector.broadcast %74 : vector<16x1xf32> to vector<16x128xf32>
    %76 = arith.mulf %66, %75 : vector<16x128xf32>
    %77 = vector.broadcast %11 : vector<1x128xf32> to vector<16x128xf32>
    %78 = arith.mulf %76, %77 : vector<16x128xf32>
    %79 = vector.broadcast %12 : vector<1x128xf32> to vector<16x128xf32>
    %80 = arith.addf %78, %79 : vector<16x128xf32>
    %cst_26 = arith.constant 0.000000e+00 : f32
    %81 = vector.broadcast %cst_26 : f32 to vector<16x128xf32>
    %82 = arith.maximumf %80, %81 : vector<16x128xf32>
    %c0_27 = arith.constant 0 : index
    %c0_28 = arith.constant 0 : index
    %83 = vector.load %arg8[%c0_27, %c0_28] : memref<128x128xbf16, #tpu.memory_space<vmem>>, vector<128x128xbf16>
    %c0_29 = arith.constant 0 : index
    %c0_30 = arith.constant 0 : index
    %84 = vector.load %arg9[%c0_29, %c0_30] : memref<1x128xf32, #tpu.memory_space<vmem>>, vector<1x128xf32>
    %c0_31 = arith.constant 0 : index
    %c0_32 = arith.constant 0 : index
    %85 = vector.load %arg10[%c0_31, %c0_32] : memref<128x128xbf16, #tpu.memory_space<vmem>>, vector<128x128xbf16>
    %c0_33 = arith.constant 0 : index
    %c0_34 = arith.constant 0 : index
    %86 = vector.load %arg11[%c0_33, %c0_34] : memref<1x128xf32, #tpu.memory_space<vmem>>, vector<1x128xf32>
    %c0_35 = arith.constant 0 : index
    %c0_36 = arith.constant 0 : index
    %87 = vector.load %arg12[%c0_35, %c0_36] : memref<1x128xf32, #tpu.memory_space<vmem>>, vector<1x128xf32>
    %c0_37 = arith.constant 0 : index
    %c0_38 = arith.constant 0 : index
    %88 = vector.load %arg13[%c0_37, %c0_38] : memref<1x128xf32, #tpu.memory_space<vmem>>, vector<1x128xf32>
    %89 = arith.truncf %82 : vector<16x128xf32> to vector<16x128xbf16>
    %cst_39 = arith.constant dense<0.000000e+00> : vector<16x128xf32>
    %90 = tpu.matmul %89, %83, %cst_39 {dimension_numbers = #tpu.dot_dimension_numbers<[1], [0], [0], [1], [0, 0, 1, 1], [], []>} : vector<16x128xbf16>, vector<128x128xbf16>, vector<16x128xf32> -> vector<16x128xf32>
    %91 = vector.broadcast %84 : vector<1x128xf32> to vector<16x128xf32>
    %92 = arith.addf %90, %91 : vector<16x128xf32>
    %c64_i32_40 = arith.constant 64 : i32
    %93 = tpu.dynamic_rotate %92 by %c64_i32_40 dim 1 : vector<16x128xf32>, i32 -> vector<16x128xf32>
    %94 = vector.broadcast %6 : vector<1x128xf32> to vector<16x128xf32>
    %95 = arith.mulf %92, %94 : vector<16x128xf32>
    %96 = vector.broadcast %6 : vector<1x128xf32> to vector<16x128xf32>
    %97 = arith.mulf %93, %96 : vector<16x128xf32>
    %98 = arith.truncf %92 : vector<16x128xf32> to vector<16x128xbf16>
    %99 = arith.truncf %93 : vector<16x128xf32> to vector<16x128xbf16>
    %100 = vector.shape_cast %99 : vector<16x128xbf16> to vector<16x1x128xbf16>
    %101 = vector.shape_cast %98 : vector<16x128xbf16> to vector<1x16x128xbf16>
    %102 = vector.broadcast %100 : vector<16x1x128xbf16> to vector<16x16x128xbf16>
    %103 = vector.broadcast %101 : vector<1x16x128xbf16> to vector<16x16x128xbf16>
    %104 = arith.addf %102, %103 : vector<16x16x128xbf16>
    %cst_41 = arith.constant 0.000000e+00 : bf16
    %105 = vector.broadcast %cst_41 : bf16 to vector<16x16x128xbf16>
    %106 = arith.cmpf ogt, %104, %105 : vector<16x16x128xbf16>
    %cst_42 = arith.constant 2.001950e-01 : bf16
    %107 = vector.broadcast %cst_42 : bf16 to vector<16x16x128xbf16>
    %108 = arith.mulf %107, %104 : vector<16x16x128xbf16>
    %109 = arith.select %106, %104, %108 : vector<16x16x128xi1>, vector<16x16x128xbf16>
    %110 = vector.shape_cast %109 : vector<16x16x128xbf16> to vector<256x128xbf16>
    %cst_43 = arith.constant dense<0.000000e+00> : vector<256x128xf32>
    %111 = tpu.matmul %110, %85, %cst_43 {dimension_numbers = #tpu.dot_dimension_numbers<[1], [0], [0], [1], [0, 0, 1, 1], [], []>} : vector<256x128xbf16>, vector<128x128xbf16>, vector<256x128xf32> -> vector<256x128xf32>
    %112 = vector.shape_cast %111 : vector<256x128xf32> to vector<16x16x128xf32>
    %113 = vector.shape_cast %1 : vector<16x16xf32> to vector<16x16x1xf32>
    %114 = vector.broadcast %113 : vector<16x16x1xf32> to vector<16x16x128xf32>
    %115 = arith.addf %112, %114 : vector<16x16x128xf32>
    %cst_44 = arith.constant dense<0xFF800000> : vector<16x128xf32>
    %116 = vector.multi_reduction <maximumf>, %115, %cst_44 [1] : vector<16x16x128xf32> to vector<16x128xf32>
    %117 = vector.shape_cast %116 : vector<16x128xf32> to vector<16x1x128xf32>
    %118 = vector.broadcast %117 : vector<16x1x128xf32> to vector<16x16x128xf32>
    %119 = arith.subf %115, %118 : vector<16x16x128xf32>
    %120 = math.exp %119 : vector<16x16x128xf32>
    %cst_45 = arith.constant dense<0.000000e+00> : vector<16x128xf32>
    %121 = vector.multi_reduction <add>, %120, %cst_45 [1] : vector<16x16x128xf32> to vector<16x128xf32>
    %122 = vector.shape_cast %121 : vector<16x128xf32> to vector<16x1x128xf32>
    %123 = tpu.reciprocal %122 {approx = true} : vector<16x1x128xf32> -> vector<16x1x128xf32>
    %124 = vector.broadcast %123 : vector<16x1x128xf32> to vector<16x16x128xf32>
    %125 = arith.mulf %120, %124 : vector<16x16x128xf32>
    %126 = vector.shape_cast %95 : vector<16x128xf32> to vector<1x16x128xf32>
    %127 = vector.broadcast %126 : vector<1x16x128xf32> to vector<16x16x128xf32>
    %128 = arith.mulf %125, %127 : vector<16x16x128xf32>
    %cst_46 = arith.constant dense<0.000000e+00> : vector<16x128xf32>
    %129 = vector.multi_reduction <add>, %128, %cst_46 [1] : vector<16x16x128xf32> to vector<16x128xf32>
    %130 = vector.broadcast %86 : vector<1x128xf32> to vector<16x128xf32>
    %131 = arith.addf %129, %130 : vector<16x128xf32>
    %132 = arith.addf %131, %97 : vector<16x128xf32>
    %133 = vector.broadcast %6 : vector<1x128xf32> to vector<16x128xf32>
    %134 = arith.mulf %132, %133 : vector<16x128xf32>
    %cst_47 = arith.constant dense<0.000000e+00> : vector<16xf32>
    %135 = vector.multi_reduction <add>, %134, %cst_47 [1] : vector<16x128xf32> to vector<16xf32>
    %136 = vector.shape_cast %135 : vector<16xf32> to vector<16x1xf32>
    %cst_48 = arith.constant 3.125000e-02 : f32
    %137 = vector.broadcast %cst_48 : f32 to vector<16x1xf32>
    %138 = arith.mulf %136, %137 : vector<16x1xf32>
    %139 = vector.broadcast %138 : vector<16x1xf32> to vector<16x128xf32>
    %140 = arith.subf %134, %139 : vector<16x128xf32>
    %141 = vector.broadcast %6 : vector<1x128xf32> to vector<16x128xf32>
    %142 = arith.mulf %140, %141 : vector<16x128xf32>
    %143 = arith.mulf %142, %142 : vector<16x128xf32>
    %cst_49 = arith.constant dense<0.000000e+00> : vector<16xf32>
    %144 = vector.multi_reduction <add>, %143, %cst_49 [1] : vector<16x128xf32> to vector<16xf32>
    %145 = vector.shape_cast %144 : vector<16xf32> to vector<16x1xf32>
    %cst_50 = arith.constant 3.125000e-02 : f32
    %146 = vector.broadcast %cst_50 : f32 to vector<16x1xf32>
    %147 = arith.mulf %145, %146 : vector<16x1xf32>
    %cst_51 = arith.constant 9.99999974E-6 : f32
    %148 = vector.broadcast %cst_51 : f32 to vector<16x1xf32>
    %149 = arith.addf %147, %148 : vector<16x1xf32>
    %150 = math.rsqrt %149 : vector<16x1xf32>
    %151 = vector.broadcast %150 : vector<16x1xf32> to vector<16x128xf32>
    %152 = arith.mulf %142, %151 : vector<16x128xf32>
    %153 = vector.broadcast %87 : vector<1x128xf32> to vector<16x128xf32>
    %154 = arith.mulf %152, %153 : vector<16x128xf32>
    %155 = vector.broadcast %88 : vector<1x128xf32> to vector<16x128xf32>
    %156 = arith.addf %154, %155 : vector<16x128xf32>
    %cst_52 = arith.constant 0.000000e+00 : f32
    %157 = vector.broadcast %cst_52 : f32 to vector<16x128xf32>
    %158 = arith.maximumf %156, %157 : vector<16x128xf32>
    %c0_53 = arith.constant 0 : index
    %c0_54 = arith.constant 0 : index
    %159 = vector.load %arg14[%c0_53, %c0_54] : memref<8x16xbf16, #tpu.memory_space<vmem>>, vector<8x16xbf16>
    %160 = arith.truncf %158 : vector<16x128xf32> to vector<16x128xbf16>
    %cst_55 = arith.constant dense<0.000000e+00> : vector<8x128xf32>
    %161 = tpu.matmul %159, %160, %cst_55 {dimension_numbers = #tpu.dot_dimension_numbers<[1], [0], [0], [1], [0, 0, 1, 1], [], []>} : vector<8x16xbf16>, vector<16x128xbf16>, vector<8x128xf32> -> vector<8x128xf32>
    %162 = arith.truncf %161 : vector<8x128xf32> to vector<8x128xbf16>
    %c0_56 = arith.constant 0 : index
    %c0_57 = arith.constant 0 : index
    %163 = vector.load %arg15[%c0_56, %c0_57] : memref<128x128xbf16, #tpu.memory_space<vmem>>, vector<128x128xbf16>
    %cst_58 = arith.constant dense<0.000000e+00> : vector<8x128xf32>
    %164 = tpu.matmul %162, %163, %cst_58 {dimension_numbers = #tpu.dot_dimension_numbers<[1], [0], [0], [1], [0, 0, 1, 1], [], []>} : vector<8x128xbf16>, vector<128x128xbf16>, vector<8x128xf32> -> vector<8x128xf32>
    %c0_59 = arith.constant 0 : index
    %c0_60 = arith.constant 0 : index
    %165 = vector.load %arg16[%c0_59, %c0_60] : memref<8x128xf32, #tpu.memory_space<vmem>>, vector<8x128xf32>
    tpu.vector_store %arg16[%c0_59, %c0_60], %164 {strides = array<i32>} : memref<8x128xf32, #tpu.memory_space<vmem>>, vector<8x128xf32>,
    return
  }
}

</mosaic_0001>

<llo_original>
// kernel: tpu_custom_call.1
$region0: #{tpu_custom_call.1}
  #allocation0 [shape = 'u32[]', space=smem, size = 0x4, offset = 0x4, fixed_abs, tag = 'smem constant byte address 0x4 - core index']
  #allocation1 [shape = 'u32[144,128]{1,0:T(1,128)}', space=vmem, size = 0x12000, scoped, tag = 'internal scratch']
  %s0 = inlined_call_operand.hbm [shape: f32[16,128], index: 0, kind: input, shape index: {}]
  %s1 = inlined_call_operand.hbm [shape: f32[16,16], index: 1, kind: input, shape index: {}]
  %s2 = inlined_call_operand.hbm [shape: bf16[128,128], index: 2, kind: input, shape index: {}]
  %s3 = inlined_call_operand.vmem [shape: f32[1,128], index: 3, kind: input, shape index: {}]
  %s4 = inlined_call_operand.hbm [shape: bf16[128,128], index: 4, kind: input, shape index: {}]
  %s5 = inlined_call_operand.vmem [shape: f32[1,128], index: 5, kind: input, shape index: {}]
  %s6 = inlined_call_operand.vmem [shape: f32[1,128], index: 6, kind: input, shape index: {}]
  %s7 = inlined_call_operand.vmem [shape: f32[1,128], index: 7, kind: input, shape index: {}]
  %s8 = inlined_call_operand.hbm [shape: bf16[128,128], index: 8, kind: input, shape index: {}]
  %s9 = inlined_call_operand.vmem [shape: f32[1,128], index: 9, kind: input, shape index: {}]
  %s10 = inlined_call_operand.hbm [shape: bf16[128,128], index: 10, kind: input, shape index: {}]
  %s11 = inlined_call_operand.vmem [shape: f32[1,128], index: 11, kind: input, shape index: {}]
  %s12 = inlined_call_operand.vmem [shape: f32[1,128], index: 12, kind: input, shape index: {}]
  %s13 = inlined_call_operand.vmem [shape: f32[1,128], index: 13, kind: input, shape index: {}]
  %s14 = inlined_call_operand.vmem [shape: bf16[8,16], index: 14, kind: input, shape index: {}]
  %s15 = inlined_call_operand.hbm [shape: bf16[128,128], index: 15, kind: input, shape index: {}]
  %s16 = inlined_call_operand.hbm [shape: f32[8,128], index: 16, kind: output, shape index: {}]
  %s17 = sld [smem:[#allocation0]]
  $region102: #{tpu_custom_call.1} parent=0
    _
  %s19 = ssub.s32 1, %s17
  %s20 = scalar_select 0, %s19, %s17
  $region1: #{tpu_custom_call.1} parent=0
    #allocation2 [shape = 'u8[8192]{0}', space=vmem, size = 0x2000, scoped, tag = 'input window, operand 0, single buffered']
    #allocation3 [shape = 's32[1]{0}', space=sflag, size = 0x4, scoped, tag = 'scoped memory for tpu_custom_call.1']
    #allocation4 [shape = 's32[1]{0}', space=sflag, size = 0x4, scoped, tag = 'scoped memory for tpu_custom_call.1']
    #allocation5 [shape = 'u8[8192]{0}', space=vmem, size = 0x2000, scoped, tag = 'input window, operand 1, single buffered']
    #allocation6 [shape = 's32[1]{0}', space=sflag, size = 0x4, scoped, tag = 'scoped memory for tpu_custom_call.1']
    #allocation7 [shape = 'u8[32768]{0}', space=vmem, size = 0x8000, scoped, tag = 'input window, operand 2, single buffered']
    #allocation8 [shape = 'u8[32768]{0}', space=vmem, size = 0x8000, scoped, tag = 'input window, operand 4, single buffered']
    #allocation9 [shape = 's32[1]{0}', space=sflag, size = 0x4, scoped, tag = 'scoped memory for tpu_custom_call.1']
    #allocation10 [shape = 'u8[32768]{0}', space=vmem, size = 0x8000, scoped, tag = 'input window, operand 8, single buffered']
    #allocation11 [shape = 'u8[32768]{0}', space=vmem, size = 0x8000, scoped, tag = 'input window, operand 10, single buffered']
    #allocation12 [shape = 's32[1]{0}', space=sflag, size = 0x4, scoped, tag = 'scoped memory for tpu_custom_call.1']
    #allocation13 [shape = 'u8[32768]{0}', space=vmem, size = 0x8000, scoped, tag = 'input window, operand 15, single buffered']
    #allocation14 [shape = 'u8[4096]{0}', space=vmem, size = 0x1000, scoped, tag = 'output window, operand 0, single buffered']
    %21 = vsyncpa [#allocation3], 0
    %22 = vsyncpa [#allocation6], 0
    %23 = vsyncpa [#allocation9], 0
    %24 = vsyncpa [#allocation12], 0
    %25 = vsyncpa [#allocation4], 0
    // Predicated region
    $region2: #{tpu_custom_call.1} parent=1 // pred_check
      _
    $region3: #{tpu_custom_call.1} parent=1 // pred_check_branch
      %27 = sbr.rel (0) target = $region5
    $region4: #{tpu_custom_call.1} parent=1 // pred_region
      %s29 = ssub.s32 256, 256
      %30 = vsyncadd [#allocation3], %s29
      %s31 = sshll.u32 [#allocation2], 4
      %s32 = int_to_ptr.vmem [resolvable:$true] %s31
      %37 = dma.hbm_to_vmem [thread:$0]  %s0, 256, %s32, [#allocation3], 128, 128, 8
    $region5: #{tpu_custom_call.1} parent=1 // pred_fallthru
      _
    // Predicated region
    $region6: #{tpu_custom_call.1} parent=1 // pred_check
      _
    $region7: #{tpu_custom_call.1} parent=1 // pred_check_branch
      %39 = sbr.rel (0) target = $region9
    $region8: #{tpu_custom_call.1} parent=1 // pred_region
      %s41 = ssub.s32 256, 256
      %42 = vsyncadd [#allocation6], %s41
      %s43 = sshll.u32 [#allocation5], 4
      %s44 = int_to_ptr.vmem [resolvable:$true] %s43
      %49 = dma.hbm_to_vmem [thread:$0]  %s1, 256, %s44, [#allocation6], 128, 128, 8
    $region9: #{tpu_custom_call.1} parent=1 // pred_fallthru
      _
    // Predicated region
    $region10: #{tpu_custom_call.1} parent=1 // pred_check
      _
    $region11: #{tpu_custom_call.1} parent=1 // pred_check_branch
      %51 = sbr.rel (0) target = $region13
    $region12: #{tpu_custom_call.1} parent=1 // pred_region
      %s53 = ssub.s32 1024, 1024
      %54 = vsyncadd [#allocation6], %s53
      %s55 = sshll.u32 [#allocation7], 4
      %s56 = int_to_ptr.vmem [resolvable:$true] %s55
      %61 = dma.hbm_to_vmem [thread:$0]  %s2, 1024, %s56, [#allocation6], 64, 64, 4
    $region13: #{tpu_custom_call.1} parent=1 // pred_fallthru
      _
    // Predicated region
    $region14: #{tpu_custom_call.1} parent=1 // pred_check
      _
    $region15: #{tpu_custom_call.1} parent=1 // pred_check_branch
      %63 = sbr.rel (0) target = $region17
    $region16: #{tpu_custom_call.1} parent=1 // pred_region
      _
    $region17: #{tpu_custom_call.1} parent=1 // pred_fallthru
      _
    // Predicated region
    $region18: #{tpu_custom_call.1} parent=1 // pred_check
      _
    $region19: #{tpu_custom_call.1} parent=1 // pred_check_branch
      %65 = sbr.rel (0) target = $region21
    $region20: #{tpu_custom_call.1} parent=1 // pred_region
      %s67 = ssub.s32 1024, 1024
      %68 = vsyncadd [#allocation9], %s67
      %s69 = sshll.u32 [#allocation8], 4
      %s70 = int_to_ptr.vmem [resolvable:$true] %s69
      %75 = dma.hbm_to_vmem [thread:$0]  %s4, 1024, %s70, [#allocation9], 64, 64, 4
    $region21: #{tpu_custom_call.1} parent=1 // pred_fallthru
      _
    // Predicated region
    $region22: #{tpu_custom_call.1} parent=1 // pred_check
      _
    $region23: #{tpu_custom_call.1} parent=1 // pred_check_branch
      %77 = sbr.rel (0) target = $region25
    $region24: #{tpu_custom_call.1} parent=1 // pred_region
      _
    $region25: #{tpu_custom_call.1} parent=1 // pred_fallthru
      _
    // Predicated region
    $region26: #{tpu_custom_call.1} parent=1 // pred_check
      _
    $region27: #{tpu_custom_call.1} parent=1 // pred_check_branch
      %79 = sbr.rel (0) target = $region29
    $region28: #{tpu_custom_call.1} parent=1 // pred_region
      _
    $region29: #{tpu_custom_call.1} parent=1 // pred_fallthru
      _
    // Predicated region
    $region30: #{tpu_custom_call.1} parent=1 // pred_check
      _
    $region31: #{tpu_custom_call.1} parent=1 // pred_check_branch
      %81 = sbr.rel (0) target = $region33
    $region32: #{tpu_custom_call.1} parent=1 // pred_region
      _
    $region33: #{tpu_custom_call.1} parent=1 // pred_fallthru
      _
    // Predicated region
    $region34: #{tpu_custom_call.1} parent=1 // pred_check
      _
    $region35: #{tpu_custom_call.1} parent=1 // pred_check_branch
      %83 = sbr.rel (0) target = $region37
    $region36: #{tpu_custom_call.1} parent=1 // pred_region
      %s85 = ssub.s32 1024, 1024
      %86 = vsyncadd [#allocation9], %s85
      %s87 = sshll.u32 [#allocation10], 4
      %s88 = int_to_ptr.vmem [resolvable:$true] %s87
      %93 = dma.hbm_to_vmem [thread:$0]  %s8, 1024, %s88, [#allocation9], 64, 64, 4
    $region37: #{tpu_custom_call.1} parent=1 // pred_fallthru
      _
    // Predicated region
    $region38: #{tpu_custom_call.1} parent=1 // pred_check
      _
    $region39: #{tpu_custom_call.1} parent=1 // pred_check_branch
      %95 = sbr.rel (0) target = $region41
    $region40: #{tpu_custom_call.1} parent=1 // pred_region
      _
    $region41: #{tpu_custom_call.1} parent=1 // pred_fallthru
      _
    // Predicated region
    $region42: #{tpu_custom_call.1} parent=1 // pred_check
      _
    $region43: #{tpu_custom_call.1} parent=1 // pred_check_branch
      %97 = sbr.rel (0) target = $region45
    $region44: #{tpu_custom_call.1} parent=1 // pred_region
      %s99 = ssub.s32 1024, 1024
      %100 = vsyncadd [#allocation12], %s99
      %s101 = sshll.u32 [#allocation11], 4
      %s102 = int_to_ptr.vmem [resolvable:$true] %s101
      %107 = dma.hbm_to_vmem [thread:$0]  %s10, 1024, %s102, [#allocation12], 64, 64, 4
    $region45: #{tpu_custom_call.1} parent=1 // pred_fallthru
      _
    // Predicated region
    $region46: #{tpu_custom_call.1} parent=1 // pred_check
      _
    $region47: #{tpu_custom_call.1} parent=1 // pred_check_branch
      %109 = sbr.rel (0) target = $region49
    $region48: #{tpu_custom_call.1} parent=1 // pred_region
      _
    $region49: #{tpu_custom_call.1} parent=1 // pred_fallthru
      _
    // Predicated region
    $region50: #{tpu_custom_call.1} parent=1 // pred_check
      _
    $region51: #{tpu_custom_call.1} parent=1 // pred_check_branch
      %111 = sbr.rel (0) target = $region53
    $region52: #{tpu_custom_call.1} parent=1 // pred_region
      _
    $region53: #{tpu_custom_call.1} parent=1 // pred_fallthru
      _
    // Predicated region
    $region54: #{tpu_custom_call.1} parent=1 // pred_check
      _
    $region55: #{tpu_custom_call.1} parent=1 // pred_check_branch
      %113 = sbr.rel (0) target = $region57
    $region56: #{tpu_custom_call.1} parent=1 // pred_region
      _
    $region57: #{tpu_custom_call.1} parent=1 // pred_fallthru
      _
    // Predicated region
    $region58: #{tpu_custom_call.1} parent=1 // pred_check
      _
    $region59: #{tpu_custom_call.1} parent=1 // pred_check_branch
      %115 = sbr.rel (0) target = $region61
    $region60: #{tpu_custom_call.1} parent=1 // pred_region
      _
    $region61: #{tpu_custom_call.1} parent=1 // pred_fallthru
      _
    // Predicated region
    $region62: #{tpu_custom_call.1} parent=1 // pred_check
      _
    $region63: #{tpu_custom_call.1} parent=1 // pred_check_branch
      %117 = sbr.rel (0) target = $region65
    $region64: #{tpu_custom_call.1} parent=1 // pred_region
      %s119 = ssub.s32 1024, 1024
      %120 = vsyncadd [#allocation12], %s119
      %s121 = sshll.u32 [#allocation13], 4
      %s122 = int_to_ptr.vmem [resolvable:$true] %s121
      %127 = dma.hbm_to_vmem [thread:$0]  %s15, 1024, %s122, [#allocation12], 64, 64, 4
    $region65: #{tpu_custom_call.1} parent=1 // pred_fallthru
      _
    // Predicated region
    $region66: #{tpu_custom_call.1} parent=1 // pred_check
      _
    $region67: #{tpu_custom_call.1} parent=1 // pred_check_branch
      %129 = sbr.rel (0) target = $region69
    $region68: #{tpu_custom_call.1} parent=1 // pred_region
      %130 = dma.done [#allocation3], 256
    $region69: #{tpu_custom_call.1} parent=1 // pred_fallthru
      _
    // Predicated region
    $region70: #{tpu_custom_call.1} parent=1 // pred_check
      _
    $region71: #{tpu_custom_call.1} parent=1 // pred_check_branch
      %132 = sbr.rel (0) target = $region73
    $region72: #{tpu_custom_call.1} parent=1 // pred_region
      %133 = dma.done [#allocation6], 256
    $region73: #{tpu_custom_call.1} parent=1 // pred_fallthru
      _
    // Predicated region
    $region74: #{tpu_custom_call.1} parent=1 // pred_check
      _
    $region75: #{tpu_custom_call.1} parent=1 // pred_check_branch
      %135 = sbr.rel (0) target = $region77
    $region76: #{tpu_custom_call.1} parent=1 // pred_region
      %136 = dma.done [#allocation6], 1024
    $region77: #{tpu_custom_call.1} parent=1 // pred_fallthru
      _
    // Predicated region
    $region78: #{tpu_custom_call.1} parent=1 // pred_check
      _
    $region79: #{tpu_custom_call.1} parent=1 // pred_check_branch
      %138 = sbr.rel (0) target = $region81
    $region80: #{tpu_custom_call.1} parent=1 // pred_region
      %139 = dma.done [#allocation9], 1024
    $region81: #{tpu_custom_call.1} parent=1 // pred_fallthru
      _
    // Predicated region
    $region82: #{tpu_custom_call.1} parent=1 // pred_check
      _
    $region83: #{tpu_custom_call.1} parent=1 // pred_check_branch
      %141 = sbr.rel (0) target = $region85
    $region84: #{tpu_custom_call.1} parent=1 // pred_region
      %142 = dma.done [#allocation9], 1024
    $region85: #{tpu_custom_call.1} parent=1 // pred_fallthru
      _
    // Predicated region
    $region86: #{tpu_custom_call.1} parent=1 // pred_check
      _
    $region87: #{tpu_custom_call.1} parent=1 // pred_check_branch
      %144 = sbr.rel (0) target = $region89
    $region88: #{tpu_custom_call.1} parent=1 // pred_region
      %145 = dma.done [#allocation12], 1024
    $region89: #{tpu_custom_call.1} parent=1 // pred_fallthru
      _
    // Predicated region
    $region90: #{tpu_custom_call.1} parent=1 // pred_check
      _
    $region91: #{tpu_custom_call.1} parent=1 // pred_check_branch
      %147 = sbr.rel (0) target = $region93
    $region92: #{tpu_custom_call.1} parent=1 // pred_region
      %148 = dma.done [#allocation12], 1024
    $region93: #{tpu_custom_call.1} parent=1 // pred_fallthru
      _
    %v151 = vld [vmem:[#allocation2] sm:$0xff]
    %v152 = vld [vmem:[#allocation2 + $0x8] sm:$0xff]
    %v153 = vld [vmem:[#allocation5] sm:$0xff]
    %v154 = vld [vmem:[#allocation5 + $0x8] sm:$0xff]
    %v155 = vlaneseq
    %v156 = vand.u32 %v155, 127
    %vm157 = vcmp.lt.s32.totalorder %v156, 32
    %v158 = vsel %vm157, 1, 0
    %v159 = vcvt.s32.f32 %v158
    %v160 = vld [vmem:[#allocation7] sm:$0xf]
    %v161 = vld [vmem:[#allocation7 + $0x4] sm:$0xf]
    %v162 = vld [vmem:[#allocation7 + $0x8] sm:$0xf]
    %v163 = vld [vmem:[#allocation7 + $0xc] sm:$0xf]
    %v164 = vld [vmem:[#allocation7 + $0x10] sm:$0xf]
    %v165 = vld [vmem:[#allocation7 + $0x14] sm:$0xf]
    %v166 = vld [vmem:[#allocation7 + $0x18] sm:$0xf]
    %v167 = vld [vmem:[#allocation7 + $0x1c] sm:$0xf]
    %v168 = vld [vmem:[#allocation7 + $0x20] sm:$0xf]
    %v169 = vld [vmem:[#allocation7 + $0x24] sm:$0xf]
    %v170 = vld [vmem:[#allocation7 + $0x28] sm:$0xf]
    %v171 = vld [vmem:[#allocation7 + $0x2c] sm:$0xf]
    %v172 = vld [vmem:[#allocation7 + $0x30] sm:$0xf]
    %v173 = vld [vmem:[#allocation7 + $0x34] sm:$0xf]
    %v174 = vld [vmem:[#allocation7 + $0x38] sm:$0xf]
    %v175 = vld [vmem:[#allocation7 + $0x3c] sm:$0xf]
    %v176 = vld [vmem:[%s3] sm:$0x1]
    %v177 = vld [vmem:[#allocation8] sm:$0xf]
    %v178 = vld [vmem:[#allocation8 + $0x4] sm:$0xf]
    %v179 = vld [vmem:[#allocation8 + $0x8] sm:$0xf]
    %v180 = vld [vmem:[#allocation8 + $0xc] sm:$0xf]
    %v181 = vld [vmem:[#allocation8 + $0x10] sm:$0xf]
    %v182 = vld [vmem:[#allocation8 + $0x14] sm:$0xf]
    %v183 = vld [vmem:[#allocation8 + $0x18] sm:$0xf]
    %v184 = vld [vmem:[#allocation8 + $0x1c] sm:$0xf]
    %v185 = vld [vmem:[#allocation8 + $0x20] sm:$0xf]
    %v186 = vld [vmem:[#allocation8 + $0x24] sm:$0xf]
    %v187 = vld [vmem:[#allocation8 + $0x28] sm:$0xf]
    %v188 = vld [vmem:[#allocation8 + $0x2c] sm:$0xf]
    %v189 = vld [vmem:[#allocation8 + $0x30] sm:$0xf]
    %v190 = vld [vmem:[#allocation8 + $0x34] sm:$0xf]
    %v191 = vld [vmem:[#allocation8 + $0x38] sm:$0xf]
    %v192 = vld [vmem:[#allocation8 + $0x3c] sm:$0xf]
    %v193 = vld [vmem:[%s5] sm:$0x1]
    %v194 = vld [vmem:[%s6] sm:$0x1]
    %v195 = vld [vmem:[%s7] sm:$0x1]
    %v196 = vpack.c.bf16 %v152, %v151
    %v198 = vlaneseq
    %v199 = vshrl.u32 %v198, 7
    %v200 = vsub.s32 0, %v199
    %v201 = vrot.slane %v176, %v200
    %v219 = vunpack.c.l.b16 %v160
    %v220 = vunpack.c.l.b16 %v161
    %v221 = vunpack.c.l.b16 %v162
    %v222 = vunpack.c.l.b16 %v163
    %v223 = vunpack.c.l.b16 %v164
    %v224 = vunpack.c.l.b16 %v165
    %v225 = vunpack.c.l.b16 %v166
    %v226 = vunpack.c.l.b16 %v167
    %v227 = vunpack.c.l.b16 %v168
    %v228 = vunpack.c.l.b16 %v169
    %v229 = vunpack.c.l.b16 %v170
    %v230 = vunpack.c.l.b16 %v171
    %v231 = vunpack.c.l.b16 %v172
    %v232 = vunpack.c.l.b16 %v173
    %v233 = vunpack.c.l.b16 %v174
    %v234 = vunpack.c.l.b16 %v175
    %v235 = vpack.c.b16 %v220, %v219
    %v236 = vpack.c.b16 %v222, %v221
    %v237 = vpack.c.b16 %v224, %v223
    %v238 = vpack.c.b16 %v226, %v225
    %v239 = vpack.c.b16 %v228, %v227
    %v240 = vpack.c.b16 %v230, %v229
    %v241 = vpack.c.b16 %v232, %v231
    %v242 = vpack.c.b16 %v234, %v233
    %251 = vmatprep.subr.bf16.mxu0 0
    %252 = vmatpush1.bf16.msra.mxu0 %v235
    %253 = vmatprep.subr.bf16.mxu0 0
    %254 = vmatpush1.bf16.msra.mxu0 %v236
    %255 = vmatprep.subr.bf16.mxu0 0
    %256 = vmatpush1.bf16.msra.mxu0 %v237
    %257 = vmatprep.subr.bf16.mxu0 0
    %258 = vmatpush1.bf16.msra.mxu0 %v238
    %259 = vmatprep.subr.bf16.mxu0 0
    %260 = vmatpush1.bf16.msra.mxu0 %v239
    %261 = vmatprep.subr.bf16.mxu0 0
    %262 = vmatpush1.bf16.msra.mxu0 %v240
    %263 = vmatprep.subr.bf16.mxu0 0
    %264 = vmatpush1.bf16.msra.mxu0 %v241
    %265 = vmatprep.subr.bf16.mxu0 0
    %266 = vmatpush1.bf16.msra.mxu0 %v242
    %267 = vmatprep.subr.bf16.mxu0 0
    %268 = vmatpush1.bf16.msra.mxu0 0
    %269 = vmatprep.subr.bf16.mxu0 0
    %270 = vmatpush1.bf16.msra.mxu0 0
    %271 = vmatprep.subr.bf16.mxu0 0
    %272 = vmatpush1.bf16.msra.mxu0 0
    %273 = vmatprep.subr.bf16.mxu0 0
    %274 = vmatpush1.bf16.msra.mxu0 0
    %275 = vmatprep.subr.bf16.mxu0 0
    %276 = vmatpush1.bf16.msra.mxu0 0
    %277 = vmatprep.subr.bf16.mxu0 0
    %278 = vmatpush1.bf16.msra.mxu0 0
    %279 = vmatprep.subr.bf16.mxu0 0
    %280 = vmatpush1.bf16.msra.mxu0 0
    %281 = vmatprep.subr.bf16.mxu0 0
    %282 = vmatpush1.bf16.msra.mxu0 0
    %283 = vmatprep.mubr.bf16.mxu0 0
    %284 = vmatmul.mubr.bf16.gmra.mrb[0].mxu0 %v196
    %v285 = vpop.f32.mrb[0].mxu0
    %v286 = vadd.f32 %v201, %v285
    %v287 = vpop.f32.mrb[0].mxu0
    %v288 = vpop.f32.mrb[0].mxu0
    %v289 = vadd.f32 %v201, %v288
    %v290 = vpop.f32.mrb[0].mxu0
    %291 = vdwg.mxu0
    %292 = vrot.lane.b32.xlu0 %v286, 64
    %v293 = vpop.permute.xlu0 %292
    %294 = vrot.lane.b32.xlu0 %v289, 64
    %v295 = vpop.permute.xlu0 %294
    %v296 = vmul.f32 %v286, %v159
    %v297 = vmul.f32 %v289, %v159
    %v298 = vmul.f32 %v293, %v159
    %v299 = vmul.f32 %v295, %v159
    %v300 = vpack.c.bf16 %v289, %v286
    %v301 = vpack.c.bf16 %v295, %v293
    %v303 = vcombine.high %v301, %v301
    %v305 = vunpack.c.l.s4 1966171168
    %v306 = vunpack.c.0.s8 %v305
    %v307 = vlaneseq
    %v308 = vshrl.u32 %v307, 7
    %v309 = vsub.s32 %v306, %v308
    %v310 = vrot.slane %v301, %v309
    %v312 = vunpack.c.l.s4 1966171168
    %v313 = vunpack.c.0.s8 %v312
    %v314 = vlaneseq
    %v315 = vshrl.u32 %v314, 7
    %v316 = vsub.s32 %v313, %v315
    %v317 = vrot.slane %v303, %v316
    %v318 = vcombine.high %v310, %v310
    %v319 = vcombine.high %v317, %v317
    %v321 = vunpack.c.l.s4 1966171168
    %v322 = vunpack.c.0.s8 %v321
    %v323 = vlaneseq
    %v324 = vshrl.u32 %v323, 7
    %v325 = vsub.s32 %v322, %v324
    %v326 = vrot.slane %v310, %v325
    %v328 = vunpack.c.l.s4 1966171168
    %v329 = vunpack.c.0.s8 %v328
    %v330 = vlaneseq
    %v331 = vshrl.u32 %v330, 7
    %v332 = vsub.s32 %v329, %v331
    %v333 = vrot.slane %v317, %v332
    %v335 = vunpack.c.l.s4 1966171168
    %v336 = vunpack.c.0.s8 %v335
    %v337 = vlaneseq
    %v338 = vshrl.u32 %v337, 7
    %v339 = vsub.s32 %v336, %v338
    %v340 = vrot.slane %v318, %v339
    %v342 = vunpack.c.l.s4 1966171168
    %v343 = vunpack.c.0.s8 %v342
    %v344 = vlaneseq
    %v345 = vshrl.u32 %v344, 7
    %v346 = vsub.s32 %v343, %v345
    %v347 = vrot.slane %v319, %v346
    %v348 = vcombine.high %v326, %v326
    %v349 = vcombine.high %v333, %v333
    %v350 = vcombine.high %v340, %v340
    %v351 = vcombine.high %v347, %v347
    %v352 = vunpack.i.l.s16 %v326
    %v353 = vunpack.i.h.s16 %v326
    %v354 = vunpack.i.l.s16 %v340
    %v355 = vunpack.i.h.s16 %v340
    %v356 = vunpack.i.l.s16 %v348
    %v357 = vunpack.i.h.s16 %v348
    %v358 = vunpack.i.l.s16 %v350
    %v359 = vunpack.i.h.s16 %v350
    %v360 = vunpack.i.l.s16 %v333
    %v361 = vunpack.i.h.s16 %v333
    %v362 = vunpack.i.l.s16 %v347
    %v363 = vunpack.i.h.s16 %v347
    %v364 = vunpack.i.l.s16 %v349
    %v365 = vunpack.i.h.s16 %v349
    %v366 = vunpack.i.l.s16 %v351
    %v367 = vunpack.i.h.s16 %v351
    %v368 = vpack.i.b16 %v352, %v352
    %v369 = vpack.i.b16 %v353, %v353
    %v370 = vpack.i.b16 %v354, %v354
    %v371 = vpack.i.b16 %v355, %v355
    %v372 = vpack.i.b16 %v356, %v356
    %v373 = vpack.i.b16 %v357, %v357
    %v374 = vpack.i.b16 %v358, %v358
    %v375 = vpack.i.b16 %v359, %v359
    %v376 = vpack.i.b16 %v360, %v360
    %v377 = vpack.i.b16 %v361, %v361
    %v378 = vpack.i.b16 %v362, %v362
    %v379 = vpack.i.b16 %v363, %v363
    %v380 = vpack.i.b16 %v364, %v364
    %v381 = vpack.i.b16 %v365, %v365
    %v382 = vpack.i.b16 %v366, %v366
    %v383 = vpack.i.b16 %v367, %v367
    %v384 = vlaneseq
    %v385 = vshrl.u32 %v384, 7
    %v386 = vsub.s32 0, %v385
    %v387 = vrot.slane %v368, %v386
    %v388 = vlaneseq
    %v389 = vshrl.u32 %v388, 7
    %v390 = vsub.s32 0, %v389
    %v391 = vrot.slane %v369, %v390
    %v392 = vlaneseq
    %v393 = vshrl.u32 %v392, 7
    %v394 = vsub.s32 0, %v393
    %v395 = vrot.slane %v370, %v394
    %v396 = vlaneseq
    %v397 = vshrl.u32 %v396, 7
    %v398 = vsub.s32 0, %v397
    %v399 = vrot.slane %v371, %v398
    %v400 = vlaneseq
    %v401 = vshrl.u32 %v400, 7
    %v402 = vsub.s32 0, %v401
    %v403 = vrot.slane %v372, %v402
    %v404 = vlaneseq
    %v405 = vshrl.u32 %v404, 7
    %v406 = vsub.s32 0, %v405
    %v407 = vrot.slane %v373, %v406
    %v408 = vlaneseq
    %v409 = vshrl.u32 %v408, 7
    %v410 = vsub.s32 0, %v409
    %v411 = vrot.slane %v374, %v410
    %v412 = vlaneseq
    %v413 = vshrl.u32 %v412, 7
    %v414 = vsub.s32 0, %v413
    %v415 = vrot.slane %v375, %v414
    %v416 = vlaneseq
    %v417 = vshrl.u32 %v416, 7
    %v418 = vsub.s32 0, %v417
    %v419 = vrot.slane %v376, %v418
    %v420 = vlaneseq
    %v421 = vshrl.u32 %v420, 7
    %v422 = vsub.s32 0, %v421
    %v423 = vrot.slane %v377, %v422
    %v424 = vlaneseq
    %v425 = vshrl.u32 %v424, 7
    %v426 = vsub.s32 0, %v425
    %v427 = vrot.slane %v378, %v426
    %v428 = vlaneseq
    %v429 = vshrl.u32 %v428, 7
    %v430 = vsub.s32 0, %v429
    %v431 = vrot.slane %v379, %v430
    %v432 = vlaneseq
    %v433 = vshrl.u32 %v432, 7
    %v434 = vsub.s32 0, %v433
    %v435 = vrot.slane %v380, %v434
    %v436 = vlaneseq
    %v437 = vshrl.u32 %v436, 7
    %v438 = vsub.s32 0, %v437
    %v439 = vrot.slane %v381, %v438
    %v440 = vlaneseq
    %v441 = vshrl.u32 %v440, 7
    %v442 = vsub.s32 0, %v441
    %v443 = vrot.slane %v382, %v442
    %v444 = vlaneseq
    %v445 = vshrl.u32 %v444, 7
    %v446 = vsub.s32 0, %v445
    %v447 = vrot.slane %v383, %v446
    %v449 = vpack.i.b16 %v387, %v387
    %v451 = vlaneseq
    %v452 = vshrl.u32 %v451, 7
    %v453 = vsub.s32 0, %v452
    %v454 = vrot.slane %v449, %v453
    %v456 = vpack.i.b16 %v391, %v391
    %v458 = vlaneseq
    %v459 = vshrl.u32 %v458, 7
    %v460 = vsub.s32 0, %v459
    %v461 = vrot.slane %v456, %v460
    %v463 = vpack.i.b16 %v395, %v395
    %v465 = vlaneseq
    %v466 = vshrl.u32 %v465, 7
    %v467 = vsub.s32 0, %v466
    %v468 = vrot.slane %v463, %v467
    %v470 = vpack.i.b16 %v399, %v399
    %v472 = vlaneseq
    %v473 = vshrl.u32 %v472, 7
    %v474 = vsub.s32 0, %v473
    %v475 = vrot.slane %v470, %v474
    %v477 = vpack.i.b16 %v403, %v403
    %v479 = vlaneseq
    %v480 = vshrl.u32 %v479, 7
    %v481 = vsub.s32 0, %v480
    %v482 = vrot.slane %v477, %v481
    %v484 = vpack.i.b16 %v407, %v407
    %v486 = vlaneseq
    %v487 = vshrl.u32 %v486, 7
    %v488 = vsub.s32 0, %v487
    %v489 = vrot.slane %v484, %v488
    %v491 = vpack.i.b16 %v411, %v411
    %v493 = vlaneseq
    %v494 = vshrl.u32 %v493, 7
    %v495 = vsub.s32 0, %v494
    %v496 = vrot.slane %v491, %v495
    %v498 = vpack.i.b16 %v415, %v415
    %v500 = vlaneseq
    %v501 = vshrl.u32 %v500, 7
    %v502 = vsub.s32 0, %v501
    %v503 = vrot.slane %v498, %v502
    %v505 = vpack.i.b16 %v419, %v419
    %v507 = vlaneseq
    %v508 = vshrl.u32 %v507, 7
    %v509 = vsub.s32 0, %v508
    %v510 = vrot.slane %v505, %v509
    %v512 = vpack.i.b16 %v423, %v423
    %v514 = vlaneseq
    %v515 = vshrl.u32 %v514, 7
    %v516 = vsub.s32 0, %v515
    %v517 = vrot.slane %v512, %v516
    %v519 = vpack.i.b16 %v427, %v427
    %v521 = vlaneseq
    %v522 = vshrl.u32 %v521, 7
    %v523 = vsub.s32 0, %v522
    %v524 = vrot.slane %v519, %v523
    %v526 = vpack.i.b16 %v431, %v431
    %v528 = vlaneseq
    %v529 = vshrl.u32 %v528, 7
    %v530 = vsub.s32 0, %v529
    %v531 = vrot.slane %v526, %v530
    %v533 = vpack.i.b16 %v435, %v435
    %v535 = vlaneseq
    %v536 = vshrl.u32 %v535, 7
    %v537 = vsub.s32 0, %v536
    %v538 = vrot.slane %v533, %v537
    %v540 = vpack.i.b16 %v439, %v439
    %v542 = vlaneseq
    %v543 = vshrl.u32 %v542, 7
    %v544 = vsub.s32 0, %v543
    %v545 = vrot.slane %v540, %v544
    %v547 = vpack.i.b16 %v443, %v443
    %v549 = vlaneseq
    %v550 = vshrl.u32 %v549, 7
    %v551 = vsub.s32 0, %v550
    %v552 = vrot.slane %v547, %v551
    %v554 = vpack.i.b16 %v447, %v447
    %v556 = vlaneseq
    %v557 = vshrl.u32 %v556, 7
    %v558 = vsub.s32 0, %v557
    %v559 = vrot.slane %v554, %v558
    %v560 = vadd.bf16 %v454, %v300
    %v561 = vadd.bf16 %v461, %v300
    %v562 = vadd.bf16 %v468, %v300
    %v563 = vadd.bf16 %v475, %v300
    %v564 = vadd.bf16 %v482, %v300
    %v565 = vadd.bf16 %v489, %v300
    %v566 = vadd.bf16 %v496, %v300
    %v567 = vadd.bf16 %v503, %v300
    %v568 = vadd.bf16 %v510, %v300
    %v569 = vadd.bf16 %v517, %v300
    %v570 = vadd.bf16 %v524, %v300
    %v571 = vadd.bf16 %v531, %v300
    %v572 = vadd.bf16 %v538, %v300
    %v573 = vadd.bf16 %v545, %v300
    %v574 = vadd.bf16 %v552, %v300
    %v575 = vadd.bf16 %v559, %v300
    %vm576 = vcmp.gt.bf16.partialorder %v560, 0
    %vm577 = vcmp.gt.bf16.partialorder %v561, 0
    %vm578 = vcmp.gt.bf16.partialorder %v562, 0
    %vm579 = vcmp.gt.bf16.partialorder %v563, 0
    %vm580 = vcmp.gt.bf16.partialorder %v564, 0
    %vm581 = vcmp.gt.bf16.partialorder %v565, 0
    %vm582 = vcmp.gt.bf16.partialorder %v566, 0
    %vm583 = vcmp.gt.bf16.partialorder %v567, 0
    %vm584 = vcmp.gt.bf16.partialorder %v568, 0
    %vm585 = vcmp.gt.bf16.partialorder %v569, 0
    %vm586 = vcmp.gt.bf16.partialorder %v570, 0
    %vm587 = vcmp.gt.bf16.partialorder %v571, 0
    %vm588 = vcmp.gt.bf16.partialorder %v572, 0
    %vm589 = vcmp.gt.bf16.partialorder %v573, 0
    %vm590 = vcmp.gt.bf16.partialorder %v574, 0
    %vm591 = vcmp.gt.bf16.partialorder %v575, 0
    %v592 = vmul.bf16 %v560, 1045249613
    %v593 = vmul.bf16 %v561, 1045249613
    %v594 = vmul.bf16 %v562, 1045249613
    %v595 = vmul.bf16 %v563, 1045249613
    %v596 = vmul.bf16 %v564, 1045249613
    %v597 = vmul.bf16 %v565, 1045249613
    %v598 = vmul.bf16 %v566, 1045249613
    %v599 = vmul.bf16 %v567, 1045249613
    %v600 = vmul.bf16 %v568, 1045249613
    %v601 = vmul.bf16 %v569, 1045249613
    %v602 = vmul.bf16 %v570, 1045249613
    %v603 = vmul.bf16 %v571, 1045249613
    %v604 = vmul.bf16 %v572, 1045249613
    %v605 = vmul.bf16 %v573, 1045249613
    %v606 = vmul.bf16 %v574, 1045249613
    %v607 = vmul.bf16 %v575, 1045249613
    %v608 = vsel %vm576, %v560, %v592
    %v609 = vsel %vm577, %v561, %v593
    %v610 = vsel %vm578, %v562, %v594
    %v611 = vsel %vm579, %v563, %v595
    %v612 = vsel %vm580, %v564, %v596
    %v613 = vsel %vm581, %v565, %v597
    %v614 = vsel %vm582, %v566, %v598
    %v615 = vsel %vm583, %v567, %v599
    %v616 = vsel %vm584, %v568, %v600
    %v617 = vsel %vm585, %v569, %v601
    %v618 = vsel %vm586, %v570, %v602
    %v619 = vsel %vm587, %v571, %v603
    %v620 = vsel %vm588, %v572, %v604
    %v621 = vsel %vm589, %v573, %v605
    %v622 = vsel %vm590, %v574, %v606
    %v623 = vsel %vm591, %v575, %v607
    %v640 = vunpack.c.l.b16 %v177
    %v641 = vunpack.c.l.b16 %v178
    %v642 = vunpack.c.l.b16 %v179
    %v643 = vunpack.c.l.b16 %v180
    %v644 = vunpack.c.l.b16 %v181
    %v645 = vunpack.c.l.b16 %v182
    %v646 = vunpack.c.l.b16 %v183
    %v647 = vunpack.c.l.b16 %v184
    %v648 = vunpack.c.l.b16 %v185
    %v649 = vunpack.c.l.b16 %v186
    %v650 = vunpack.c.l.b16 %v187
    %v651 = vunpack.c.l.b16 %v188
    %v652 = vunpack.c.l.b16 %v189
    %v653 = vunpack.c.l.b16 %v190
    %v654 = vunpack.c.l.b16 %v191
    %v655 = vunpack.c.l.b16 %v192
    %v656 = vpack.c.b16 %v641, %v640
    %v657 = vpack.c.b16 %v643, %v642
    %v658 = vpack.c.b16 %v645, %v644
    %v659 = vpack.c.b16 %v647, %v646
    %v660 = vpack.c.b16 %v649, %v648
    %v661 = vpack.c.b16 %v651, %v650
    %v662 = vpack.c.b16 %v653, %v652
    %v663 = vpack.c.b16 %v655, %v654
    %672 = vmatprep.subr.bf16.mxu0 0
    %673 = vmatpush1.bf16.msra.mxu0 %v656
    %674 = vmatprep.subr.bf16.mxu0 0
    %675 = vmatpush1.bf16.msra.mxu0 %v657
    %676 = vmatprep.subr.bf16.mxu0 0
    %677 = vmatpush1.bf16.msra.mxu0 %v658
    %678 = vmatprep.subr.bf16.mxu0 0
    %679 = vmatpush1.bf16.msra.mxu0 %v659
    %680 = vmatprep.subr.bf16.mxu0 0
    %681 = vmatpush1.bf16.msra.mxu0 %v660
    %682 = vmatprep.subr.bf16.mxu0 0
    %683 = vmatpush1.bf16.msra.mxu0 %v661
    %684 = vmatprep.subr.bf16.mxu0 0
    %685 = vmatpush1.bf16.msra.mxu0 %v662
    %686 = vmatprep.subr.bf16.mxu0 0
    %687 = vmatpush1.bf16.msra.mxu0 %v663
    %688 = vmatprep.subr.bf16.mxu0 0
    %689 = vmatpush1.bf16.msra.mxu0 0
    %690 = vmatprep.subr.bf16.mxu0 0
    %691 = vmatpush1.bf16.msra.mxu0 0
    %692 = vmatprep.subr.bf16.mxu0 0
    %693 = vmatpush1.bf16.msra.mxu0 0
    %694 = vmatprep.subr.bf16.mxu0 0
    %695 = vmatpush1.bf16.msra.mxu0 0
    %696 = vmatprep.subr.bf16.mxu0 0
    %697 = vmatpush1.bf16.msra.mxu0 0
    %698 = vmatprep.subr.bf16.mxu0 0
    %699 = vmatpush1.bf16.msra.mxu0 0
    %700 = vmatprep.subr.bf16.mxu0 0
    %701 = vmatpush1.bf16.msra.mxu0 0
    %702 = vmatprep.subr.bf16.mxu0 0
    %703 = vmatpush1.bf16.msra.mxu0 0
    %704 = vmatprep.mubr.bf16.mxu0 0
    %705 = vmatmul.mubr.bf16.gmra.mrb[0].mxu0 %v608
    %v706 = vpop.f32.mrb[0].mxu0
    %v707 = vadd.f32 0.0, %v706
    %v708 = vpop.f32.mrb[0].mxu0
    %v709 = vpop.f32.mrb[0].mxu0
    %v710 = vadd.f32 0.0, %v709
    %v711 = vpop.f32.mrb[0].mxu0
    %712 = vmatprep.mubr.bf16.mxu0 0
    %713 = vmatmul.mubr.bf16.gmra.mrb[0].mxu0 %v609
    %v714 = vpop.f32.mrb[0].mxu0
    %v715 = vadd.f32 0.0, %v714
    %v716 = vpop.f32.mrb[0].mxu0
    %v717 = vpop.f32.mrb[0].mxu0
    %v718 = vadd.f32 0.0, %v717
    %v719 = vpop.f32.mrb[0].mxu0
    %720 = vmatprep.mubr.bf16.mxu0 0
    %721 = vmatmul.mubr.bf16.gmra.mrb[0].mxu0 %v610
    %v722 = vpop.f32.mrb[0].mxu0
    %v723 = vadd.f32 0.0, %v722
    %v724 = vpop.f32.mrb[0].mxu0
    %v725 = vpop.f32.mrb[0].mxu0
    %v726 = vadd.f32 0.0, %v725
    %v727 = vpop.f32.mrb[0].mxu0
    %728 = vmatprep.mubr.bf16.mxu0 0
    %729 = vmatmul.mubr.bf16.gmra.mrb[0].mxu0 %v611
    %v730 = vpop.f32.mrb[0].mxu0
    %v731 = vadd.f32 0.0, %v730
    %v732 = vpop.f32.mrb[0].mxu0
    %v733 = vpop.f32.mrb[0].mxu0
    %v734 = vadd.f32 0.0, %v733
    %v735 = vpop.f32.mrb[0].mxu0
    %736 = vmatprep.mubr.bf16.mxu0 0
    %737 = vmatmul.mubr.bf16.gmra.mrb[0].mxu0 %v612
    %v738 = vpop.f32.mrb[0].mxu0
    %v739 = vadd.f32 0.0, %v738
    %v740 = vpop.f32.mrb[0].mxu0
    %v741 = vpop.f32.mrb[0].mxu0
    %v742 = vadd.f32 0.0, %v741
    %v743 = vpop.f32.mrb[0].mxu0
    %744 = vmatprep.mubr.bf16.mxu0 0
    %745 = vmatmul.mubr.bf16.gmra.mrb[0].mxu0 %v613
    %v746 = vpop.f32.mrb[0].mxu0
    %v747 = vadd.f32 0.0, %v746
    %v748 = vpop.f32.mrb[0].mxu0
    %v749 = vpop.f32.mrb[0].mxu0
    %v750 = vadd.f32 0.0, %v749
    %v751 = vpop.f32.mrb[0].mxu0
    %752 = vmatprep.mubr.bf16.mxu0 0
    %753 = vmatmul.mubr.bf16.gmra.mrb[0].mxu0 %v614
    %v754 = vpop.f32.mrb[0].mxu0
    %v755 = vadd.f32 0.0, %v754
    %v756 = vpop.f32.mrb[0].mxu0
    %v757 = vpop.f32.mrb[0].mxu0
    %v758 = vadd.f32 0.0, %v757
    %v759 = vpop.f32.mrb[0].mxu0
    %760 = vmatprep.mubr.bf16.mxu0 0
    %761 = vmatmul.mubr.bf16.gmra.mrb[0].mxu0 %v615
    %v762 = vpop.f32.mrb[0].mxu0
    %v763 = vadd.f32 0.0, %v762
    %v764 = vpop.f32.mrb[0].mxu0
    %v765 = vpop.f32.mrb[0].mxu0
    %v766 = vadd.f32 0.0, %v765
    %v767 = vpop.f32.mrb[0].mxu0
    %768 = vmatprep.mubr.bf16.mxu0 0
    %769 = vmatmul.mubr.bf16.gmra.mrb[0].mxu0 %v616
    %v770 = vpop.f32.mrb[0].mxu0
    %v771 = vadd.f32 0.0, %v770
    %v772 = vpop.f32.mrb[0].mxu0
    %v773 = vpop.f32.mrb[0].mxu0
    %v774 = vadd.f32 0.0, %v773
    %v775 = vpop.f32.mrb[0].mxu0
    %776 = vmatprep.mubr.bf16.mxu0 0
    %777 = vmatmul.mubr.bf16.gmra.mrb[0].mxu0 %v617
    %v778 = vpop.f32.mrb[0].mxu0
    %v779 = vadd.f32 0.0, %v778
    %v780 = vpop.f32.mrb[0].mxu0
    %v781 = vpop.f32.mrb[0].mxu0
    %v782 = vadd.f32 0.0, %v781
    %v783 = vpop.f32.mrb[0].mxu0
    %784 = vmatprep.mubr.bf16.mxu0 0
    %785 = vmatmul.mubr.bf16.gmra.mrb[0].mxu0 %v618
    %v786 = vpop.f32.mrb[0].mxu0
    %v787 = vadd.f32 0.0, %v786
    %v788 = vpop.f32.mrb[0].mxu0
    %v789 = vpop.f32.mrb[0].mxu0
    %v790 = vadd.f32 0.0, %v789
    %v791 = vpop.f32.mrb[0].mxu0
    %792 = vmatprep.mubr.bf16.mxu0 0
    %793 = vmatmul.mubr.bf16.gmra.mrb[0].mxu0 %v619
    %v794 = vpop.f32.mrb[0].mxu0
    %v795 = vadd.f32 0.0, %v794
    %v796 = vpop.f32.mrb[0].mxu0
    %v797 = vpop.f32.mrb[0].mxu0
    %v798 = vadd.f32 0.0, %v797
    %v799 = vpop.f32.mrb[0].mxu0
    %800 = vmatprep.mubr.bf16.mxu0 0
    %801 = vmatmul.mubr.bf16.gmra.mrb[0].mxu0 %v620
    %v802 = vpop.f32.mrb[0].mxu0
    %v803 = vadd.f32 0.0, %v802
    %v804 = vpop.f32.mrb[0].mxu0
    %v805 = vpop.f32.mrb[0].mxu0
    %v806 = vadd.f32 0.0, %v805
    %v807 = vpop.f32.mrb[0].mxu0
    %808 = vmatprep.mubr.bf16.mxu0 0
    %809 = vmatmul.mubr.bf16.gmra.mrb[0].mxu0 %v621
    %v810 = vpop.f32.mrb[0].mxu0
    %v811 = vadd.f32 0.0, %v810
    %v812 = vpop.f32.mrb[0].mxu0
    %v813 = vpop.f32.mrb[0].mxu0
    %v814 = vadd.f32 0.0, %v813
    %v815 = vpop.f32.mrb[0].mxu0
    %816 = vmatprep.mubr.bf16.mxu0 0
    %817 = vmatmul.mubr.bf16.gmra.mrb[0].mxu0 %v622
    %v818 = vpop.f32.mrb[0].mxu0
    %v819 = vadd.f32 0.0, %v818
    %v820 = vpop.f32.mrb[0].mxu0
    %v821 = vpop.f32.mrb[0].mxu0
    %v822 = vadd.f32 0.0, %v821
    %v823 = vpop.f32.mrb[0].mxu0
    %824 = vmatprep.mubr.bf16.mxu0 0
    %825 = vmatmul.mubr.bf16.gmra.mrb[0].mxu0 %v623
    %v826 = vpop.f32.mrb[0].mxu0
    %v827 = vadd.f32 0.0, %v826
    %v828 = vpop.f32.mrb[0].mxu0
    %v829 = vpop.f32.mrb[0].mxu0
    %v830 = vadd.f32 0.0, %v829
    %v831 = vpop.f32.mrb[0].mxu0
    %832 = vdwg.mxu0
    %v833 = vlaneseq
    %v834 = vshrl.u32 %v833, 7
    %v835 = vsub.s32 0, %v834
    %v836 = vrot.slane %v153, %v835
    %838 = vbcast.lane.b32.xlu0 %v836, 256
    %v839 = vpop.permute.xlu0 %838
    %s841 = sor.u32 256, 8
    %842 = vbcast.lane.b32.xlu0 %v836, %s841
    %v843 = vpop.permute.xlu0 %842
    %v844 = vlaneseq
    %v845 = vshrl.u32 %v844, 7
    %v846 = vsub.s32 1, %v845
    %v847 = vrot.slane %v153, %v846
    %849 = vbcast.lane.b32.xlu0 %v847, 256
    %v850 = vpop.permute.xlu0 %849
    %s852 = sor.u32 256, 8
    %853 = vbcast.lane.b32.xlu0 %v847, %s852
    %v854 = vpop.permute.xlu0 %853
    %v855 = vlaneseq
    %v856 = vshrl.u32 %v855, 7
    %v857 = vsub.s32 2, %v856
    %v858 = vrot.slane %v153, %v857
    %860 = vbcast.lane.b32.xlu0 %v858, 256
    %v861 = vpop.permute.xlu0 %860
    %s863 = sor.u32 256, 8
    %864 = vbcast.lane.b32.xlu0 %v858, %s863
    %v865 = vpop.permute.xlu0 %864
    %v866 = vlaneseq
    %v867 = vshrl.u32 %v866, 7
    %v868 = vsub.s32 3, %v867
    %v869 = vrot.slane %v153, %v868
    %871 = vbcast.lane.b32.xlu0 %v869, 256
    %v872 = vpop.permute.xlu0 %871
    %s874 = sor.u32 256, 8
    %875 = vbcast.lane.b32.xlu0 %v869, %s874
    %v876 = vpop.permute.xlu0 %875
    %v877 = vlaneseq
    %v878 = vshrl.u32 %v877, 7
    %v879 = vsub.s32 4, %v878
    %v880 = vrot.slane %v153, %v879
    %882 = vbcast.lane.b32.xlu0 %v880, 256
    %v883 = vpop.permute.xlu0 %882
    %s885 = sor.u32 256, 8
    %886 = vbcast.lane.b32.xlu0 %v880, %s885
    %v887 = vpop.permute.xlu0 %886
    %v888 = vlaneseq
    %v889 = vshrl.u32 %v888, 7
    %v890 = vsub.s32 5, %v889
    %v891 = vrot.slane %v153, %v890
    %893 = vbcast.lane.b32.xlu0 %v891, 256
    %v894 = vpop.permute.xlu0 %893
    %s896 = sor.u32 256, 8
    %897 = vbcast.lane.b32.xlu0 %v891, %s896
    %v898 = vpop.permute.xlu0 %897
    %v899 = vlaneseq
    %v900 = vshrl.u32 %v899, 7
    %v901 = vsub.s32 6, %v900
    %v902 = vrot.slane %v153, %v901
    %904 = vbcast.lane.b32.xlu0 %v902, 256
    %v905 = vpop.permute.xlu0 %904
    %s907 = sor.u32 256, 8
    %908 = vbcast.lane.b32.xlu0 %v902, %s907
    %v909 = vpop.permute.xlu0 %908
    %v910 = vlaneseq
    %v911 = vshrl.u32 %v910, 7
    %v912 = vsub.s32 7, %v911
    %v913 = vrot.slane %v153, %v912
    %915 = vbcast.lane.b32.xlu0 %v913, 256
    %v916 = vpop.permute.xlu0 %915
    %s918 = sor.u32 256, 8
    %919 = vbcast.lane.b32.xlu0 %v913, %s918
    %v920 = vpop.permute.xlu0 %919
    %v921 = vlaneseq
    %v922 = vshrl.u32 %v921, 7
    %v923 = vsub.s32 0, %v922
    %v924 = vrot.slane %v154, %v923
    %926 = vbcast.lane.b32.xlu0 %v924, 256
    %v927 = vpop.permute.xlu0 %926
    %s929 = sor.u32 256, 8
    %930 = vbcast.lane.b32.xlu0 %v924, %s929
    %v931 = vpop.permute.xlu0 %930
    %v932 = vlaneseq
    %v933 = vshrl.u32 %v932, 7
    %v934 = vsub.s32 1, %v933
    %v935 = vrot.slane %v154, %v934
    %937 = vbcast.lane.b32.xlu0 %v935, 256
    %v938 = vpop.permute.xlu0 %937
    %s940 = sor.u32 256, 8
    %941 = vbcast.lane.b32.xlu0 %v935, %s940
    %v942 = vpop.permute.xlu0 %941
    %v943 = vlaneseq
    %v944 = vshrl.u32 %v943, 7
    %v945 = vsub.s32 2, %v944
    %v946 = vrot.slane %v154, %v945
    %948 = vbcast.lane.b32.xlu0 %v946, 256
    %v949 = vpop.permute.xlu0 %948
    %s951 = sor.u32 256, 8
    %952 = vbcast.lane.b32.xlu0 %v946, %s951
    %v953 = vpop.permute.xlu0 %952
    %v954 = vlaneseq
    %v955 = vshrl.u32 %v954, 7
    %v956 = vsub.s32 3, %v955
    %v957 = vrot.slane %v154, %v956
    %959 = vbcast.lane.b32.xlu0 %v957, 256
    %v960 = vpop.permute.xlu0 %959
    %s962 = sor.u32 256, 8
    %963 = vbcast.lane.b32.xlu0 %v957, %s962
    %v964 = vpop.permute.xlu0 %963
    %v965 = vlaneseq
    %v966 = vshrl.u32 %v965, 7
    %v967 = vsub.s32 4, %v966
    %v968 = vrot.slane %v154, %v967
    %970 = vbcast.lane.b32.xlu0 %v968, 256
    %v971 = vpop.permute.xlu0 %970
    %s973 = sor.u32 256, 8
    %974 = vbcast.lane.b32.xlu0 %v968, %s973
    %v975 = vpop.permute.xlu0 %974
    %v976 = vlaneseq
    %v977 = vshrl.u32 %v976, 7
    %v978 = vsub.s32 5, %v977
    %v979 = vrot.slane %v154, %v978
    %981 = vbcast.lane.b32.xlu0 %v979, 256
    %v982 = vpop.permute.xlu0 %981
    %s984 = sor.u32 256, 8
    %985 = vbcast.lane.b32.xlu0 %v979, %s984
    %v986 = vpop.permute.xlu0 %985
    %v987 = vlaneseq
    %v988 = vshrl.u32 %v987, 7
    %v989 = vsub.s32 6, %v988
    %v990 = vrot.slane %v154, %v989
    %992 = vbcast.lane.b32.xlu0 %v990, 256
    %v993 = vpop.permute.xlu0 %992
    %s995 = sor.u32 256, 8
    %996 = vbcast.lane.b32.xlu0 %v990, %s995
    %v997 = vpop.permute.xlu0 %996
    %v998 = vlaneseq
    %v999 = vshrl.u32 %v998, 7
    %v1000 = vsub.s32 7, %v999
    %v1001 = vrot.slane %v154, %v1000
    %1003 = vbcast.lane.b32.xlu0 %v1001, 256
    %v1004 = vpop.permute.xlu0 %1003
    %s1006 = sor.u32 256, 8
    %1007 = vbcast.lane.b32.xlu0 %v1001, %s1006
    %v1008 = vpop.permute.xlu0 %1007
    %v1009 = vadd.f32 %v707, %v839
    %v1010 = vadd.f32 %v710, %v843
    %v1011 = vadd.f32 %v715, %v850
    %v1012 = vadd.f32 %v718, %v854
    %v1013 = vadd.f32 %v723, %v861
    %v1014 = vadd.f32 %v726, %v865
    %v1015 = vadd.f32 %v731, %v872
    %v1016 = vadd.f32 %v734, %v876
    %v1017 = vadd.f32 %v739, %v883
    %v1018 = vadd.f32 %v742, %v887
    %v1019 = vadd.f32 %v747, %v894
    %v1020 = vadd.f32 %v750, %v898
    %v1021 = vadd.f32 %v755, %v905
    %v1022 = vadd.f32 %v758, %v909
    %v1023 = vadd.f32 %v763, %v916
    %v1024 = vadd.f32 %v766, %v920
    %v1025 = vadd.f32 %v771, %v927
    %v1026 = vadd.f32 %v774, %v931
    %v1027 = vadd.f32 %v779, %v938
    %v1028 = vadd.f32 %v782, %v942
    %v1029 = vadd.f32 %v787, %v949
    %v1030 = vadd.f32 %v790, %v953
    %v1031 = vadd.f32 %v795, %v960
    %v1032 = vadd.f32 %v798, %v964
    %v1033 = vadd.f32 %v803, %v971
    %v1034 = vadd.f32 %v806, %v975
    %v1035 = vadd.f32 %v811, %v982
    %v1036 = vadd.f32 %v814, %v986
    %v1037 = vadd.f32 %v819, %v993
    %v1038 = vadd.f32 %v822, %v997
    %v1039 = vadd.f32 %v827, %v1004
    %v1040 = vadd.f32 %v830, %v1008
    %v1041 = vmax.f32 %v1009, %v1010
    %v1042 = vrot.slane %v1041, 4
    %v1043 = vmax.f32 %v1041, %v1042
    %v1044 = vrot.slane %v1043, 2
    %v1045 = vmax.f32 %v1043, %v1044
    %v1046 = vrot.slane %v1045, 1
    %v1047 = vmax.f32 %v1045, %v1046
    %v1048 = vmax.f32 %v1011, %v1012
    %v1049 = vrot.slane %v1048, 4
    %v1050 = vmax.f32 %v1048, %v1049
    %v1051 = vrot.slane %v1050, 2
    %v1052 = vmax.f32 %v1050, %v1051
    %v1053 = vrot.slane %v1052, 1
    %v1054 = vmax.f32 %v1052, %v1053
    %v1055 = vmax.f32 %v1013, %v1014
    %v1056 = vrot.slane %v1055, 4
    %v1057 = vmax.f32 %v1055, %v1056
    %v1058 = vrot.slane %v1057, 2
    %v1059 = vmax.f32 %v1057, %v1058
    %v1060 = vrot.slane %v1059, 1
    %v1061 = vmax.f32 %v1059, %v1060
    %v1062 = vmax.f32 %v1015, %v1016
    %v1063 = vrot.slane %v1062, 4
    %v1064 = vmax.f32 %v1062, %v1063
    %v1065 = vrot.slane %v1064, 2
    %v1066 = vmax.f32 %v1064, %v1065
    %v1067 = vrot.slane %v1066, 1
    %v1068 = vmax.f32 %v1066, %v1067
    %v1069 = vmax.f32 %v1017, %v1018
    %v1070 = vrot.slane %v1069, 4
    %v1071 = vmax.f32 %v1069, %v1070
    %v1072 = vrot.slane %v1071, 2
    %v1073 = vmax.f32 %v1071, %v1072
    %v1074 = vrot.slane %v1073, 1
    %v1075 = vmax.f32 %v1073, %v1074
    %v1076 = vmax.f32 %v1019, %v1020
    %v1077 = vrot.slane %v1076, 4
    %v1078 = vmax.f32 %v1076, %v1077
    %v1079 = vrot.slane %v1078, 2
    %v1080 = vmax.f32 %v1078, %v1079
    %v1081 = vrot.slane %v1080, 1
    %v1082 = vmax.f32 %v1080, %v1081
    %v1083 = vmax.f32 %v1021, %v1022
    %v1084 = vrot.slane %v1083, 4
    %v1085 = vmax.f32 %v1083, %v1084
    %v1086 = vrot.slane %v1085, 2
    %v1087 = vmax.f32 %v1085, %v1086
    %v1088 = vrot.slane %v1087, 1
    %v1089 = vmax.f32 %v1087, %v1088
    %v1090 = vmax.f32 %v1023, %v1024
    %v1091 = vrot.slane %v1090, 4
    %v1092 = vmax.f32 %v1090, %v1091
    %v1093 = vrot.slane %v1092, 2
    %v1094 = vmax.f32 %v1092, %v1093
    %v1095 = vrot.slane %v1094, 1
    %v1096 = vmax.f32 %v1094, %v1095
    %v1097 = vmax.f32 %v1025, %v1026
    %v1098 = vrot.slane %v1097, 4
    %v1099 = vmax.f32 %v1097, %v1098
    %v1100 = vrot.slane %v1099, 2
    %v1101 = vmax.f32 %v1099, %v1100
    %v1102 = vrot.slane %v1101, 1
    %v1103 = vmax.f32 %v1101, %v1102
    %v1104 = vmax.f32 %v1027, %v1028
    %v1105 = vrot.slane %v1104, 4
    %v1106 = vmax.f32 %v1104, %v1105
    %v1107 = vrot.slane %v1106, 2
    %v1108 = vmax.f32 %v1106, %v1107
    %v1109 = vrot.slane %v1108, 1
    %v1110 = vmax.f32 %v1108, %v1109
    %v1111 = vmax.f32 %v1029, %v1030
    %v1112 = vrot.slane %v1111, 4
    %v1113 = vmax.f32 %v1111, %v1112
    %v1114 = vrot.slane %v1113, 2
    %v1115 = vmax.f32 %v1113, %v1114
    %v1116 = vrot.slane %v1115, 1
    %v1117 = vmax.f32 %v1115, %v1116
    %v1118 = vmax.f32 %v1031, %v1032
    %v1119 = vrot.slane %v1118, 4
    %v1120 = vmax.f32 %v1118, %v1119
    %v1121 = vrot.slane %v1120, 2
    %v1122 = vmax.f32 %v1120, %v1121
    %v1123 = vrot.slane %v1122, 1
    %v1124 = vmax.f32 %v1122, %v1123
    %v1125 = vmax.f32 %v1033, %v1034
    %v1126 = vrot.slane %v1125, 4
    %v1127 = vmax.f32 %v1125, %v1126
    %v1128 = vrot.slane %v1127, 2
    %v1129 = vmax.f32 %v1127, %v1128
    %v1130 = vrot.slane %v1129, 1
    %v1131 = vmax.f32 %v1129, %v1130
    %v1132 = vmax.f32 %v1035, %v1036
    %v1133 = vrot.slane %v1132, 4
    %v1134 = vmax.f32 %v1132, %v1133
    %v1135 = vrot.slane %v1134, 2
    %v1136 = vmax.f32 %v1134, %v1135
    %v1137 = vrot.slane %v1136, 1
    %v1138 = vmax.f32 %v1136, %v1137
    %v1139 = vmax.f32 %v1037, %v1038
    %v1140 = vrot.slane %v1139, 4
    %v1141 = vmax.f32 %v1139, %v1140
    %v1142 = vrot.slane %v1141, 2
    %v1143 = vmax.f32 %v1141, %v1142
    %v1144 = vrot.slane %v1143, 1
    %v1145 = vmax.f32 %v1143, %v1144
    %v1146 = vmax.f32 %v1039, %v1040
    %v1147 = vrot.slane %v1146, 4
    %v1148 = vmax.f32 %v1146, %v1147
    %v1149 = vrot.slane %v1148, 2
    %v1150 = vmax.f32 %v1148, %v1149
    %v1151 = vrot.slane %v1150, 1
    %v1152 = vmax.f32 %v1150, %v1151
    %v1153 = vsub.f32 %v1009, %v1047
    %v1154 = vsub.f32 %v1010, %v1047
    %v1155 = vsub.f32 %v1011, %v1054
    %v1156 = vsub.f32 %v1012, %v1054
    %v1157 = vsub.f32 %v1013, %v1061
    %v1158 = vsub.f32 %v1014, %v1061
    %v1159 = vsub.f32 %v1015, %v1068
    %v1160 = vsub.f32 %v1016, %v1068
    %v1161 = vsub.f32 %v1017, %v1075
    %v1162 = vsub.f32 %v1018, %v1075
    %v1163 = vsub.f32 %v1019, %v1082
    %v1164 = vsub.f32 %v1020, %v1082
    %v1165 = vsub.f32 %v1021, %v1089
    %v1166 = vsub.f32 %v1022, %v1089
    %v1167 = vsub.f32 %v1023, %v1096
    %v1168 = vsub.f32 %v1024, %v1096
    %v1169 = vsub.f32 %v1025, %v1103
    %v1170 = vsub.f32 %v1026, %v1103
    %v1171 = vsub.f32 %v1027, %v1110
    %v1172 = vsub.f32 %v1028, %v1110
    %v1173 = vsub.f32 %v1029, %v1117
    %v1174 = vsub.f32 %v1030, %v1117
    %v1175 = vsub.f32 %v1031, %v1124
    %v1176 = vsub.f32 %v1032, %v1124
    %v1177 = vsub.f32 %v1033, %v1131
    %v1178 = vsub.f32 %v1034, %v1131
    %v1179 = vsub.f32 %v1035, %v1138
    %v1180 = vsub.f32 %v1036, %v1138
    %v1181 = vsub.f32 %v1037, %v1145
    %v1182 = vsub.f32 %v1038, %v1145
    %v1183 = vsub.f32 %v1039, %v1152
    %v1184 = vsub.f32 %v1040, %v1152
    %v1185 = vmul.f32 %v1153, 1.442695
    %v1186 = vpow.pop %v1185
    %v1187 = vmul.f32 %v1154, 1.442695
    %v1188 = vpow.pop %v1187
    %v1189 = vmul.f32 %v1155, 1.442695
    %v1190 = vpow.pop %v1189
    %v1191 = vmul.f32 %v1156, 1.442695
    %v1192 = vpow.pop %v1191
    %v1193 = vmul.f32 %v1157, 1.442695
    %v1194 = vpow.pop %v1193
    %v1195 = vmul.f32 %v1158, 1.442695
    %v1196 = vpow.pop %v1195
    %v1197 = vmul.f32 %v1159, 1.442695
    %v1198 = vpow.pop %v1197
    %v1199 = vmul.f32 %v1160, 1.442695
    %v1200 = vpow.pop %v1199
    %v1201 = vmul.f32 %v1161, 1.442695
    %v1202 = vpow.pop %v1201
    %v1203 = vmul.f32 %v1162, 1.442695
    %v1204 = vpow.pop %v1203
    %v1205 = vmul.f32 %v1163, 1.442695
    %v1206 = vpow.pop %v1205
    %v1207 = vmul.f32 %v1164, 1.442695
    %v1208 = vpow.pop %v1207
    %v1209 = vmul.f32 %v1165, 1.442695
    %v1210 = vpow.pop %v1209
    %v1211 = vmul.f32 %v1166, 1.442695
    %v1212 = vpow.pop %v1211
    %v1213 = vmul.f32 %v1167, 1.442695
    %v1214 = vpow.pop %v1213
    %v1215 = vmul.f32 %v1168, 1.442695
    %v1216 = vpow.pop %v1215
    %v1217 = vmul.f32 %v1169, 1.442695
    %v1218 = vpow.pop %v1217
    %v1219 = vmul.f32 %v1170, 1.442695
    %v1220 = vpow.pop %v1219
    %v1221 = vmul.f32 %v1171, 1.442695
    %v1222 = vpow.pop %v1221
    %v1223 = vmul.f32 %v1172, 1.442695
    %v1224 = vpow.pop %v1223
    %v1225 = vmul.f32 %v1173, 1.442695
    %v1226 = vpow.pop %v1225
    %v1227 = vmul.f32 %v1174, 1.442695
    %v1228 = vpow.pop %v1227
    %v1229 = vmul.f32 %v1175, 1.442695
    %v1230 = vpow.pop %v1229
    %v1231 = vmul.f32 %v1176, 1.442695
    %v1232 = vpow.pop %v1231
    %v1233 = vmul.f32 %v1177, 1.442695
    %v1234 = vpow.pop %v1233
    %v1235 = vmul.f32 %v1178, 1.442695
    %v1236 = vpow.pop %v1235
    %v1237 = vmul.f32 %v1179, 1.442695
    %v1238 = vpow.pop %v1237
    %v1239 = vmul.f32 %v1180, 1.442695
    %v1240 = vpow.pop %v1239
    %v1241 = vmul.f32 %v1181, 1.442695
    %v1242 = vpow.pop %v1241
    %v1243 = vmul.f32 %v1182, 1.442695
    %v1244 = vpow.pop %v1243
    %v1245 = vmul.f32 %v1183, 1.442695
    %v1246 = vpow.pop %v1245
    %v1247 = vmul.f32 %v1184, 1.442695
    %v1248 = vpow.pop %v1247
    %v1249 = vadd.f32 %v1186, %v1188
    %v1250 = vrot.slane %v1249, 4
    %v1251 = vadd.f32 %v1249, %v1250
    %v1252 = vrot.slane %v1251, 2
    %v1253 = vadd.f32 %v1251, %v1252
    %v1254 = vrot.slane %v1253, 1
    %v1255 = vadd.f32 %v1253, %v1254
    %v1256 = vadd.f32 %v1190, %v1192
    %v1257 = vrot.slane %v1256, 4
    %v1258 = vadd.f32 %v1256, %v1257
    %v1259 = vrot.slane %v1258, 2
    %v1260 = vadd.f32 %v1258, %v1259
    %v1261 = vrot.slane %v1260, 1
    %v1262 = vadd.f32 %v1260, %v1261
    %v1263 = vadd.f32 %v1194, %v1196
    %v1264 = vrot.slane %v1263, 4
    %v1265 = vadd.f32 %v1263, %v1264
    %v1266 = vrot.slane %v1265, 2
    %v1267 = vadd.f32 %v1265, %v1266
    %v1268 = vrot.slane %v1267, 1
    %v1269 = vadd.f32 %v1267, %v1268
    %v1270 = vadd.f32 %v1198, %v1200
    %v1271 = vrot.slane %v1270, 4
    %v1272 = vadd.f32 %v1270, %v1271
    %v1273 = vrot.slane %v1272, 2
    %v1274 = vadd.f32 %v1272, %v1273
    %v1275 = vrot.slane %v1274, 1
    %v1276 = vadd.f32 %v1274, %v1275
    %v1277 = vadd.f32 %v1202, %v1204
    %v1278 = vrot.slane %v1277, 4
    %v1279 = vadd.f32 %v1277, %v1278
    %v1280 = vrot.slane %v1279, 2
    %v1281 = vadd.f32 %v1279, %v1280
    %v1282 = vrot.slane %v1281, 1
    %v1283 = vadd.f32 %v1281, %v1282
    %v1284 = vadd.f32 %v1206, %v1208
    %v1285 = vrot.slane %v1284, 4
    %v1286 = vadd.f32 %v1284, %v1285
    %v1287 = vrot.slane %v1286, 2
    %v1288 = vadd.f32 %v1286, %v1287
    %v1289 = vrot.slane %v1288, 1
    %v1290 = vadd.f32 %v1288, %v1289
    %v1291 = vadd.f32 %v1210, %v1212
    %v1292 = vrot.slane %v1291, 4
    %v1293 = vadd.f32 %v1291, %v1292
    %v1294 = vrot.slane %v1293, 2
    %v1295 = vadd.f32 %v1293, %v1294
    %v1296 = vrot.slane %v1295, 1
    %v1297 = vadd.f32 %v1295, %v1296
    %v1298 = vadd.f32 %v1214, %v1216
    %v1299 = vrot.slane %v1298, 4
    %v1300 = vadd.f32 %v1298, %v1299
    %v1301 = vrot.slane %v1300, 2
    %v1302 = vadd.f32 %v1300, %v1301
    %v1303 = vrot.slane %v1302, 1
    %v1304 = vadd.f32 %v1302, %v1303
    %v1305 = vadd.f32 %v1218, %v1220
    %v1306 = vrot.slane %v1305, 4
    %v1307 = vadd.f32 %v1305, %v1306
    %v1308 = vrot.slane %v1307, 2
    %v1309 = vadd.f32 %v1307, %v1308
    %v1310 = vrot.slane %v1309, 1
    %v1311 = vadd.f32 %v1309, %v1310
    %v1312 = vadd.f32 %v1222, %v1224
    %v1313 = vrot.slane %v1312, 4
    %v1314 = vadd.f32 %v1312, %v1313
    %v1315 = vrot.slane %v1314, 2
    %v1316 = vadd.f32 %v1314, %v1315
    %v1317 = vrot.slane %v1316, 1
    %v1318 = vadd.f32 %v1316, %v1317
    %v1319 = vadd.f32 %v1226, %v1228
    %v1320 = vrot.slane %v1319, 4
    %v1321 = vadd.f32 %v1319, %v1320
    %v1322 = vrot.slane %v1321, 2
    %v1323 = vadd.f32 %v1321, %v1322
    %v1324 = vrot.slane %v1323, 1
    %v1325 = vadd.f32 %v1323, %v1324
    %v1326 = vadd.f32 %v1230, %v1232
    %v1327 = vrot.slane %v1326, 4
    %v1328 = vadd.f32 %v1326, %v1327
    %v1329 = vrot.slane %v1328, 2
    %v1330 = vadd.f32 %v1328, %v1329
    %v1331 = vrot.slane %v1330, 1
    %v1332 = vadd.f32 %v1330, %v1331
    %v1333 = vadd.f32 %v1234, %v1236
    %v1334 = vrot.slane %v1333, 4
    %v1335 = vadd.f32 %v1333, %v1334
    %v1336 = vrot.slane %v1335, 2
    %v1337 = vadd.f32 %v1335, %v1336
    %v1338 = vrot.slane %v1337, 1
    %v1339 = vadd.f32 %v1337, %v1338
    %v1340 = vadd.f32 %v1238, %v1240
    %v1341 = vrot.slane %v1340, 4
    %v1342 = vadd.f32 %v1340, %v1341
    %v1343 = vrot.slane %v1342, 2
    %v1344 = vadd.f32 %v1342, %v1343
    %v1345 = vrot.slane %v1344, 1
    %v1346 = vadd.f32 %v1344, %v1345
    %v1347 = vadd.f32 %v1242, %v1244
    %v1348 = vrot.slane %v1347, 4
    %v1349 = vadd.f32 %v1347, %v1348
    %v1350 = vrot.slane %v1349, 2
    %v1351 = vadd.f32 %v1349, %v1350
    %v1352 = vrot.slane %v1351, 1
    %v1353 = vadd.f32 %v1351, %v1352
    %v1354 = vadd.f32 %v1246, %v1248
    %v1355 = vrot.slane %v1354, 4
    %v1356 = vadd.f32 %v1354, %v1355
    %v1357 = vrot.slane %v1356, 2
    %v1358 = vadd.f32 %v1356, %v1357
    %v1359 = vrot.slane %v1358, 1
    %v1360 = vadd.f32 %v1358, %v1359
    %v1361 = vrcp.pop %v1255
    %v1362 = vrcp.pop %v1262
    %v1363 = vrcp.pop %v1269
    %v1364 = vrcp.pop %v1276
    %v1365 = vrcp.pop %v1283
    %v1366 = vrcp.pop %v1290
    %v1367 = vrcp.pop %v1297
    %v1368 = vrcp.pop %v1304
    %v1369 = vrcp.pop %v1311
    %v1370 = vrcp.pop %v1318
    %v1371 = vrcp.pop %v1325
    %v1372 = vrcp.pop %v1332
    %v1373 = vrcp.pop %v1339
    %v1374 = vrcp.pop %v1346
    %v1375 = vrcp.pop %v1353
    %v1376 = vrcp.pop %v1360
    %v1377 = vmul.f32 %v1186, %v1361
    %v1378 = vmul.f32 %v1188, %v1361
    %v1379 = vmul.f32 %v1190, %v1362
    %v1380 = vmul.f32 %v1192, %v1362
    %v1381 = vmul.f32 %v1194, %v1363
    %v1382 = vmul.f32 %v1196, %v1363
    %v1383 = vmul.f32 %v1198, %v1364
    %v1384 = vmul.f32 %v1200, %v1364
    %v1385 = vmul.f32 %v1202, %v1365
    %v1386 = vmul.f32 %v1204, %v1365
    %v1387 = vmul.f32 %v1206, %v1366
    %v1388 = vmul.f32 %v1208, %v1366
    %v1389 = vmul.f32 %v1210, %v1367
    %v1390 = vmul.f32 %v1212, %v1367
    %v1391 = vmul.f32 %v1214, %v1368
    %v1392 = vmul.f32 %v1216, %v1368
    %v1393 = vmul.f32 %v1218, %v1369
    %v1394 = vmul.f32 %v1220, %v1369
    %v1395 = vmul.f32 %v1222, %v1370
    %v1396 = vmul.f32 %v1224, %v1370
    %v1397 = vmul.f32 %v1226, %v1371
    %v1398 = vmul.f32 %v1228, %v1371
    %v1399 = vmul.f32 %v1230, %v1372
    %v1400 = vmul.f32 %v1232, %v1372
    %v1401 = vmul.f32 %v1234, %v1373
    %v1402 = vmul.f32 %v1236, %v1373
    %v1403 = vmul.f32 %v1238, %v1374
    %v1404 = vmul.f32 %v1240, %v1374
    %v1405 = vmul.f32 %v1242, %v1375
    %v1406 = vmul.f32 %v1244, %v1375
    %v1407 = vmul.f32 %v1246, %v1376
    %v1408 = vmul.f32 %v1248, %v1376
    %v1409 = vmul.f32 %v1377, %v296
    %v1410 = vmul.f32 %v1378, %v297
    %v1411 = vmul.f32 %v1379, %v296
    %v1412 = vmul.f32 %v1380, %v297
    %v1413 = vmul.f32 %v1381, %v296
    %v1414 = vmul.f32 %v1382, %v297
    %v1415 = vmul.f32 %v1383, %v296
    %v1416 = vmul.f32 %v1384, %v297
    %v1417 = vmul.f32 %v1385, %v296
    %v1418 = vmul.f32 %v1386, %v297
    %v1419 = vmul.f32 %v1387, %v296
    %v1420 = vmul.f32 %v1388, %v297
    %v1421 = vmul.f32 %v1389, %v296
    %v1422 = vmul.f32 %v1390, %v297
    %v1423 = vmul.f32 %v1391, %v296
    %v1424 = vmul.f32 %v1392, %v297
    %v1425 = vmul.f32 %v1393, %v296
    %v1426 = vmul.f32 %v1394, %v297
    %v1427 = vmul.f32 %v1395, %v296
    %v1428 = vmul.f32 %v1396, %v297
    %v1429 = vmul.f32 %v1397, %v296
    %v1430 = vmul.f32 %v1398, %v297
    %v1431 = vmul.f32 %v1399, %v296
    %v1432 = vmul.f32 %v1400, %v297
    %v1433 = vmul.f32 %v1401, %v296
    %v1434 = vmul.f32 %v1402, %v297
    %v1435 = vmul.f32 %v1403, %v296
    %v1436 = vmul.f32 %v1404, %v297
    %v1437 = vmul.f32 %v1405, %v296
    %v1438 = vmul.f32 %v1406, %v297
    %v1439 = vmul.f32 %v1407, %v296
    %v1440 = vmul.f32 %v1408, %v297
    %v1441 = vadd.f32 %v1409, %v1410
    %v1442 = vrot.slane %v1441, 4
    %v1443 = vadd.f32 %v1441, %v1442
    %v1444 = vrot.slane %v1443, 2
    %v1445 = vadd.f32 %v1443, %v1444
    %v1446 = vrot.slane %v1445, 1
    %v1447 = vadd.f32 %v1445, %v1446
    %v1448 = vadd.f32 %v1411, %v1412
    %v1449 = vrot.slane %v1448, 4
    %v1450 = vadd.f32 %v1448, %v1449
    %v1451 = vrot.slane %v1450, 2
    %v1452 = vadd.f32 %v1450, %v1451
    %v1453 = vrot.slane %v1452, 1
    %v1454 = vadd.f32 %v1452, %v1453
    %v1455 = vadd.f32 %v1413, %v1414
    %v1456 = vrot.slane %v1455, 4
    %v1457 = vadd.f32 %v1455, %v1456
    %v1458 = vrot.slane %v1457, 2
    %v1459 = vadd.f32 %v1457, %v1458
    %v1460 = vrot.slane %v1459, 1
    %v1461 = vadd.f32 %v1459, %v1460
    %v1462 = vadd.f32 %v1415, %v1416
    %v1463 = vrot.slane %v1462, 4
    %v1464 = vadd.f32 %v1462, %v1463
    %v1465 = vrot.slane %v1464, 2
    %v1466 = vadd.f32 %v1464, %v1465
    %v1467 = vrot.slane %v1466, 1
    %v1468 = vadd.f32 %v1466, %v1467
    %v1469 = vadd.f32 %v1417, %v1418
    %v1470 = vrot.slane %v1469, 4
    %v1471 = vadd.f32 %v1469, %v1470
    %v1472 = vrot.slane %v1471, 2
    %v1473 = vadd.f32 %v1471, %v1472
    %v1474 = vrot.slane %v1473, 1
    %v1475 = vadd.f32 %v1473, %v1474
    %v1476 = vadd.f32 %v1419, %v1420
    %v1477 = vrot.slane %v1476, 4
    %v1478 = vadd.f32 %v1476, %v1477
    %v1479 = vrot.slane %v1478, 2
    %v1480 = vadd.f32 %v1478, %v1479
    %v1481 = vrot.slane %v1480, 1
    %v1482 = vadd.f32 %v1480, %v1481
    %v1483 = vadd.f32 %v1421, %v1422
    %v1484 = vrot.slane %v1483, 4
    %v1485 = vadd.f32 %v1483, %v1484
    %v1486 = vrot.slane %v1485, 2
    %v1487 = vadd.f32 %v1485, %v1486
    %v1488 = vrot.slane %v1487, 1
    %v1489 = vadd.f32 %v1487, %v1488
    %v1490 = vadd.f32 %v1423, %v1424
    %v1491 = vrot.slane %v1490, 4
    %v1492 = vadd.f32 %v1490, %v1491
    %v1493 = vrot.slane %v1492, 2
    %v1494 = vadd.f32 %v1492, %v1493
    %v1495 = vrot.slane %v1494, 1
    %v1496 = vadd.f32 %v1494, %v1495
    %v1497 = vadd.f32 %v1425, %v1426
    %v1498 = vrot.slane %v1497, 4
    %v1499 = vadd.f32 %v1497, %v1498
    %v1500 = vrot.slane %v1499, 2
    %v1501 = vadd.f32 %v1499, %v1500
    %v1502 = vrot.slane %v1501, 1
    %v1503 = vadd.f32 %v1501, %v1502
    %v1504 = vadd.f32 %v1427, %v1428
    %v1505 = vrot.slane %v1504, 4
    %v1506 = vadd.f32 %v1504, %v1505
    %v1507 = vrot.slane %v1506, 2
    %v1508 = vadd.f32 %v1506, %v1507
    %v1509 = vrot.slane %v1508, 1
    %v1510 = vadd.f32 %v1508, %v1509
    %v1511 = vadd.f32 %v1429, %v1430
    %v1512 = vrot.slane %v1511, 4
    %v1513 = vadd.f32 %v1511, %v1512
    %v1514 = vrot.slane %v1513, 2
    %v1515 = vadd.f32 %v1513, %v1514
    %v1516 = vrot.slane %v1515, 1
    %v1517 = vadd.f32 %v1515, %v1516
    %v1518 = vadd.f32 %v1431, %v1432
    %v1519 = vrot.slane %v1518, 4
    %v1520 = vadd.f32 %v1518, %v1519
    %v1521 = vrot.slane %v1520, 2
    %v1522 = vadd.f32 %v1520, %v1521
    %v1523 = vrot.slane %v1522, 1
    %v1524 = vadd.f32 %v1522, %v1523
    %v1525 = vadd.f32 %v1433, %v1434
    %v1526 = vrot.slane %v1525, 4
    %v1527 = vadd.f32 %v1525, %v1526
    %v1528 = vrot.slane %v1527, 2
    %v1529 = vadd.f32 %v1527, %v1528
    %v1530 = vrot.slane %v1529, 1
    %v1531 = vadd.f32 %v1529, %v1530
    %v1532 = vadd.f32 %v1435, %v1436
    %v1533 = vrot.slane %v1532, 4
    %v1534 = vadd.f32 %v1532, %v1533
    %v1535 = vrot.slane %v1534, 2
    %v1536 = vadd.f32 %v1534, %v1535
    %v1537 = vrot.slane %v1536, 1
    %v1538 = vadd.f32 %v1536, %v1537
    %v1539 = vadd.f32 %v1437, %v1438
    %v1540 = vrot.slane %v1539, 4
    %v1541 = vadd.f32 %v1539, %v1540
    %v1542 = vrot.slane %v1541, 2
    %v1543 = vadd.f32 %v1541, %v1542
    %v1544 = vrot.slane %v1543, 1
    %v1545 = vadd.f32 %v1543, %v1544
    %v1546 = vadd.f32 %v1439, %v1440
    %v1547 = vrot.slane %v1546, 4
    %v1548 = vadd.f32 %v1546, %v1547
    %v1549 = vrot.slane %v1548, 2
    %v1550 = vadd.f32 %v1548, %v1549
    %v1551 = vrot.slane %v1550, 1
    %v1552 = vadd.f32 %v1550, %v1551
    %v1554 = vlaneseq
    %v1555 = vshrl.u32 %v1554, 7
    %v1556 = vsub.s32 0, %v1555
    %v1557 = vrot.slane %v193, %v1556
    %v1559 = vadd.f32 %v1447, %v1557
    %v1560 = vadd.f32 %v1454, %v1557
    %v1561 = vadd.f32 %v1461, %v1557
    %v1562 = vadd.f32 %v1468, %v1557
    %v1563 = vadd.f32 %v1475, %v1557
    %v1564 = vadd.f32 %v1482, %v1557
    %v1565 = vadd.f32 %v1489, %v1557
    %v1566 = vadd.f32 %v1496, %v1557
    %v1567 = vadd.f32 %v1503, %v1557
    %v1568 = vadd.f32 %v1510, %v1557
    %v1569 = vadd.f32 %v1517, %v1557
    %v1570 = vadd.f32 %v1524, %v1557
    %v1571 = vadd.f32 %v1531, %v1557
    %v1572 = vadd.f32 %v1538, %v1557
    %v1573 = vadd.f32 %v1545, %v1557
    %v1574 = vadd.f32 %v1552, %v1557
    %v1577 = vrot.slane %v298, 1
    %v1578 = vrot.slane %v298, 2
    %v1579 = vrot.slane %v298, 3
    %v1580 = vrot.slane %v298, 4
    %v1581 = vrot.slane %v298, 5
    %v1582 = vrot.slane %v298, 6
    %v1583 = vrot.slane %v298, 7
    %v1584 = vrot.slane %v299, 1
    %v1585 = vrot.slane %v299, 2
    %v1586 = vrot.slane %v299, 3
    %v1587 = vrot.slane %v299, 4
    %v1588 = vrot.slane %v299, 5
    %v1589 = vrot.slane %v299, 6
    %v1590 = vrot.slane %v299, 7
    %v1607 = vadd.f32 %v1559, %v298
    %v1608 = vadd.f32 %v1560, %v1577
    %v1609 = vadd.f32 %v1561, %v1578
    %v1610 = vadd.f32 %v1562, %v1579
    %v1611 = vadd.f32 %v1563, %v1580
    %v1612 = vadd.f32 %v1564, %v1581
    %v1613 = vadd.f32 %v1565, %v1582
    %v1614 = vadd.f32 %v1566, %v1583
    %v1615 = vadd.f32 %v1567, %v299
    %v1616 = vadd.f32 %v1568, %v1584
    %v1617 = vadd.f32 %v1569, %v1585
    %v1618 = vadd.f32 %v1570, %v1586
    %v1619 = vadd.f32 %v1571, %v1587
    %v1620 = vadd.f32 %v1572, %v1588
    %v1621 = vadd.f32 %v1573, %v1589
    %v1622 = vadd.f32 %v1574, %v1590
    %v1623 = vmul.f32 %v1607, %v159
    %v1624 = vmul.f32 %v1608, %v159
    %v1625 = vmul.f32 %v1609, %v159
    %v1626 = vmul.f32 %v1610, %v159
    %v1627 = vmul.f32 %v1611, %v159
    %v1628 = vmul.f32 %v1612, %v159
    %v1629 = vmul.f32 %v1613, %v159
    %v1630 = vmul.f32 %v1614, %v159
    %v1631 = vmul.f32 %v1615, %v159
    %v1632 = vmul.f32 %v1616, %v159
    %v1633 = vmul.f32 %v1617, %v159
    %v1634 = vmul.f32 %v1618, %v159
    %v1635 = vmul.f32 %v1619, %v159
    %v1636 = vmul.f32 %v1620, %v159
    %v1637 = vmul.f32 %v1621, %v159
    %v1638 = vmul.f32 %v1622, %v159
    %v1655 = vrot.slane %v1624, 7
    %vm1656 = vcmask 1041409
    %v1657 = vsel %vm1656, %v1655, %v1623
    %v1658 = vrot.slane %v1625, 6
    %vm1659 = vcmask 1042434
    %v1660 = vsel %vm1659, %v1658, %v1657
    %v1661 = vrot.slane %v1626, 5
    %vm1662 = vcmask 1043459
    %v1663 = vsel %vm1662, %v1661, %v1660
    %v1664 = vrot.slane %v1627, 4
    %vm1665 = vcmask 1044484
    %v1666 = vsel %vm1665, %v1664, %v1663
    %v1667 = vrot.slane %v1628, 3
    %vm1668 = vcmask 1045509
    %v1669 = vsel %vm1668, %v1667, %v1666
    %v1670 = vrot.slane %v1629, 2
    %vm1671 = vcmask 1046534
    %v1672 = vsel %vm1671, %v1670, %v1669
    %v1673 = vrot.slane %v1630, 1
    %vm1674 = vcmask 1047559
    %v1675 = vsel %vm1674, %v1673, %v1672
    %v1676 = vrot.slane %v1632, 7
    %v1677 = vsel %vm1656, %v1676, %v1631
    %v1678 = vrot.slane %v1633, 6
    %v1679 = vsel %vm1659, %v1678, %v1677
    %v1680 = vrot.slane %v1634, 5
    %v1681 = vsel %vm1662, %v1680, %v1679
    %v1682 = vrot.slane %v1635, 4
    %v1683 = vsel %vm1665, %v1682, %v1681
    %v1684 = vrot.slane %v1636, 3
    %v1685 = vsel %vm1668, %v1684, %v1683
    %v1686 = vrot.slane %v1637, 2
    %v1687 = vsel %vm1671, %v1686, %v1685
    %v1688 = vrot.slane %v1638, 1
    %v1689 = vsel %vm1674, %v1688, %v1687
    %1692 = vadd.xlane.f32.xlu0 %v1675
    %v1693 = vpop.xlane.xlu0 %1692
    %1694 = vadd.xlane.f32.xlu0 %v1689
    %v1695 = vpop.xlane.xlu0 %1694
    %v1696 = vmul.f32 %v1693, 0.03125
    %v1697 = vmul.f32 %v1695, 0.03125
    %v1700 = vrot.slane %v1696, 1
    %v1701 = vrot.slane %v1696, 2
    %v1702 = vrot.slane %v1696, 3
    %v1703 = vrot.slane %v1696, 4
    %v1704 = vrot.slane %v1696, 5
    %v1705 = vrot.slane %v1696, 6
    %v1706 = vrot.slane %v1696, 7
    %v1707 = vrot.slane %v1697, 1
    %v1708 = vrot.slane %v1697, 2
    %v1709 = vrot.slane %v1697, 3
    %v1710 = vrot.slane %v1697, 4
    %v1711 = vrot.slane %v1697, 5
    %v1712 = vrot.slane %v1697, 6
    %v1713 = vrot.slane %v1697, 7
    %v1730 = vsub.f32 %v1623, %v1696
    %v1731 = vsub.f32 %v1624, %v1700
    %v1732 = vsub.f32 %v1625, %v1701
    %v1733 = vsub.f32 %v1626, %v1702
    %v1734 = vsub.f32 %v1627, %v1703
    %v1735 = vsub.f32 %v1628, %v1704
    %v1736 = vsub.f32 %v1629, %v1705
    %v1737 = vsub.f32 %v1630, %v1706
    %v1738 = vsub.f32 %v1631, %v1697
    %v1739 = vsub.f32 %v1632, %v1707
    %v1740 = vsub.f32 %v1633, %v1708
    %v1741 = vsub.f32 %v1634, %v1709
    %v1742 = vsub.f32 %v1635, %v1710
    %v1743 = vsub.f32 %v1636, %v1711
    %v1744 = vsub.f32 %v1637, %v1712
    %v1745 = vsub.f32 %v1638, %v1713
    %v1746 = vmul.f32 %v1730, %v159
    %v1747 = vmul.f32 %v1731, %v159
    %v1748 = vmul.f32 %v1732, %v159
    %v1749 = vmul.f32 %v1733, %v159
    %v1750 = vmul.f32 %v1734, %v159
    %v1751 = vmul.f32 %v1735, %v159
    %v1752 = vmul.f32 %v1736, %v159
    %v1753 = vmul.f32 %v1737, %v159
    %v1754 = vmul.f32 %v1738, %v159
    %v1755 = vmul.f32 %v1739, %v159
    %v1756 = vmul.f32 %v1740, %v159
    %v1757 = vmul.f32 %v1741, %v159
    %v1758 = vmul.f32 %v1742, %v159
    %v1759 = vmul.f32 %v1743, %v159
    %v1760 = vmul.f32 %v1744, %v159
    %v1761 = vmul.f32 %v1745, %v159
    %v1762 = vmul.f32 %v1746, %v1746
    %v1763 = vmul.f32 %v1747, %v1747
    %v1764 = vmul.f32 %v1748, %v1748
    %v1765 = vmul.f32 %v1749, %v1749
    %v1766 = vmul.f32 %v1750, %v1750
    %v1767 = vmul.f32 %v1751, %v1751
    %v1768 = vmul.f32 %v1752, %v1752
    %v1769 = vmul.f32 %v1753, %v1753
    %v1770 = vmul.f32 %v1754, %v1754
    %v1771 = vmul.f32 %v1755, %v1755
    %v1772 = vmul.f32 %v1756, %v1756
    %v1773 = vmul.f32 %v1757, %v1757
    %v1774 = vmul.f32 %v1758, %v1758
    %v1775 = vmul.f32 %v1759, %v1759
    %v1776 = vmul.f32 %v1760, %v1760
    %v1777 = vmul.f32 %v1761, %v1761
    %v1794 = vrot.slane %v1763, 7
    %v1795 = vsel %vm1656, %v1794, %v1762
    %v1796 = vrot.slane %v1764, 6
    %v1797 = vsel %vm1659, %v1796, %v1795
    %v1798 = vrot.slane %v1765, 5
    %v1799 = vsel %vm1662, %v1798, %v1797
    %v1800 = vrot.slane %v1766, 4
    %v1801 = vsel %vm1665, %v1800, %v1799
    %v1802 = vrot.slane %v1767, 3
    %v1803 = vsel %vm1668, %v1802, %v1801
    %v1804 = vrot.slane %v1768, 2
    %v1805 = vsel %vm1671, %v1804, %v1803
    %v1806 = vrot.slane %v1769, 1
    %v1807 = vsel %vm1674, %v1806, %v1805
    %v1808 = vrot.slane %v1771, 7
    %v1809 = vsel %vm1656, %v1808, %v1770
    %v1810 = vrot.slane %v1772, 6
    %v1811 = vsel %vm1659, %v1810, %v1809
    %v1812 = vrot.slane %v1773, 5
    %v1813 = vsel %vm1662, %v1812, %v1811
    %v1814 = vrot.slane %v1774, 4
    %v1815 = vsel %vm1665, %v1814, %v1813
    %v1816 = vrot.slane %v1775, 3
    %v1817 = vsel %vm1668, %v1816, %v1815
    %v1818 = vrot.slane %v1776, 2
    %v1819 = vsel %vm1671, %v1818, %v1817
    %v1820 = vrot.slane %v1777, 1
    %v1821 = vsel %vm1674, %v1820, %v1819
    %1824 = vadd.xlane.f32.xlu0 %v1807
    %v1825 = vpop.xlane.xlu0 %1824
    %1826 = vadd.xlane.f32.xlu0 %v1821
    %v1827 = vpop.xlane.xlu0 %1826
    %v1828 = vmul.f32 %v1825, 0.03125
    %v1829 = vmul.f32 %v1827, 0.03125
    %v1830 = vadd.f32 %v1828, 1e-05
    %v1831 = vadd.f32 %v1829, 1e-05
    %v1832 = vrsqrt.pop %v1830
    %v1833 = vrsqrt.pop %v1831
    %v1836 = vrot.slane %v1832, 1
    %v1837 = vrot.slane %v1832, 2
    %v1838 = vrot.slane %v1832, 3
    %v1839 = vrot.slane %v1832, 4
    %v1840 = vrot.slane %v1832, 5
    %v1841 = vrot.slane %v1832, 6
    %v1842 = vrot.slane %v1832, 7
    %v1843 = vrot.slane %v1833, 1
    %v1844 = vrot.slane %v1833, 2
    %v1845 = vrot.slane %v1833, 3
    %v1846 = vrot.slane %v1833, 4
    %v1847 = vrot.slane %v1833, 5
    %v1848 = vrot.slane %v1833, 6
    %v1849 = vrot.slane %v1833, 7
    %v1866 = vmul.f32 %v1746, %v1832
    %v1867 = vmul.f32 %v1747, %v1836
    %v1868 = vmul.f32 %v1748, %v1837
    %v1869 = vmul.f32 %v1749, %v1838
    %v1870 = vmul.f32 %v1750, %v1839
    %v1871 = vmul.f32 %v1751, %v1840
    %v1872 = vmul.f32 %v1752, %v1841
    %v1873 = vmul.f32 %v1753, %v1842
    %v1874 = vmul.f32 %v1754, %v1833
    %v1875 = vmul.f32 %v1755, %v1843
    %v1876 = vmul.f32 %v1756, %v1844
    %v1877 = vmul.f32 %v1757, %v1845
    %v1878 = vmul.f32 %v1758, %v1846
    %v1879 = vmul.f32 %v1759, %v1847
    %v1880 = vmul.f32 %v1760, %v1848
    %v1881 = vmul.f32 %v1761, %v1849
    %v1883 = vlaneseq
    %v1884 = vshrl.u32 %v1883, 7
    %v1885 = vsub.s32 0, %v1884
    %v1886 = vrot.slane %v194, %v1885
    %v1888 = vmul.f32 %v1866, %v1886
    %v1889 = vmul.f32 %v1867, %v1886
    %v1890 = vmul.f32 %v1868, %v1886
    %v1891 = vmul.f32 %v1869, %v1886
    %v1892 = vmul.f32 %v1870, %v1886
    %v1893 = vmul.f32 %v1871, %v1886
    %v1894 = vmul.f32 %v1872, %v1886
    %v1895 = vmul.f32 %v1873, %v1886
    %v1896 = vmul.f32 %v1874, %v1886
    %v1897 = vmul.f32 %v1875, %v1886
    %v1898 = vmul.f32 %v1876, %v1886
    %v1899 = vmul.f32 %v1877, %v1886
    %v1900 = vmul.f32 %v1878, %v1886
    %v1901 = vmul.f32 %v1879, %v1886
    %v1902 = vmul.f32 %v1880, %v1886
    %v1903 = vmul.f32 %v1881, %v1886
    %v1905 = vlaneseq
    %v1906 = vshrl.u32 %v1905, 7
    %v1907 = vsub.s32 0, %v1906
    %v1908 = vrot.slane %v195, %v1907
    %v1910 = vadd.f32 %v1888, %v1908
    %v1911 = vadd.f32 %v1889, %v1908
    %v1912 = vadd.f32 %v1890, %v1908
    %v1913 = vadd.f32 %v1891, %v1908
    %v1914 = vadd.f32 %v1892, %v1908
    %v1915 = vadd.f32 %v1893, %v1908
    %v1916 = vadd.f32 %v1894, %v1908
    %v1917 = vadd.f32 %v1895, %v1908
    %v1918 = vadd.f32 %v1896, %v1908
    %v1919 = vadd.f32 %v1897, %v1908
    %v1920 = vadd.f32 %v1898, %v1908
    %v1921 = vadd.f32 %v1899, %v1908
    %v1922 = vadd.f32 %v1900, %v1908
    %v1923 = vadd.f32 %v1901, %v1908
    %v1924 = vadd.f32 %v1902, %v1908
    %v1925 = vadd.f32 %v1903, %v1908
    %v1926 = vmax.f32 %v1910, 0.0
    %v1927 = vmax.f32 %v1911, 0.0
    %v1928 = vmax.f32 %v1912, 0.0
    %v1929 = vmax.f32 %v1913, 0.0
    %v1930 = vmax.f32 %v1914, 0.0
    %v1931 = vmax.f32 %v1915, 0.0
    %v1932 = vmax.f32 %v1916, 0.0
    %v1933 = vmax.f32 %v1917, 0.0
    %v1934 = vmax.f32 %v1918, 0.0
    %v1935 = vmax.f32 %v1919, 0.0
    %v1936 = vmax.f32 %v1920, 0.0
    %v1937 = vmax.f32 %v1921, 0.0
    %v1938 = vmax.f32 %v1922, 0.0
    %v1939 = vmax.f32 %v1923, 0.0
    %v1940 = vmax.f32 %v1924, 0.0
    %v1941 = vmax.f32 %v1925, 0.0
    %v1942 = vld [vmem:[#allocation10] sm:$0xf]
    %v1943 = vld [vmem:[#allocation10 + $0x4] sm:$0xf]
    %v1944 = vld [vmem:[#allocation10 + $0x8] sm:$0xf]
    %v1945 = vld [vmem:[#allocation10 + $0xc] sm:$0xf]
    %v1946 = vld [vmem:[#allocation10 + $0x10] sm:$0xf]
    %v1947 = vld [vmem:[#allocation10 + $0x14] sm:$0xf]
    %v1948 = vld [vmem:[#allocation10 + $0x18] sm:$0xf]
    %v1949 = vld [vmem:[#allocation10 + $0x1c] sm:$0xf]
    %v1950 = vld [vmem:[#allocation10 + $0x20] sm:$0xf]
    %v1951 = vld [vmem:[#allocation10 + $0x24] sm:$0xf]
    %v1952 = vld [vmem:[#allocation10 + $0x28] sm:$0xf]
    %v1953 = vld [vmem:[#allocation10 + $0x2c] sm:$0xf]
    %v1954 = vld [vmem:[#allocation10 + $0x30] sm:$0xf]
    %v1955 = vld [vmem:[#allocation10 + $0x34] sm:$0xf]
    %v1956 = vld [vmem:[#allocation10 + $0x38] sm:$0xf]
    %v1957 = vld [vmem:[#allocation10 + $0x3c] sm:$0xf]
    %v1958 = vld [vmem:[%s9] sm:$0x1]
    %v1959 = vld [vmem:[#allocation11] sm:$0xf]
    %v1960 = vld [vmem:[#allocation11 + $0x4] sm:$0xf]
    %v1961 = vld [vmem:[#allocation11 + $0x8] sm:$0xf]
    %v1962 = vld [vmem:[#allocation11 + $0xc] sm:$0xf]
    %v1963 = vld [vmem:[#allocation11 + $0x10] sm:$0xf]
    %v1964 = vld [vmem:[#allocation11 + $0x14] sm:$0xf]
    %v1965 = vld [vmem:[#allocation11 + $0x18] sm:$0xf]
    %v1966 = vld [vmem:[#allocation11 + $0x1c] sm:$0xf]
    %v1967 = vld [vmem:[#allocation11 + $0x20] sm:$0xf]
    %v1968 = vld [vmem:[#allocation11 + $0x24] sm:$0xf]
    %v1969 = vld [vmem:[#allocation11 + $0x28] sm:$0xf]
    %v1970 = vld [vmem:[#allocation11 + $0x2c] sm:$0xf]
    %v1971 = vld [vmem:[#allocation11 + $0x30] sm:$0xf]
    %v1972 = vld [vmem:[#allocation11 + $0x34] sm:$0xf]
    %v1973 = vld [vmem:[#allocation11 + $0x38] sm:$0xf]
    %v1974 = vld [vmem:[#allocation11 + $0x3c] sm:$0xf]
    %v1975 = vld [vmem:[%s11] sm:$0x1]
    %v1976 = vld [vmem:[%s12] sm:$0x1]
    %v1977 = vld [vmem:[%s13] sm:$0x1]
    %v1978 = vpack.c.bf16 %v1926, %v1926
    %v1979 = vpack.c.bf16 %v1927, %v1927
    %v1980 = vpack.c.bf16 %v1928, %v1928
    %v1981 = vpack.c.bf16 %v1929, %v1929
    %v1982 = vpack.c.bf16 %v1930, %v1930
    %v1983 = vpack.c.bf16 %v1931, %v1931
    %v1984 = vpack.c.bf16 %v1932, %v1932
    %v1985 = vpack.c.bf16 %v1933, %v1933
    %v1986 = vpack.c.bf16 %v1934, %v1934
    %v1987 = vpack.c.bf16 %v1935, %v1935
    %v1988 = vpack.c.bf16 %v1936, %v1936
    %v1989 = vpack.c.bf16 %v1937, %v1937
    %v1990 = vpack.c.bf16 %v1938, %v1938
    %v1991 = vpack.c.bf16 %v1939, %v1939
    %v1992 = vpack.c.bf16 %v1940, %v1940
    %v1993 = vpack.c.bf16 %v1941, %v1941
    %v1995 = vlaneseq
    %v1996 = vshrl.u32 %v1995, 7
    %v1997 = vsub.s32 0, %v1996
    %v1998 = vrot.slane %v1958, %v1997
    %v2016 = vunpack.c.l.b16 %v1978
    %v2017 = vunpack.c.l.b16 %v1979
    %v2018 = vunpack.c.l.b16 %v1980
    %v2019 = vunpack.c.l.b16 %v1981
    %v2020 = vunpack.c.l.b16 %v1982
    %v2021 = vunpack.c.l.b16 %v1983
    %v2022 = vunpack.c.l.b16 %v1984
    %v2023 = vunpack.c.l.b16 %v1985
    %v2024 = vunpack.c.l.b16 %v1986
    %v2025 = vunpack.c.l.b16 %v1987
    %v2026 = vunpack.c.l.b16 %v1988
    %v2027 = vunpack.c.l.b16 %v1989
    %v2028 = vunpack.c.l.b16 %v1990
    %v2029 = vunpack.c.l.b16 %v1991
    %v2030 = vunpack.c.l.b16 %v1992
    %v2031 = vunpack.c.l.b16 %v1993
    %v2032 = vrot.slane %v2017, 7
    %v2033 = vsel %vm1656, %v2032, %v2016
    %v2034 = vrot.slane %v2018, 6
    %v2035 = vsel %vm1659, %v2034, %v2033
    %v2036 = vrot.slane %v2019, 5
    %v2037 = vsel %vm1662, %v2036, %v2035
    %v2038 = vrot.slane %v2020, 4
    %v2039 = vsel %vm1665, %v2038, %v2037
    %v2040 = vrot.slane %v2021, 3
    %v2041 = vsel %vm1668, %v2040, %v2039
    %v2042 = vrot.slane %v2022, 2
    %v2043 = vsel %vm1671, %v2042, %v2041
    %v2044 = vrot.slane %v2023, 1
    %v2045 = vsel %vm1674, %v2044, %v2043
    %v2046 = vrot.slane %v2025, 7
    %v2047 = vsel %vm1656, %v2046, %v2024
    %v2048 = vrot.slane %v2026, 6
    %v2049 = vsel %vm1659, %v2048, %v2047
    %v2050 = vrot.slane %v2027, 5
    %v2051 = vsel %vm1662, %v2050, %v2049
    %v2052 = vrot.slane %v2028, 4
    %v2053 = vsel %vm1665, %v2052, %v2051
    %v2054 = vrot.slane %v2029, 3
    %v2055 = vsel %vm1668, %v2054, %v2053
    %v2056 = vrot.slane %v2030, 2
    %v2057 = vsel %vm1671, %v2056, %v2055
    %v2058 = vrot.slane %v2031, 1
    %v2059 = vsel %vm1674, %v2058, %v2057
    %v2060 = vpack.c.b16 %v2059, %v2045
    %v2078 = vunpack.c.l.b16 %v1942
    %v2079 = vunpack.c.l.b16 %v1943
    %v2080 = vunpack.c.l.b16 %v1944
    %v2081 = vunpack.c.l.b16 %v1945
    %v2082 = vunpack.c.l.b16 %v1946
    %v2083 = vunpack.c.l.b16 %v1947
    %v2084 = vunpack.c.l.b16 %v1948
    %v2085 = vunpack.c.l.b16 %v1949
    %v2086 = vunpack.c.l.b16 %v1950
    %v2087 = vunpack.c.l.b16 %v1951
    %v2088 = vunpack.c.l.b16 %v1952
    %v2089 = vunpack.c.l.b16 %v1953
    %v2090 = vunpack.c.l.b16 %v1954
    %v2091 = vunpack.c.l.b16 %v1955
    %v2092 = vunpack.c.l.b16 %v1956
    %v2093 = vunpack.c.l.b16 %v1957
    %v2094 = vpack.c.b16 %v2079, %v2078
    %v2095 = vpack.c.b16 %v2081, %v2080
    %v2096 = vpack.c.b16 %v2083, %v2082
    %v2097 = vpack.c.b16 %v2085, %v2084
    %v2098 = vpack.c.b16 %v2087, %v2086
    %v2099 = vpack.c.b16 %v2089, %v2088
    %v2100 = vpack.c.b16 %v2091, %v2090
    %v2101 = vpack.c.b16 %v2093, %v2092
    %2110 = vmatprep.subr.bf16.mxu0 0
    %2111 = vmatpush1.bf16.msra.mxu0 %v2094
    %2112 = vmatprep.subr.bf16.mxu0 0
    %2113 = vmatpush1.bf16.msra.mxu0 %v2095
    %2114 = vmatprep.subr.bf16.mxu0 0
    %2115 = vmatpush1.bf16.msra.mxu0 %v2096
    %2116 = vmatprep.subr.bf16.mxu0 0
    %2117 = vmatpush1.bf16.msra.mxu0 %v2097
    %2118 = vmatprep.subr.bf16.mxu0 0
    %2119 = vmatpush1.bf16.msra.mxu0 %v2098
    %2120 = vmatprep.subr.bf16.mxu0 0
    %2121 = vmatpush1.bf16.msra.mxu0 %v2099
    %2122 = vmatprep.subr.bf16.mxu0 0
    %2123 = vmatpush1.bf16.msra.mxu0 %v2100
    %2124 = vmatprep.subr.bf16.mxu0 0
    %2125 = vmatpush1.bf16.msra.mxu0 %v2101
    %2126 = vmatprep.subr.bf16.mxu0 0
    %2127 = vmatpush1.bf16.msra.mxu0 0
    %2128 = vmatprep.subr.bf16.mxu0 0
    %2129 = vmatpush1.bf16.msra.mxu0 0
    %2130 = vmatprep.subr.bf16.mxu0 0
    %2131 = vmatpush1.bf16.msra.mxu0 0
    %2132 = vmatprep.subr.bf16.mxu0 0
    %2133 = vmatpush1.bf16.msra.mxu0 0
    %2134 = vmatprep.subr.bf16.mxu0 0
    %2135 = vmatpush1.bf16.msra.mxu0 0
    %2136 = vmatprep.subr.bf16.mxu0 0
    %2137 = vmatpush1.bf16.msra.mxu0 0
    %2138 = vmatprep.subr.bf16.mxu0 0
    %2139 = vmatpush1.bf16.msra.mxu0 0
    %2140 = vmatprep.subr.bf16.mxu0 0
    %2141 = vmatpush1.bf16.msra.mxu0 0
    %2142 = vmatprep.mubr.bf16.mxu0 0
    %2143 = vmatmul.mubr.bf16.gmra.mrb[0].mxu0 %v2060
    %v2144 = vpop.f32.mrb[0].mxu0
    %v2145 = vadd.f32 %v1998, %v2144
    %v2146 = vpop.f32.mrb[0].mxu0
    %v2147 = vpop.f32.mrb[0].mxu0
    %v2148 = vadd.f32 %v1998, %v2147
    %v2149 = vpop.f32.mrb[0].mxu0
    %2150 = vdwg.mxu0
    %2151 = vrot.lane.b32.xlu0 %v2145, 64
    %v2152 = vpop.permute.xlu0 %2151
    %2153 = vrot.lane.b32.xlu0 %v2148, 64
    %v2154 = vpop.permute.xlu0 %2153
    %v2155 = vmul.f32 %v2145, %v159
    %v2156 = vmul.f32 %v2148, %v159
    %v2157 = vmul.f32 %v2152, %v159
    %v2158 = vmul.f32 %v2154, %v159
    %v2159 = vpack.c.bf16 %v2148, %v2145
    %v2160 = vpack.c.bf16 %v2154, %v2152
    %v2162 = vcombine.high %v2160, %v2160
    %v2164 = vunpack.c.l.s4 1966171168
    %v2165 = vunpack.c.0.s8 %v2164
    %v2166 = vlaneseq
    %v2167 = vshrl.u32 %v2166, 7
    %v2168 = vsub.s32 %v2165, %v2167
    %v2169 = vrot.slane %v2160, %v2168
    %v2171 = vunpack.c.l.s4 1966171168
    %v2172 = vunpack.c.0.s8 %v2171
    %v2173 = vlaneseq
    %v2174 = vshrl.u32 %v2173, 7
    %v2175 = vsub.s32 %v2172, %v2174
    %v2176 = vrot.slane %v2162, %v2175
    %v2177 = vcombine.high %v2169, %v2169
    %v2178 = vcombine.high %v2176, %v2176
    %v2180 = vunpack.c.l.s4 1966171168
    %v2181 = vunpack.c.0.s8 %v2180
    %v2182 = vlaneseq
    %v2183 = vshrl.u32 %v2182, 7
    %v2184 = vsub.s32 %v2181, %v2183
    %v2185 = vrot.slane %v2169, %v2184
    %v2187 = vunpack.c.l.s4 1966171168
    %v2188 = vunpack.c.0.s8 %v2187
    %v2189 = vlaneseq
    %v2190 = vshrl.u32 %v2189, 7
    %v2191 = vsub.s32 %v2188, %v2190
    %v2192 = vrot.slane %v2176, %v2191
    %v2194 = vunpack.c.l.s4 1966171168
    %v2195 = vunpack.c.0.s8 %v2194
    %v2196 = vlaneseq
    %v2197 = vshrl.u32 %v2196, 7
    %v2198 = vsub.s32 %v2195, %v2197
    %v2199 = vrot.slane %v2177, %v2198
    %v2201 = vunpack.c.l.s4 1966171168
    %v2202 = vunpack.c.0.s8 %v2201
    %v2203 = vlaneseq
    %v2204 = vshrl.u32 %v2203, 7
    %v2205 = vsub.s32 %v2202, %v2204
    %v2206 = vrot.slane %v2178, %v2205
    %v2207 = vcombine.high %v2185, %v2185
    %v2208 = vcombine.high %v2192, %v2192
    %v2209 = vcombine.high %v2199, %v2199
    %v2210 = vcombine.high %v2206, %v2206
    %v2211 = vunpack.i.l.s16 %v2185
    %v2212 = vunpack.i.h.s16 %v2185
    %v2213 = vunpack.i.l.s16 %v2199
    %v2214 = vunpack.i.h.s16 %v2199
    %v2215 = vunpack.i.l.s16 %v2207
    %v2216 = vunpack.i.h.s16 %v2207
    %v2217 = vunpack.i.l.s16 %v2209
    %v2218 = vunpack.i.h.s16 %v2209
    %v2219 = vunpack.i.l.s16 %v2192
    %v2220 = vunpack.i.h.s16 %v2192
    %v2221 = vunpack.i.l.s16 %v2206
    %v2222 = vunpack.i.h.s16 %v2206
    %v2223 = vunpack.i.l.s16 %v2208
    %v2224 = vunpack.i.h.s16 %v2208
    %v2225 = vunpack.i.l.s16 %v2210
    %v2226 = vunpack.i.h.s16 %v2210
    %v2227 = vpack.i.b16 %v2211, %v2211
    %v2228 = vpack.i.b16 %v2212, %v2212
    %v2229 = vpack.i.b16 %v2213, %v2213
    %v2230 = vpack.i.b16 %v2214, %v2214
    %v2231 = vpack.i.b16 %v2215, %v2215
    %v2232 = vpack.i.b16 %v2216, %v2216
    %v2233 = vpack.i.b16 %v2217, %v2217
    %v2234 = vpack.i.b16 %v2218, %v2218
    %v2235 = vpack.i.b16 %v2219, %v2219
    %v2236 = vpack.i.b16 %v2220, %v2220
    %v2237 = vpack.i.b16 %v2221, %v2221
    %v2238 = vpack.i.b16 %v2222, %v2222
    %v2239 = vpack.i.b16 %v2223, %v2223
    %v2240 = vpack.i.b16 %v2224, %v2224
    %v2241 = vpack.i.b16 %v2225, %v2225
    %v2242 = vpack.i.b16 %v2226, %v2226
    %v2243 = vlaneseq
    %v2244 = vshrl.u32 %v2243, 7
    %v2245 = vsub.s32 0, %v2244
    %v2246 = vrot.slane %v2227, %v2245
    %v2247 = vlaneseq
    %v2248 = vshrl.u32 %v2247, 7
    %v2249 = vsub.s32 0, %v2248
    %v2250 = vrot.slane %v2228, %v2249
    %v2251 = vlaneseq
    %v2252 = vshrl.u32 %v2251, 7
    %v2253 = vsub.s32 0, %v2252
    %v2254 = vrot.slane %v2229, %v2253
    %v2255 = vlaneseq
    %v2256 = vshrl.u32 %v2255, 7
    %v2257 = vsub.s32 0, %v2256
    %v2258 = vrot.slane %v2230, %v2257
    %v2259 = vlaneseq
    %v2260 = vshrl.u32 %v2259, 7
    %v2261 = vsub.s32 0, %v2260
    %v2262 = vrot.slane %v2231, %v2261
    %v2263 = vlaneseq
    %v2264 = vshrl.u32 %v2263, 7
    %v2265 = vsub.s32 0, %v2264
    %v2266 = vrot.slane %v2232, %v2265
    %v2267 = vlaneseq
    %v2268 = vshrl.u32 %v2267, 7
    %v2269 = vsub.s32 0, %v2268
    %v2270 = vrot.slane %v2233, %v2269
    %v2271 = vlaneseq
    %v2272 = vshrl.u32 %v2271, 7
    %v2273 = vsub.s32 0, %v2272
    %v2274 = vrot.slane %v2234, %v2273
    %v2275 = vlaneseq
    %v2276 = vshrl.u32 %v2275, 7
    %v2277 = vsub.s32 0, %v2276
    %v2278 = vrot.slane %v2235, %v2277
    %v2279 = vlaneseq
    %v2280 = vshrl.u32 %v2279, 7
    %v2281 = vsub.s32 0, %v2280
    %v2282 = vrot.slane %v2236, %v2281
    %v2283 = vlaneseq
    %v2284 = vshrl.u32 %v2283, 7
    %v2285 = vsub.s32 0, %v2284
    %v2286 = vrot.slane %v2237, %v2285
    %v2287 = vlaneseq
    %v2288 = vshrl.u32 %v2287, 7
    %v2289 = vsub.s32 0, %v2288
    %v2290 = vrot.slane %v2238, %v2289
    %v2291 = vlaneseq
    %v2292 = vshrl.u32 %v2291, 7
    %v2293 = vsub.s32 0, %v2292
    %v2294 = vrot.slane %v2239, %v2293
    %v2295 = vlaneseq
    %v2296 = vshrl.u32 %v2295, 7
    %v2297 = vsub.s32 0, %v2296
    %v2298 = vrot.slane %v2240, %v2297
    %v2299 = vlaneseq
    %v2300 = vshrl.u32 %v2299, 7
    %v2301 = vsub.s32 0, %v2300
    %v2302 = vrot.slane %v2241, %v2301
    %v2303 = vlaneseq
    %v2304 = vshrl.u32 %v2303, 7
    %v2305 = vsub.s32 0, %v2304
    %v2306 = vrot.slane %v2242, %v2305
    %v2308 = vpack.i.b16 %v2246, %v2246
    %v2310 = vlaneseq
    %v2311 = vshrl.u32 %v2310, 7
    %v2312 = vsub.s32 0, %v2311
    %v2313 = vrot.slane %v2308, %v2312
    %v2315 = vpack.i.b16 %v2250, %v2250
    %v2317 = vlaneseq
    %v2318 = vshrl.u32 %v2317, 7
    %v2319 = vsub.s32 0, %v2318
    %v2320 = vrot.slane %v2315, %v2319
    %v2322 = vpack.i.b16 %v2254, %v2254
    %v2324 = vlaneseq
    %v2325 = vshrl.u32 %v2324, 7
    %v2326 = vsub.s32 0, %v2325
    %v2327 = vrot.slane %v2322, %v2326
    %v2329 = vpack.i.b16 %v2258, %v2258
    %v2331 = vlaneseq
    %v2332 = vshrl.u32 %v2331, 7
    %v2333 = vsub.s32 0, %v2332
    %v2334 = vrot.slane %v2329, %v2333
    %v2336 = vpack.i.b16 %v2262, %v2262
    %v2338 = vlaneseq
    %v2339 = vshrl.u32 %v2338, 7
    %v2340 = vsub.s32 0, %v2339
    %v2341 = vrot.slane %v2336, %v2340
    %v2343 = vpack.i.b16 %v2266, %v2266
    %v2345 = vlaneseq
    %v2346 = vshrl.u32 %v2345, 7
    %v2347 = vsub.s32 0, %v2346
    %v2348 = vrot.slane %v2343, %v2347
    %v2350 = vpack.i.b16 %v2270, %v2270
    %v2352 = vlaneseq
    %v2353 = vshrl.u32 %v2352, 7
    %v2354 = vsub.s32 0, %v2353
    %v2355 = vrot.slane %v2350, %v2354
    %v2357 = vpack.i.b16 %v2274, %v2274
    %v2359 = vlaneseq
    %v2360 = vshrl.u32 %v2359, 7
    %v2361 = vsub.s32 0, %v2360
    %v2362 = vrot.slane %v2357, %v2361
    %v2364 = vpack.i.b16 %v2278, %v2278
    %v2366 = vlaneseq
    %v2367 = vshrl.u32 %v2366, 7
    %v2368 = vsub.s32 0, %v2367
    %v2369 = vrot.slane %v2364, %v2368
    %v2371 = vpack.i.b16 %v2282, %v2282
    %v2373 = vlaneseq
    %v2374 = vshrl.u32 %v2373, 7
    %v2375 = vsub.s32 0, %v2374
    %v2376 = vrot.slane %v2371, %v2375
    %v2378 = vpack.i.b16 %v2286, %v2286
    %v2380 = vlaneseq
    %v2381 = vshrl.u32 %v2380, 7
    %v2382 = vsub.s32 0, %v2381
    %v2383 = vrot.slane %v2378, %v2382
    %v2385 = vpack.i.b16 %v2290, %v2290
    %v2387 = vlaneseq
    %v2388 = vshrl.u32 %v2387, 7
    %v2389 = vsub.s32 0, %v2388
    %v2390 = vrot.slane %v2385, %v2389
    %v2392 = vpack.i.b16 %v2294, %v2294
    %v2394 = vlaneseq
    %v2395 = vshrl.u32 %v2394, 7
    %v2396 = vsub.s32 0, %v2395
    %v2397 = vrot.slane %v2392, %v2396
    %v2399 = vpack.i.b16 %v2298, %v2298
    %v2401 = vlaneseq
    %v2402 = vshrl.u32 %v2401, 7
    %v2403 = vsub.s32 0, %v2402
    %v2404 = vrot.slane %v2399, %v2403
    %v2406 = vpack.i.b16 %v2302, %v2302
    %v2408 = vlaneseq
    %v2409 = vshrl.u32 %v2408, 7
    %v2410 = vsub.s32 0, %v2409
    %v2411 = vrot.slane %v2406, %v2410
    %v2413 = vpack.i.b16 %v2306, %v2306
    %v2415 = vlaneseq
    %v2416 = vshrl.u32 %v2415, 7
    %v2417 = vsub.s32 0, %v2416
    %v2418 = vrot.slane %v2413, %v2417
    %v2419 = vadd.bf16 %v2313, %v2159
    %v2420 = vadd.bf16 %v2320, %v2159
    %v2421 = vadd.bf16 %v2327, %v2159
    %v2422 = vadd.bf16 %v2334, %v2159
    %v2423 = vadd.bf16 %v2341, %v2159
    %v2424 = vadd.bf16 %v2348, %v2159
    %v2425 = vadd.bf16 %v2355, %v2159
    %v2426 = vadd.bf16 %v2362, %v2159
    %v2427 = vadd.bf16 %v2369, %v2159
    %v2428 = vadd.bf16 %v2376, %v2159
    %v2429 = vadd.bf16 %v2383, %v2159
    %v2430 = vadd.bf16 %v2390, %v2159
    %v2431 = vadd.bf16 %v2397, %v2159
    %v2432 = vadd.bf16 %v2404, %v2159
    %v2433 = vadd.bf16 %v2411, %v2159
    %v2434 = vadd.bf16 %v2418, %v2159
    %vm2435 = vcmp.gt.bf16.partialorder %v2419, 0
    %vm2436 = vcmp.gt.bf16.partialorder %v2420, 0
    %vm2437 = vcmp.gt.bf16.partialorder %v2421, 0
    %vm2438 = vcmp.gt.bf16.partialorder %v2422, 0
    %vm2439 = vcmp.gt.bf16.partialorder %v2423, 0
    %vm2440 = vcmp.gt.bf16.partialorder %v2424, 0
    %vm2441 = vcmp.gt.bf16.partialorder %v2425, 0
    %vm2442 = vcmp.gt.bf16.partialorder %v2426, 0
    %vm2443 = vcmp.gt.bf16.partialorder %v2427, 0
    %vm2444 = vcmp.gt.bf16.partialorder %v2428, 0
    %vm2445 = vcmp.gt.bf16.partialorder %v2429, 0
    %vm2446 = vcmp.gt.bf16.partialorder %v2430, 0
    %vm2447 = vcmp.gt.bf16.partialorder %v2431, 0
    %vm2448 = vcmp.gt.bf16.partialorder %v2432, 0
    %vm2449 = vcmp.gt.bf16.partialorder %v2433, 0
    %vm2450 = vcmp.gt.bf16.partialorder %v2434, 0
    %v2451 = vmul.bf16 %v2419, 1045249613
    %v2452 = vmul.bf16 %v2420, 1045249613
    %v2453 = vmul.bf16 %v2421, 1045249613
    %v2454 = vmul.bf16 %v2422, 1045249613
    %v2455 = vmul.bf16 %v2423, 1045249613
    %v2456 = vmul.bf16 %v2424, 1045249613
    %v2457 = vmul.bf16 %v2425, 1045249613
    %v2458 = vmul.bf16 %v2426, 1045249613
    %v2459 = vmul.bf16 %v2427, 1045249613
    %v2460 = vmul.bf16 %v2428, 1045249613
    %v2461 = vmul.bf16 %v2429, 1045249613
    %v2462 = vmul.bf16 %v2430, 1045249613
    %v2463 = vmul.bf16 %v2431, 1045249613
    %v2464 = vmul.bf16 %v2432, 1045249613
    %v2465 = vmul.bf16 %v2433, 1045249613
    %v2466 = vmul.bf16 %v2434, 1045249613
    %v2467 = vsel %vm2435, %v2419, %v2451
    %v2468 = vsel %vm2436, %v2420, %v2452
    %v2469 = vsel %vm2437, %v2421, %v2453
    %v2470 = vsel %vm2438, %v2422, %v2454
    %v2471 = vsel %vm2439, %v2423, %v2455
    %v2472 = vsel %vm2440, %v2424, %v2456
    %v2473 = vsel %vm2441, %v2425, %v2457
    %v2474 = vsel %vm2442, %v2426, %v2458
    %v2475 = vsel %vm2443, %v2427, %v2459
    %v2476 = vsel %vm2444, %v2428, %v2460
    %v2477 = vsel %vm2445, %v2429, %v2461
    %v2478 = vsel %vm2446, %v2430, %v2462
    %v2479 = vsel %vm2447, %v2431, %v2463
    %v2480 = vsel %vm2448, %v2432, %v2464
    %v2481 = vsel %vm2449, %v2433, %v2465
    %v2482 = vsel %vm2450, %v2434, %v2466
    %v2499 = vunpack.c.l.b16 %v1959
    %v2500 = vunpack.c.l.b16 %v1960
    %v2501 = vunpack.c.l.b16 %v1961
    %v2502 = vunpack.c.l.b16 %v1962
    %v2503 = vunpack.c.l.b16 %v1963
    %v2504 = vunpack.c.l.b16 %v1964
    %v2505 = vunpack.c.l.b16 %v1965
    %v2506 = vunpack.c.l.b16 %v1966
    %v2507 = vunpack.c.l.b16 %v1967
    %v2508 = vunpack.c.l.b16 %v1968
    %v2509 = vunpack.c.l.b16 %v1969
    %v2510 = vunpack.c.l.b16 %v1970
    %v2511 = vunpack.c.l.b16 %v1971
    %v2512 = vunpack.c.l.b16 %v1972
    %v2513 = vunpack.c.l.b16 %v1973
    %v2514 = vunpack.c.l.b16 %v1974
    %v2515 = vpack.c.b16 %v2500, %v2499
    %v2516 = vpack.c.b16 %v2502, %v2501
    %v2517 = vpack.c.b16 %v2504, %v2503
    %v2518 = vpack.c.b16 %v2506, %v2505
    %v2519 = vpack.c.b16 %v2508, %v2507
    %v2520 = vpack.c.b16 %v2510, %v2509
    %v2521 = vpack.c.b16 %v2512, %v2511
    %v2522 = vpack.c.b16 %v2514, %v2513
    %2531 = vmatprep.subr.bf16.mxu0 0
    %2532 = vmatpush1.bf16.msra.mxu0 %v2515
    %2533 = vmatprep.subr.bf16.mxu0 0
    %2534 = vmatpush1.bf16.msra.mxu0 %v2516
    %2535 = vmatprep.subr.bf16.mxu0 0
    %2536 = vmatpush1.bf16.msra.mxu0 %v2517
    %2537 = vmatprep.subr.bf16.mxu0 0
    %2538 = vmatpush1.bf16.msra.mxu0 %v2518
    %2539 = vmatprep.subr.bf16.mxu0 0
    %2540 = vmatpush1.bf16.msra.mxu0 %v2519
    %2541 = vmatprep.subr.bf16.mxu0 0
    %2542 = vmatpush1.bf16.msra.mxu0 %v2520
    %2543 = vmatprep.subr.bf16.mxu0 0
    %2544 = vmatpush1.bf16.msra.mxu0 %v2521
    %2545 = vmatprep.subr.bf16.mxu0 0
    %2546 = vmatpush1.bf16.msra.mxu0 %v2522
    %2547 = vmatprep.subr.bf16.mxu0 0
    %2548 = vmatpush1.bf16.msra.mxu0 0
    %2549 = vmatprep.subr.bf16.mxu0 0
    %2550 = vmatpush1.bf16.msra.mxu0 0
    %2551 = vmatprep.subr.bf16.mxu0 0
    %2552 = vmatpush1.bf16.msra.mxu0 0
    %2553 = vmatprep.subr.bf16.mxu0 0
    %2554 = vmatpush1.bf16.msra.mxu0 0
    %2555 = vmatprep.subr.bf16.mxu0 0
    %2556 = vmatpush1.bf16.msra.mxu0 0
    %2557 = vmatprep.subr.bf16.mxu0 0
    %2558 = vmatpush1.bf16.msra.mxu0 0
    %2559 = vmatprep.subr.bf16.mxu0 0
    %2560 = vmatpush1.bf16.msra.mxu0 0
    %2561 = vmatprep.subr.bf16.mxu0 0
    %2562 = vmatpush1.bf16.msra.mxu0 0
    %2563 = vmatprep.mubr.bf16.mxu0 0
    %2564 = vmatmul.mubr.bf16.gmra.mrb[0].mxu0 %v2467
    %v2565 = vpop.f32.mrb[0].mxu0
    %v2566 = vadd.f32 0.0, %v2565
    %v2567 = vpop.f32.mrb[0].mxu0
    %v2568 = vpop.f32.mrb[0].mxu0
    %v2569 = vadd.f32 0.0, %v2568
    %v2570 = vpop.f32.mrb[0].mxu0
    %2571 = vmatprep.mubr.bf16.mxu0 0
    %2572 = vmatmul.mubr.bf16.gmra.mrb[0].mxu0 %v2468
    %v2573 = vpop.f32.mrb[0].mxu0
    %v2574 = vadd.f32 0.0, %v2573
    %v2575 = vpop.f32.mrb[0].mxu0
    %v2576 = vpop.f32.mrb[0].mxu0
    %v2577 = vadd.f32 0.0, %v2576
    %v2578 = vpop.f32.mrb[0].mxu0
    %2579 = vmatprep.mubr.bf16.mxu0 0
    %2580 = vmatmul.mubr.bf16.gmra.mrb[0].mxu0 %v2469
    %v2581 = vpop.f32.mrb[0].mxu0
    %v2582 = vadd.f32 0.0, %v2581
    %v2583 = vpop.f32.mrb[0].mxu0
    %v2584 = vpop.f32.mrb[0].mxu0
    %v2585 = vadd.f32 0.0, %v2584
    %v2586 = vpop.f32.mrb[0].mxu0
    %2587 = vmatprep.mubr.bf16.mxu0 0
    %2588 = vmatmul.mubr.bf16.gmra.mrb[0].mxu0 %v2470
    %v2589 = vpop.f32.mrb[0].mxu0
    %v2590 = vadd.f32 0.0, %v2589
    %v2591 = vpop.f32.mrb[0].mxu0
    %v2592 = vpop.f32.mrb[0].mxu0
    %v2593 = vadd.f32 0.0, %v2592
    %v2594 = vpop.f32.mrb[0].mxu0
    %2595 = vmatprep.mubr.bf16.mxu0 0
    %2596 = vmatmul.mubr.bf16.gmra.mrb[0].mxu0 %v2471
    %v2597 = vpop.f32.mrb[0].mxu0
    %v2598 = vadd.f32 0.0, %v2597
    %v2599 = vpop.f32.mrb[0].mxu0
    %v2600 = vpop.f32.mrb[0].mxu0
    %v2601 = vadd.f32 0.0, %v2600
    %v2602 = vpop.f32.mrb[0].mxu0
    %2603 = vmatprep.mubr.bf16.mxu0 0
    %2604 = vmatmul.mubr.bf16.gmra.mrb[0].mxu0 %v2472
    %v2605 = vpop.f32.mrb[0].mxu0
    %v2606 = vadd.f32 0.0, %v2605
    %v2607 = vpop.f32.mrb[0].mxu0
    %v2608 = vpop.f32.mrb[0].mxu0
    %v2609 = vadd.f32 0.0, %v2608
    %v2610 = vpop.f32.mrb[0].mxu0
    %2611 = vmatprep.mubr.bf16.mxu0 0
    %2612 = vmatmul.mubr.bf16.gmra.mrb[0].mxu0 %v2473
    %v2613 = vpop.f32.mrb[0].mxu0
    %v2614 = vadd.f32 0.0, %v2613
    %v2615 = vpop.f32.mrb[0].mxu0
    %v2616 = vpop.f32.mrb[0].mxu0
    %v2617 = vadd.f32 0.0, %v2616
    %v2618 = vpop.f32.mrb[0].mxu0
    %2619 = vmatprep.mubr.bf16.mxu0 0
    %2620 = vmatmul.mubr.bf16.gmra.mrb[0].mxu0 %v2474
    %v2621 = vpop.f32.mrb[0].mxu0
    %v2622 = vadd.f32 0.0, %v2621
    %v2623 = vpop.f32.mrb[0].mxu0
    %v2624 = vpop.f32.mrb[0].mxu0
    %v2625 = vadd.f32 0.0, %v2624
    %v2626 = vpop.f32.mrb[0].mxu0
    %2627 = vmatprep.mubr.bf16.mxu0 0
    %2628 = vmatmul.mubr.bf16.gmra.mrb[0].mxu0 %v2475
    %v2629 = vpop.f32.mrb[0].mxu0
    %v2630 = vadd.f32 0.0, %v2629
    %v2631 = vpop.f32.mrb[0].mxu0
    %v2632 = vpop.f32.mrb[0].mxu0
    %v2633 = vadd.f32 0.0, %v2632
    %v2634 = vpop.f32.mrb[0].mxu0
    %2635 = vmatprep.mubr.bf16.mxu0 0
    %2636 = vmatmul.mubr.bf16.gmra.mrb[0].mxu0 %v2476
    %v2637 = vpop.f32.mrb[0].mxu0
    %v2638 = vadd.f32 0.0, %v2637
    %v2639 = vpop.f32.mrb[0].mxu0
    %v2640 = vpop.f32.mrb[0].mxu0
    %v2641 = vadd.f32 0.0, %v2640
    %v2642 = vpop.f32.mrb[0].mxu0
    %2643 = vmatprep.mubr.bf16.mxu0 0
    %2644 = vmatmul.mubr.bf16.gmra.mrb[0].mxu0 %v2477
    %v2645 = vpop.f32.mrb[0].mxu0
    %v2646 = vadd.f32 0.0, %v2645
    %v2647 = vpop.f32.mrb[0].mxu0
    %v2648 = vpop.f32.mrb[0].mxu0
    %v2649 = vadd.f32 0.0, %v2648
    %v2650 = vpop.f32.mrb[0].mxu0
    %2651 = vmatprep.mubr.bf16.mxu0 0
    %2652 = vmatmul.mubr.bf16.gmra.mrb[0].mxu0 %v2478
    %v2653 = vpop.f32.mrb[0].mxu0
    %v2654 = vadd.f32 0.0, %v2653
    %v2655 = vpop.f32.mrb[0].mxu0
    %v2656 = vpop.f32.mrb[0].mxu0
    %v2657 = vadd.f32 0.0, %v2656
    %v2658 = vpop.f32.mrb[0].mxu0
    %2659 = vmatprep.mubr.bf16.mxu0 0
    %2660 = vmatmul.mubr.bf16.gmra.mrb[0].mxu0 %v2479
    %v2661 = vpop.f32.mrb[0].mxu0
    %v2662 = vadd.f32 0.0, %v2661
    %v2663 = vpop.f32.mrb[0].mxu0
    %v2664 = vpop.f32.mrb[0].mxu0
    %v2665 = vadd.f32 0.0, %v2664
    %v2666 = vpop.f32.mrb[0].mxu0
    %2667 = vmatprep.mubr.bf16.mxu0 0
    %2668 = vmatmul.mubr.bf16.gmra.mrb[0].mxu0 %v2480
    %v2669 = vpop.f32.mrb[0].mxu0
    %v2670 = vadd.f32 0.0, %v2669
    %v2671 = vpop.f32.mrb[0].mxu0
    %v2672 = vpop.f32.mrb[0].mxu0
    %v2673 = vadd.f32 0.0, %v2672
    %v2674 = vpop.f32.mrb[0].mxu0
    %2675 = vmatprep.mubr.bf16.mxu0 0
    %2676 = vmatmul.mubr.bf16.gmra.mrb[0].mxu0 %v2481
    %v2677 = vpop.f32.mrb[0].mxu0
    %v2678 = vadd.f32 0.0, %v2677
    %v2679 = vpop.f32.mrb[0].mxu0
    %v2680 = vpop.f32.mrb[0].mxu0
    %v2681 = vadd.f32 0.0, %v2680
    %v2682 = vpop.f32.mrb[0].mxu0
    %2683 = vmatprep.mubr.bf16.mxu0 0
    %2684 = vmatmul.mubr.bf16.gmra.mrb[0].mxu0 %v2482
    %v2685 = vpop.f32.mrb[0].mxu0
    %v2686 = vadd.f32 0.0, %v2685
    %v2687 = vpop.f32.mrb[0].mxu0
    %v2688 = vpop.f32.mrb[0].mxu0
    %v2689 = vadd.f32 0.0, %v2688
    %v2690 = vpop.f32.mrb[0].mxu0
    %2691 = vdwg.mxu0
    %v2692 = vadd.f32 %v2566, %v839
    %v2693 = vadd.f32 %v2569, %v843
    %v2694 = vadd.f32 %v2574, %v850
    %v2695 = vadd.f32 %v2577, %v854
    %v2696 = vadd.f32 %v2582, %v861
    %v2697 = vadd.f32 %v2585, %v865
    %v2698 = vadd.f32 %v2590, %v872
    %v2699 = vadd.f32 %v2593, %v876
    %v2700 = vadd.f32 %v2598, %v883
    %v2701 = vadd.f32 %v2601, %v887
    %v2702 = vadd.f32 %v2606, %v894
    %v2703 = vadd.f32 %v2609, %v898
    %v2704 = vadd.f32 %v2614, %v905
    %v2705 = vadd.f32 %v2617, %v909
    %v2706 = vadd.f32 %v2622, %v916
    %v2707 = vadd.f32 %v2625, %v920
    %v2708 = vadd.f32 %v2630, %v927
    %v2709 = vadd.f32 %v2633, %v931
    %v2710 = vadd.f32 %v2638, %v938
    %v2711 = vadd.f32 %v2641, %v942
    %v2712 = vadd.f32 %v2646, %v949
    %v2713 = vadd.f32 %v2649, %v953
    %v2714 = vadd.f32 %v2654, %v960
    %v2715 = vadd.f32 %v2657, %v964
    %v2716 = vadd.f32 %v2662, %v971
    %v2717 = vadd.f32 %v2665, %v975
    %v2718 = vadd.f32 %v2670, %v982
    %v2719 = vadd.f32 %v2673, %v986
    %v2720 = vadd.f32 %v2678, %v993
    %v2721 = vadd.f32 %v2681, %v997
    %v2722 = vadd.f32 %v2686, %v1004
    %v2723 = vadd.f32 %v2689, %v1008
    %v2724 = vmax.f32 %v2692, %v2693
    %v2725 = vrot.slane %v2724, 4
    %v2726 = vmax.f32 %v2724, %v2725
    %v2727 = vrot.slane %v2726, 2
    %v2728 = vmax.f32 %v2726, %v2727
    %v2729 = vrot.slane %v2728, 1
    %v2730 = vmax.f32 %v2728, %v2729
    %v2731 = vmax.f32 %v2694, %v2695
    %v2732 = vrot.slane %v2731, 4
    %v2733 = vmax.f32 %v2731, %v2732
    %v2734 = vrot.slane %v2733, 2
    %v2735 = vmax.f32 %v2733, %v2734
    %v2736 = vrot.slane %v2735, 1
    %v2737 = vmax.f32 %v2735, %v2736
    %v2738 = vmax.f32 %v2696, %v2697
    %v2739 = vrot.slane %v2738, 4
    %v2740 = vmax.f32 %v2738, %v2739
    %v2741 = vrot.slane %v2740, 2
    %v2742 = vmax.f32 %v2740, %v2741
    %v2743 = vrot.slane %v2742, 1
    %v2744 = vmax.f32 %v2742, %v2743
    %v2745 = vmax.f32 %v2698, %v2699
    %v2746 = vrot.slane %v2745, 4
    %v2747 = vmax.f32 %v2745, %v2746
    %v2748 = vrot.slane %v2747, 2
    %v2749 = vmax.f32 %v2747, %v2748
    %v2750 = vrot.slane %v2749, 1
    %v2751 = vmax.f32 %v2749, %v2750
    %v2752 = vmax.f32 %v2700, %v2701
    %v2753 = vrot.slane %v2752, 4
    %v2754 = vmax.f32 %v2752, %v2753
    %v2755 = vrot.slane %v2754, 2
    %v2756 = vmax.f32 %v2754, %v2755
    %v2757 = vrot.slane %v2756, 1
    %v2758 = vmax.f32 %v2756, %v2757
    %v2759 = vmax.f32 %v2702, %v2703
    %v2760 = vrot.slane %v2759, 4
    %v2761 = vmax.f32 %v2759, %v2760
    %v2762 = vrot.slane %v2761, 2
    %v2763 = vmax.f32 %v2761, %v2762
    %v2764 = vrot.slane %v2763, 1
    %v2765 = vmax.f32 %v2763, %v2764
    %v2766 = vmax.f32 %v2704, %v2705
    %v2767 = vrot.slane %v2766, 4
    %v2768 = vmax.f32 %v2766, %v2767
    %v2769 = vrot.slane %v2768, 2
    %v2770 = vmax.f32 %v2768, %v2769
    %v2771 = vrot.slane %v2770, 1
    %v2772 = vmax.f32 %v2770, %v2771
    %v2773 = vmax.f32 %v2706, %v2707
    %v2774 = vrot.slane %v2773, 4
    %v2775 = vmax.f32 %v2773, %v2774
    %v2776 = vrot.slane %v2775, 2
    %v2777 = vmax.f32 %v2775, %v2776
    %v2778 = vrot.slane %v2777, 1
    %v2779 = vmax.f32 %v2777, %v2778
    %v2780 = vmax.f32 %v2708, %v2709
    %v2781 = vrot.slane %v2780, 4
    %v2782 = vmax.f32 %v2780, %v2781
    %v2783 = vrot.slane %v2782, 2
    %v2784 = vmax.f32 %v2782, %v2783
    %v2785 = vrot.slane %v2784, 1
    %v2786 = vmax.f32 %v2784, %v2785
    %v2787 = vmax.f32 %v2710, %v2711
    %v2788 = vrot.slane %v2787, 4
    %v2789 = vmax.f32 %v2787, %v2788
    %v2790 = vrot.slane %v2789, 2
    %v2791 = vmax.f32 %v2789, %v2790
    %v2792 = vrot.slane %v2791, 1
    %v2793 = vmax.f32 %v2791, %v2792
    %v2794 = vmax.f32 %v2712, %v2713
    %v2795 = vrot.slane %v2794, 4
    %v2796 = vmax.f32 %v2794, %v2795
    %v2797 = vrot.slane %v2796, 2
    %v2798 = vmax.f32 %v2796, %v2797
    %v2799 = vrot.slane %v2798, 1
    %v2800 = vmax.f32 %v2798, %v2799
    %v2801 = vmax.f32 %v2714, %v2715
    %v2802 = vrot.slane %v2801, 4
    %v2803 = vmax.f32 %v2801, %v2802
    %v2804 = vrot.slane %v2803, 2
    %v2805 = vmax.f32 %v2803, %v2804
    %v2806 = vrot.slane %v2805, 1
    %v2807 = vmax.f32 %v2805, %v2806
    %v2808 = vmax.f32 %v2716, %v2717
    %v2809 = vrot.slane %v2808, 4
    %v2810 = vmax.f32 %v2808, %v2809
    %v2811 = vrot.slane %v2810, 2
    %v2812 = vmax.f32 %v2810, %v2811
    %v2813 = vrot.slane %v2812, 1
    %v2814 = vmax.f32 %v2812, %v2813
    %v2815 = vmax.f32 %v2718, %v2719
    %v2816 = vrot.slane %v2815, 4
    %v2817 = vmax.f32 %v2815, %v2816
    %v2818 = vrot.slane %v2817, 2
    %v2819 = vmax.f32 %v2817, %v2818
    %v2820 = vrot.slane %v2819, 1
    %v2821 = vmax.f32 %v2819, %v2820
    %v2822 = vmax.f32 %v2720, %v2721
    %v2823 = vrot.slane %v2822, 4
    %v2824 = vmax.f32 %v2822, %v2823
    %v2825 = vrot.slane %v2824, 2
    %v2826 = vmax.f32 %v2824, %v2825
    %v2827 = vrot.slane %v2826, 1
    %v2828 = vmax.f32 %v2826, %v2827
    %v2829 = vmax.f32 %v2722, %v2723
    %v2830 = vrot.slane %v2829, 4
    %v2831 = vmax.f32 %v2829, %v2830
    %v2832 = vrot.slane %v2831, 2
    %v2833 = vmax.f32 %v2831, %v2832
    %v2834 = vrot.slane %v2833, 1
    %v2835 = vmax.f32 %v2833, %v2834
    %v2836 = vsub.f32 %v2692, %v2730
    %v2837 = vsub.f32 %v2693, %v2730
    %v2838 = vsub.f32 %v2694, %v2737
    %v2839 = vsub.f32 %v2695, %v2737
    %v2840 = vsub.f32 %v2696, %v2744
    %v2841 = vsub.f32 %v2697, %v2744
    %v2842 = vsub.f32 %v2698, %v2751
    %v2843 = vsub.f32 %v2699, %v2751
    %v2844 = vsub.f32 %v2700, %v2758
    %v2845 = vsub.f32 %v2701, %v2758
    %v2846 = vsub.f32 %v2702, %v2765
    %v2847 = vsub.f32 %v2703, %v2765
    %v2848 = vsub.f32 %v2704, %v2772
    %v2849 = vsub.f32 %v2705, %v2772
    %v2850 = vsub.f32 %v2706, %v2779
    %v2851 = vsub.f32 %v2707, %v2779
    %v2852 = vsub.f32 %v2708, %v2786
    %v2853 = vsub.f32 %v2709, %v2786
    %v2854 = vsub.f32 %v2710, %v2793
    %v2855 = vsub.f32 %v2711, %v2793
    %v2856 = vsub.f32 %v2712, %v2800
    %v2857 = vsub.f32 %v2713, %v2800
    %v2858 = vsub.f32 %v2714, %v2807
    %v2859 = vsub.f32 %v2715, %v2807
    %v2860 = vsub.f32 %v2716, %v2814
    %v2861 = vsub.f32 %v2717, %v2814
    %v2862 = vsub.f32 %v2718, %v2821
    %v2863 = vsub.f32 %v2719, %v2821
    %v2864 = vsub.f32 %v2720, %v2828
    %v2865 = vsub.f32 %v2721, %v2828
    %v2866 = vsub.f32 %v2722, %v2835
    %v2867 = vsub.f32 %v2723, %v2835
    %v2868 = vmul.f32 %v2836, 1.442695
    %v2869 = vpow.pop %v2868
    %v2870 = vmul.f32 %v2837, 1.442695
    %v2871 = vpow.pop %v2870
    %v2872 = vmul.f32 %v2838, 1.442695
    %v2873 = vpow.pop %v2872
    %v2874 = vmul.f32 %v2839, 1.442695
    %v2875 = vpow.pop %v2874
    %v2876 = vmul.f32 %v2840, 1.442695
    %v2877 = vpow.pop %v2876
    %v2878 = vmul.f32 %v2841, 1.442695
    %v2879 = vpow.pop %v2878
    %v2880 = vmul.f32 %v2842, 1.442695
    %v2881 = vpow.pop %v2880
    %v2882 = vmul.f32 %v2843, 1.442695
    %v2883 = vpow.pop %v2882
    %v2884 = vmul.f32 %v2844, 1.442695
    %v2885 = vpow.pop %v2884
    %v2886 = vmul.f32 %v2845, 1.442695
    %v2887 = vpow.pop %v2886
    %v2888 = vmul.f32 %v2846, 1.442695
    %v2889 = vpow.pop %v2888
    %v2890 = vmul.f32 %v2847, 1.442695
    %v2891 = vpow.pop %v2890
    %v2892 = vmul.f32 %v2848, 1.442695
    %v2893 = vpow.pop %v2892
    %v2894 = vmul.f32 %v2849, 1.442695
    %v2895 = vpow.pop %v2894
    %v2896 = vmul.f32 %v2850, 1.442695
    %v2897 = vpow.pop %v2896
    %v2898 = vmul.f32 %v2851, 1.442695
    %v2899 = vpow.pop %v2898
    %v2900 = vmul.f32 %v2852, 1.442695
    %v2901 = vpow.pop %v2900
    %v2902 = vmul.f32 %v2853, 1.442695
    %v2903 = vpow.pop %v2902
    %v2904 = vmul.f32 %v2854, 1.442695
    %v2905 = vpow.pop %v2904
    %v2906 = vmul.f32 %v2855, 1.442695
    %v2907 = vpow.pop %v2906
    %v2908 = vmul.f32 %v2856, 1.442695
    %v2909 = vpow.pop %v2908
    %v2910 = vmul.f32 %v2857, 1.442695
    %v2911 = vpow.pop %v2910
    %v2912 = vmul.f32 %v2858, 1.442695
    %v2913 = vpow.pop %v2912
    %v2914 = vmul.f32 %v2859, 1.442695
    %v2915 = vpow.pop %v2914
    %v2916 = vmul.f32 %v2860, 1.442695
    %v2917 = vpow.pop %v2916
    %v2918 = vmul.f32 %v2861, 1.442695
    %v2919 = vpow.pop %v2918
    %v2920 = vmul.f32 %v2862, 1.442695
    %v2921 = vpow.pop %v2920
    %v2922 = vmul.f32 %v2863, 1.442695
    %v2923 = vpow.pop %v2922
    %v2924 = vmul.f32 %v2864, 1.442695
    %v2925 = vpow.pop %v2924
    %v2926 = vmul.f32 %v2865, 1.442695
    %v2927 = vpow.pop %v2926
    %v2928 = vmul.f32 %v2866, 1.442695
    %v2929 = vpow.pop %v2928
    %v2930 = vmul.f32 %v2867, 1.442695
    %v2931 = vpow.pop %v2930
    %v2932 = vadd.f32 %v2869, %v2871
    %v2933 = vrot.slane %v2932, 4
    %v2934 = vadd.f32 %v2932, %v2933
    %v2935 = vrot.slane %v2934, 2
    %v2936 = vadd.f32 %v2934, %v2935
    %v2937 = vrot.slane %v2936, 1
    %v2938 = vadd.f32 %v2936, %v2937
    %v2939 = vadd.f32 %v2873, %v2875
    %v2940 = vrot.slane %v2939, 4
    %v2941 = vadd.f32 %v2939, %v2940
    %v2942 = vrot.slane %v2941, 2
    %v2943 = vadd.f32 %v2941, %v2942
    %v2944 = vrot.slane %v2943, 1
    %v2945 = vadd.f32 %v2943, %v2944
    %v2946 = vadd.f32 %v2877, %v2879
    %v2947 = vrot.slane %v2946, 4
    %v2948 = vadd.f32 %v2946, %v2947
    %v2949 = vrot.slane %v2948, 2
    %v2950 = vadd.f32 %v2948, %v2949
    %v2951 = vrot.slane %v2950, 1
    %v2952 = vadd.f32 %v2950, %v2951
    %v2953 = vadd.f32 %v2881, %v2883
    %v2954 = vrot.slane %v2953, 4
    %v2955 = vadd.f32 %v2953, %v2954
    %v2956 = vrot.slane %v2955, 2
    %v2957 = vadd.f32 %v2955, %v2956
    %v2958 = vrot.slane %v2957, 1
    %v2959 = vadd.f32 %v2957, %v2958
    %v2960 = vadd.f32 %v2885, %v2887
    %v2961 = vrot.slane %v2960, 4
    %v2962 = vadd.f32 %v2960, %v2961
    %v2963 = vrot.slane %v2962, 2
    %v2964 = vadd.f32 %v2962, %v2963
    %v2965 = vrot.slane %v2964, 1
    %v2966 = vadd.f32 %v2964, %v2965
    %v2967 = vadd.f32 %v2889, %v2891
    %v2968 = vrot.slane %v2967, 4
    %v2969 = vadd.f32 %v2967, %v2968
    %v2970 = vrot.slane %v2969, 2
    %v2971 = vadd.f32 %v2969, %v2970
    %v2972 = vrot.slane %v2971, 1
    %v2973 = vadd.f32 %v2971, %v2972
    %v2974 = vadd.f32 %v2893, %v2895
    %v2975 = vrot.slane %v2974, 4
    %v2976 = vadd.f32 %v2974, %v2975
    %v2977 = vrot.slane %v2976, 2
    %v2978 = vadd.f32 %v2976, %v2977
    %v2979 = vrot.slane %v2978, 1
    %v2980 = vadd.f32 %v2978, %v2979
    %v2981 = vadd.f32 %v2897, %v2899
    %v2982 = vrot.slane %v2981, 4
    %v2983 = vadd.f32 %v2981, %v2982
    %v2984 = vrot.slane %v2983, 2
    %v2985 = vadd.f32 %v2983, %v2984
    %v2986 = vrot.slane %v2985, 1
    %v2987 = vadd.f32 %v2985, %v2986
    %v2988 = vadd.f32 %v2901, %v2903
    %v2989 = vrot.slane %v2988, 4
    %v2990 = vadd.f32 %v2988, %v2989
    %v2991 = vrot.slane %v2990, 2
    %v2992 = vadd.f32 %v2990, %v2991
    %v2993 = vrot.slane %v2992, 1
    %v2994 = vadd.f32 %v2992, %v2993
    %v2995 = vadd.f32 %v2905, %v2907
    %v2996 = vrot.slane %v2995, 4
    %v2997 = vadd.f32 %v2995, %v2996
    %v2998 = vrot.slane %v2997, 2
    %v2999 = vadd.f32 %v2997, %v2998
    %v3000 = vrot.slane %v2999, 1
    %v3001 = vadd.f32 %v2999, %v3000
    %v3002 = vadd.f32 %v2909, %v2911
    %v3003 = vrot.slane %v3002, 4
    %v3004 = vadd.f32 %v3002, %v3003
    %v3005 = vrot.slane %v3004, 2
    %v3006 = vadd.f32 %v3004, %v3005
    %v3007 = vrot.slane %v3006, 1
    %v3008 = vadd.f32 %v3006, %v3007
    %v3009 = vadd.f32 %v2913, %v2915
    %v3010 = vrot.slane %v3009, 4
    %v3011 = vadd.f32 %v3009, %v3010
    %v3012 = vrot.slane %v3011, 2
    %v3013 = vadd.f32 %v3011, %v3012
    %v3014 = vrot.slane %v3013, 1
    %v3015 = vadd.f32 %v3013, %v3014
    %v3016 = vadd.f32 %v2917, %v2919
    %v3017 = vrot.slane %v3016, 4
    %v3018 = vadd.f32 %v3016, %v3017
    %v3019 = vrot.slane %v3018, 2
    %v3020 = vadd.f32 %v3018, %v3019
    %v3021 = vrot.slane %v3020, 1
    %v3022 = vadd.f32 %v3020, %v3021
    %v3023 = vadd.f32 %v2921, %v2923
    %v3024 = vrot.slane %v3023, 4
    %v3025 = vadd.f32 %v3023, %v3024
    %v3026 = vrot.slane %v3025, 2
    %v3027 = vadd.f32 %v3025, %v3026
    %v3028 = vrot.slane %v3027, 1
    %v3029 = vadd.f32 %v3027, %v3028
    %v3030 = vadd.f32 %v2925, %v2927
    %v3031 = vrot.slane %v3030, 4
    %v3032 = vadd.f32 %v3030, %v3031
    %v3033 = vrot.slane %v3032, 2
    %v3034 = vadd.f32 %v3032, %v3033
    %v3035 = vrot.slane %v3034, 1
    %v3036 = vadd.f32 %v3034, %v3035
    %v3037 = vadd.f32 %v2929, %v2931
    %v3038 = vrot.slane %v3037, 4
    %v3039 = vadd.f32 %v3037, %v3038
    %v3040 = vrot.slane %v3039, 2
    %v3041 = vadd.f32 %v3039, %v3040
    %v3042 = vrot.slane %v3041, 1
    %v3043 = vadd.f32 %v3041, %v3042
    %v3044 = vrcp.pop %v2938
    %v3045 = vrcp.pop %v2945
    %v3046 = vrcp.pop %v2952
    %v3047 = vrcp.pop %v2959
    %v3048 = vrcp.pop %v2966
    %v3049 = vrcp.pop %v2973
    %v3050 = vrcp.pop %v2980
    %v3051 = vrcp.pop %v2987
    %v3052 = vrcp.pop %v2994
    %v3053 = vrcp.pop %v3001
    %v3054 = vrcp.pop %v3008
    %v3055 = vrcp.pop %v3015
    %v3056 = vrcp.pop %v3022
    %v3057 = vrcp.pop %v3029
    %v3058 = vrcp.pop %v3036
    %v3059 = vrcp.pop %v3043
    %v3060 = vmul.f32 %v2869, %v3044
    %v3061 = vmul.f32 %v2871, %v3044
    %v3062 = vmul.f32 %v2873, %v3045
    %v3063 = vmul.f32 %v2875, %v3045
    %v3064 = vmul.f32 %v2877, %v3046
    %v3065 = vmul.f32 %v2879, %v3046
    %v3066 = vmul.f32 %v2881, %v3047
    %v3067 = vmul.f32 %v2883, %v3047
    %v3068 = vmul.f32 %v2885, %v3048
    %v3069 = vmul.f32 %v2887, %v3048
    %v3070 = vmul.f32 %v2889, %v3049
    %v3071 = vmul.f32 %v2891, %v3049
    %v3072 = vmul.f32 %v2893, %v3050
    %v3073 = vmul.f32 %v2895, %v3050
    %v3074 = vmul.f32 %v2897, %v3051
    %v3075 = vmul.f32 %v2899, %v3051
    %v3076 = vmul.f32 %v2901, %v3052
    %v3077 = vmul.f32 %v2903, %v3052
    %v3078 = vmul.f32 %v2905, %v3053
    %v3079 = vmul.f32 %v2907, %v3053
    %v3080 = vmul.f32 %v2909, %v3054
    %v3081 = vmul.f32 %v2911, %v3054
    %v3082 = vmul.f32 %v2913, %v3055
    %v3083 = vmul.f32 %v2915, %v3055
    %v3084 = vmul.f32 %v2917, %v3056
    %v3085 = vmul.f32 %v2919, %v3056
    %v3086 = vmul.f32 %v2921, %v3057
    %v3087 = vmul.f32 %v2923, %v3057
    %v3088 = vmul.f32 %v2925, %v3058
    %v3089 = vmul.f32 %v2927, %v3058
    %v3090 = vmul.f32 %v2929, %v3059
    %v3091 = vmul.f32 %v2931, %v3059
    %v3092 = vmul.f32 %v3060, %v2155
    %v3093 = vmul.f32 %v3061, %v2156
    %v3094 = vmul.f32 %v3062, %v2155
    %v3095 = vmul.f32 %v3063, %v2156
    %v3096 = vmul.f32 %v3064, %v2155
    %v3097 = vmul.f32 %v3065, %v2156
    %v3098 = vmul.f32 %v3066, %v2155
    %v3099 = vmul.f32 %v3067, %v2156
    %v3100 = vmul.f32 %v3068, %v2155
    %v3101 = vmul.f32 %v3069, %v2156
    %v3102 = vmul.f32 %v3070, %v2155
    %v3103 = vmul.f32 %v3071, %v2156
    %v3104 = vmul.f32 %v3072, %v2155
    %v3105 = vmul.f32 %v3073, %v2156
    %v3106 = vmul.f32 %v3074, %v2155
    %v3107 = vmul.f32 %v3075, %v2156
    %v3108 = vmul.f32 %v3076, %v2155
    %v3109 = vmul.f32 %v3077, %v2156
    %v3110 = vmul.f32 %v3078, %v2155
    %v3111 = vmul.f32 %v3079, %v2156
    %v3112 = vmul.f32 %v3080, %v2155
    %v3113 = vmul.f32 %v3081, %v2156
    %v3114 = vmul.f32 %v3082, %v2155
    %v3115 = vmul.f32 %v3083, %v2156
    %v3116 = vmul.f32 %v3084, %v2155
    %v3117 = vmul.f32 %v3085, %v2156
    %v3118 = vmul.f32 %v3086, %v2155
    %v3119 = vmul.f32 %v3087, %v2156
    %v3120 = vmul.f32 %v3088, %v2155
    %v3121 = vmul.f32 %v3089, %v2156
    %v3122 = vmul.f32 %v3090, %v2155
    %v3123 = vmul.f32 %v3091, %v2156
    %v3124 = vadd.f32 %v3092, %v3093
    %v3125 = vrot.slane %v3124, 4
    %v3126 = vadd.f32 %v3124, %v3125
    %v3127 = vrot.slane %v3126, 2
    %v3128 = vadd.f32 %v3126, %v3127
    %v3129 = vrot.slane %v3128, 1
    %v3130 = vadd.f32 %v3128, %v3129
    %v3131 = vadd.f32 %v3094, %v3095
    %v3132 = vrot.slane %v3131, 4
    %v3133 = vadd.f32 %v3131, %v3132
    %v3134 = vrot.slane %v3133, 2
    %v3135 = vadd.f32 %v3133, %v3134
    %v3136 = vrot.slane %v3135, 1
    %v3137 = vadd.f32 %v3135, %v3136
    %v3138 = vadd.f32 %v3096, %v3097
    %v3139 = vrot.slane %v3138, 4
    %v3140 = vadd.f32 %v3138, %v3139
    %v3141 = vrot.slane %v3140, 2
    %v3142 = vadd.f32 %v3140, %v3141
    %v3143 = vrot.slane %v3142, 1
    %v3144 = vadd.f32 %v3142, %v3143
    %v3145 = vadd.f32 %v3098, %v3099
    %v3146 = vrot.slane %v3145, 4
    %v3147 = vadd.f32 %v3145, %v3146
    %v3148 = vrot.slane %v3147, 2
    %v3149 = vadd.f32 %v3147, %v3148
    %v3150 = vrot.slane %v3149, 1
    %v3151 = vadd.f32 %v3149, %v3150
    %v3152 = vadd.f32 %v3100, %v3101
    %v3153 = vrot.slane %v3152, 4
    %v3154 = vadd.f32 %v3152, %v3153
    %v3155 = vrot.slane %v3154, 2
    %v3156 = vadd.f32 %v3154, %v3155
    %v3157 = vrot.slane %v3156, 1
    %v3158 = vadd.f32 %v3156, %v3157
    %v3159 = vadd.f32 %v3102, %v3103
    %v3160 = vrot.slane %v3159, 4
    %v3161 = vadd.f32 %v3159, %v3160
    %v3162 = vrot.slane %v3161, 2
    %v3163 = vadd.f32 %v3161, %v3162
    %v3164 = vrot.slane %v3163, 1
    %v3165 = vadd.f32 %v3163, %v3164
    %v3166 = vadd.f32 %v3104, %v3105
    %v3167 = vrot.slane %v3166, 4
    %v3168 = vadd.f32 %v3166, %v3167
    %v3169 = vrot.slane %v3168, 2
    %v3170 = vadd.f32 %v3168, %v3169
    %v3171 = vrot.slane %v3170, 1
    %v3172 = vadd.f32 %v3170, %v3171
    %v3173 = vadd.f32 %v3106, %v3107
    %v3174 = vrot.slane %v3173, 4
    %v3175 = vadd.f32 %v3173, %v3174
    %v3176 = vrot.slane %v3175, 2
    %v3177 = vadd.f32 %v3175, %v3176
    %v3178 = vrot.slane %v3177, 1
    %v3179 = vadd.f32 %v3177, %v3178
    %v3180 = vadd.f32 %v3108, %v3109
    %v3181 = vrot.slane %v3180, 4
    %v3182 = vadd.f32 %v3180, %v3181
    %v3183 = vrot.slane %v3182, 2
    %v3184 = vadd.f32 %v3182, %v3183
    %v3185 = vrot.slane %v3184, 1
    %v3186 = vadd.f32 %v3184, %v3185
    %v3187 = vadd.f32 %v3110, %v3111
    %v3188 = vrot.slane %v3187, 4
    %v3189 = vadd.f32 %v3187, %v3188
    %v3190 = vrot.slane %v3189, 2
    %v3191 = vadd.f32 %v3189, %v3190
    %v3192 = vrot.slane %v3191, 1
    %v3193 = vadd.f32 %v3191, %v3192
    %v3194 = vadd.f32 %v3112, %v3113
    %v3195 = vrot.slane %v3194, 4
    %v3196 = vadd.f32 %v3194, %v3195
    %v3197 = vrot.slane %v3196, 2
    %v3198 = vadd.f32 %v3196, %v3197
    %v3199 = vrot.slane %v3198, 1
    %v3200 = vadd.f32 %v3198, %v3199
    %v3201 = vadd.f32 %v3114, %v3115
    %v3202 = vrot.slane %v3201, 4
    %v3203 = vadd.f32 %v3201, %v3202
    %v3204 = vrot.slane %v3203, 2
    %v3205 = vadd.f32 %v3203, %v3204
    %v3206 = vrot.slane %v3205, 1
    %v3207 = vadd.f32 %v3205, %v3206
    %v3208 = vadd.f32 %v3116, %v3117
    %v3209 = vrot.slane %v3208, 4
    %v3210 = vadd.f32 %v3208, %v3209
    %v3211 = vrot.slane %v3210, 2
    %v3212 = vadd.f32 %v3210, %v3211
    %v3213 = vrot.slane %v3212, 1
    %v3214 = vadd.f32 %v3212, %v3213
    %v3215 = vadd.f32 %v3118, %v3119
    %v3216 = vrot.slane %v3215, 4
    %v3217 = vadd.f32 %v3215, %v3216
    %v3218 = vrot.slane %v3217, 2
    %v3219 = vadd.f32 %v3217, %v3218
    %v3220 = vrot.slane %v3219, 1
    %v3221 = vadd.f32 %v3219, %v3220
    %v3222 = vadd.f32 %v3120, %v3121
    %v3223 = vrot.slane %v3222, 4
    %v3224 = vadd.f32 %v3222, %v3223
    %v3225 = vrot.slane %v3224, 2
    %v3226 = vadd.f32 %v3224, %v3225
    %v3227 = vrot.slane %v3226, 1
    %v3228 = vadd.f32 %v3226, %v3227
    %v3229 = vadd.f32 %v3122, %v3123
    %v3230 = vrot.slane %v3229, 4
    %v3231 = vadd.f32 %v3229, %v3230
    %v3232 = vrot.slane %v3231, 2
    %v3233 = vadd.f32 %v3231, %v3232
    %v3234 = vrot.slane %v3233, 1
    %v3235 = vadd.f32 %v3233, %v3234
    %v3237 = vlaneseq
    %v3238 = vshrl.u32 %v3237, 7
    %v3239 = vsub.s32 0, %v3238
    %v3240 = vrot.slane %v1975, %v3239
    %v3242 = vadd.f32 %v3130, %v3240
    %v3243 = vadd.f32 %v3137, %v3240
    %v3244 = vadd.f32 %v3144, %v3240
    %v3245 = vadd.f32 %v3151, %v3240
    %v3246 = vadd.f32 %v3158, %v3240
    %v3247 = vadd.f32 %v3165, %v3240
    %v3248 = vadd.f32 %v3172, %v3240
    %v3249 = vadd.f32 %v3179, %v3240
    %v3250 = vadd.f32 %v3186, %v3240
    %v3251 = vadd.f32 %v3193, %v3240
    %v3252 = vadd.f32 %v3200, %v3240
    %v3253 = vadd.f32 %v3207, %v3240
    %v3254 = vadd.f32 %v3214, %v3240
    %v3255 = vadd.f32 %v3221, %v3240
    %v3256 = vadd.f32 %v3228, %v3240
    %v3257 = vadd.f32 %v3235, %v3240
    %v3260 = vrot.slane %v2157, 1
    %v3261 = vrot.slane %v2157, 2
    %v3262 = vrot.slane %v2157, 3
    %v3263 = vrot.slane %v2157, 4
    %v3264 = vrot.slane %v2157, 5
    %v3265 = vrot.slane %v2157, 6
    %v3266 = vrot.slane %v2157, 7
    %v3267 = vrot.slane %v2158, 1
    %v3268 = vrot.slane %v2158, 2
    %v3269 = vrot.slane %v2158, 3
    %v3270 = vrot.slane %v2158, 4
    %v3271 = vrot.slane %v2158, 5
    %v3272 = vrot.slane %v2158, 6
    %v3273 = vrot.slane %v2158, 7
    %v3290 = vadd.f32 %v3242, %v2157
    %v3291 = vadd.f32 %v3243, %v3260
    %v3292 = vadd.f32 %v3244, %v3261
    %v3293 = vadd.f32 %v3245, %v3262
    %v3294 = vadd.f32 %v3246, %v3263
    %v3295 = vadd.f32 %v3247, %v3264
    %v3296 = vadd.f32 %v3248, %v3265
    %v3297 = vadd.f32 %v3249, %v3266
    %v3298 = vadd.f32 %v3250, %v2158
    %v3299 = vadd.f32 %v3251, %v3267
    %v3300 = vadd.f32 %v3252, %v3268
    %v3301 = vadd.f32 %v3253, %v3269
    %v3302 = vadd.f32 %v3254, %v3270
    %v3303 = vadd.f32 %v3255, %v3271
    %v3304 = vadd.f32 %v3256, %v3272
    %v3305 = vadd.f32 %v3257, %v3273
    %v3306 = vmul.f32 %v3290, %v159
    %v3307 = vmul.f32 %v3291, %v159
    %v3308 = vmul.f32 %v3292, %v159
    %v3309 = vmul.f32 %v3293, %v159
    %v3310 = vmul.f32 %v3294, %v159
    %v3311 = vmul.f32 %v3295, %v159
    %v3312 = vmul.f32 %v3296, %v159
    %v3313 = vmul.f32 %v3297, %v159
    %v3314 = vmul.f32 %v3298, %v159
    %v3315 = vmul.f32 %v3299, %v159
    %v3316 = vmul.f32 %v3300, %v159
    %v3317 = vmul.f32 %v3301, %v159
    %v3318 = vmul.f32 %v3302, %v159
    %v3319 = vmul.f32 %v3303, %v159
    %v3320 = vmul.f32 %v3304, %v159
    %v3321 = vmul.f32 %v3305, %v159
    %v3338 = vrot.slane %v3307, 7
    %v3339 = vsel %vm1656, %v3338, %v3306
    %v3340 = vrot.slane %v3308, 6
    %v3341 = vsel %vm1659, %v3340, %v3339
    %v3342 = vrot.slane %v3309, 5
    %v3343 = vsel %vm1662, %v3342, %v3341
    %v3344 = vrot.slane %v3310, 4
    %v3345 = vsel %vm1665, %v3344, %v3343
    %v3346 = vrot.slane %v3311, 3
    %v3347 = vsel %vm1668, %v3346, %v3345
    %v3348 = vrot.slane %v3312, 2
    %v3349 = vsel %vm1671, %v3348, %v3347
    %v3350 = vrot.slane %v3313, 1
    %v3351 = vsel %vm1674, %v3350, %v3349
    %v3352 = vrot.slane %v3315, 7
    %v3353 = vsel %vm1656, %v3352, %v3314
    %v3354 = vrot.slane %v3316, 6
    %v3355 = vsel %vm1659, %v3354, %v3353
    %v3356 = vrot.slane %v3317, 5
    %v3357 = vsel %vm1662, %v3356, %v3355
    %v3358 = vrot.slane %v3318, 4
    %v3359 = vsel %vm1665, %v3358, %v3357
    %v3360 = vrot.slane %v3319, 3
    %v3361 = vsel %vm1668, %v3360, %v3359
    %v3362 = vrot.slane %v3320, 2
    %v3363 = vsel %vm1671, %v3362, %v3361
    %v3364 = vrot.slane %v3321, 1
    %v3365 = vsel %vm1674, %v3364, %v3363
    %3368 = vadd.xlane.f32.xlu0 %v3351
    %v3369 = vpop.xlane.xlu0 %3368
    %3370 = vadd.xlane.f32.xlu0 %v3365
    %v3371 = vpop.xlane.xlu0 %3370
    %v3372 = vmul.f32 %v3369, 0.03125
    %v3373 = vmul.f32 %v3371, 0.03125
    %v3376 = vrot.slane %v3372, 1
    %v3377 = vrot.slane %v3372, 2
    %v3378 = vrot.slane %v3372, 3
    %v3379 = vrot.slane %v3372, 4
    %v3380 = vrot.slane %v3372, 5
    %v3381 = vrot.slane %v3372, 6
    %v3382 = vrot.slane %v3372, 7
    %v3383 = vrot.slane %v3373, 1
    %v3384 = vrot.slane %v3373, 2
    %v3385 = vrot.slane %v3373, 3
    %v3386 = vrot.slane %v3373, 4
    %v3387 = vrot.slane %v3373, 5
    %v3388 = vrot.slane %v3373, 6
    %v3389 = vrot.slane %v3373, 7
    %v3406 = vsub.f32 %v3306, %v3372
    %v3407 = vsub.f32 %v3307, %v3376
    %v3408 = vsub.f32 %v3308, %v3377
    %v3409 = vsub.f32 %v3309, %v3378
    %v3410 = vsub.f32 %v3310, %v3379
    %v3411 = vsub.f32 %v3311, %v3380
    %v3412 = vsub.f32 %v3312, %v3381
    %v3413 = vsub.f32 %v3313, %v3382
    %v3414 = vsub.f32 %v3314, %v3373
    %v3415 = vsub.f32 %v3315, %v3383
    %v3416 = vsub.f32 %v3316, %v3384
    %v3417 = vsub.f32 %v3317, %v3385
    %v3418 = vsub.f32 %v3318, %v3386
    %v3419 = vsub.f32 %v3319, %v3387
    %v3420 = vsub.f32 %v3320, %v3388
    %v3421 = vsub.f32 %v3321, %v3389
    %v3422 = vmul.f32 %v3406, %v159
    %v3423 = vmul.f32 %v3407, %v159
    %v3424 = vmul.f32 %v3408, %v159
    %v3425 = vmul.f32 %v3409, %v159
    %v3426 = vmul.f32 %v3410, %v159
    %v3427 = vmul.f32 %v3411, %v159
    %v3428 = vmul.f32 %v3412, %v159
    %v3429 = vmul.f32 %v3413, %v159
    %v3430 = vmul.f32 %v3414, %v159
    %v3431 = vmul.f32 %v3415, %v159
    %v3432 = vmul.f32 %v3416, %v159
    %v3433 = vmul.f32 %v3417, %v159
    %v3434 = vmul.f32 %v3418, %v159
    %v3435 = vmul.f32 %v3419, %v159
    %v3436 = vmul.f32 %v3420, %v159
    %v3437 = vmul.f32 %v3421, %v159
    %v3438 = vmul.f32 %v3422, %v3422
    %v3439 = vmul.f32 %v3423, %v3423
    %v3440 = vmul.f32 %v3424, %v3424
    %v3441 = vmul.f32 %v3425, %v3425
    %v3442 = vmul.f32 %v3426, %v3426
    %v3443 = vmul.f32 %v3427, %v3427
    %v3444 = vmul.f32 %v3428, %v3428
    %v3445 = vmul.f32 %v3429, %v3429
    %v3446 = vmul.f32 %v3430, %v3430
    %v3447 = vmul.f32 %v3431, %v3431
    %v3448 = vmul.f32 %v3432, %v3432
    %v3449 = vmul.f32 %v3433, %v3433
    %v3450 = vmul.f32 %v3434, %v3434
    %v3451 = vmul.f32 %v3435, %v3435
    %v3452 = vmul.f32 %v3436, %v3436
    %v3453 = vmul.f32 %v3437, %v3437
    %v3470 = vrot.slane %v3439, 7
    %v3471 = vsel %vm1656, %v3470, %v3438
    %v3472 = vrot.slane %v3440, 6
    %v3473 = vsel %vm1659, %v3472, %v3471
    %v3474 = vrot.slane %v3441, 5
    %v3475 = vsel %vm1662, %v3474, %v3473
    %v3476 = vrot.slane %v3442, 4
    %v3477 = vsel %vm1665, %v3476, %v3475
    %v3478 = vrot.slane %v3443, 3
    %v3479 = vsel %vm1668, %v3478, %v3477
    %v3480 = vrot.slane %v3444, 2
    %v3481 = vsel %vm1671, %v3480, %v3479
    %v3482 = vrot.slane %v3445, 1
    %v3483 = vsel %vm1674, %v3482, %v3481
    %v3484 = vrot.slane %v3447, 7
    %v3485 = vsel %vm1656, %v3484, %v3446
    %v3486 = vrot.slane %v3448, 6
    %v3487 = vsel %vm1659, %v3486, %v3485
    %v3488 = vrot.slane %v3449, 5
    %v3489 = vsel %vm1662, %v3488, %v3487
    %v3490 = vrot.slane %v3450, 4
    %v3491 = vsel %vm1665, %v3490, %v3489
    %v3492 = vrot.slane %v3451, 3
    %v3493 = vsel %vm1668, %v3492, %v3491
    %v3494 = vrot.slane %v3452, 2
    %v3495 = vsel %vm1671, %v3494, %v3493
    %v3496 = vrot.slane %v3453, 1
    %v3497 = vsel %vm1674, %v3496, %v3495
    %3500 = vadd.xlane.f32.xlu0 %v3483
    %v3501 = vpop.xlane.xlu0 %3500
    %3502 = vadd.xlane.f32.xlu0 %v3497
    %v3503 = vpop.xlane.xlu0 %3502
    %v3504 = vmul.f32 %v3501, 0.03125
    %v3505 = vmul.f32 %v3503, 0.03125
    %v3506 = vadd.f32 %v3504, 1e-05
    %v3507 = vadd.f32 %v3505, 1e-05
    %v3508 = vrsqrt.pop %v3506
    %v3509 = vrsqrt.pop %v3507
    %v3512 = vrot.slane %v3508, 1
    %v3513 = vrot.slane %v3508, 2
    %v3514 = vrot.slane %v3508, 3
    %v3515 = vrot.slane %v3508, 4
    %v3516 = vrot.slane %v3508, 5
    %v3517 = vrot.slane %v3508, 6
    %v3518 = vrot.slane %v3508, 7
    %v3519 = vrot.slane %v3509, 1
    %v3520 = vrot.slane %v3509, 2
    %v3521 = vrot.slane %v3509, 3
    %v3522 = vrot.slane %v3509, 4
    %v3523 = vrot.slane %v3509, 5
    %v3524 = vrot.slane %v3509, 6
    %v3525 = vrot.slane %v3509, 7
    %v3542 = vmul.f32 %v3422, %v3508
    %v3543 = vmul.f32 %v3423, %v3512
    %v3544 = vmul.f32 %v3424, %v3513
    %v3545 = vmul.f32 %v3425, %v3514
    %v3546 = vmul.f32 %v3426, %v3515
    %v3547 = vmul.f32 %v3427, %v3516
    %v3548 = vmul.f32 %v3428, %v3517
    %v3549 = vmul.f32 %v3429, %v3518
    %v3550 = vmul.f32 %v3430, %v3509
    %v3551 = vmul.f32 %v3431, %v3519
    %v3552 = vmul.f32 %v3432, %v3520
    %v3553 = vmul.f32 %v3433, %v3521
    %v3554 = vmul.f32 %v3434, %v3522
    %v3555 = vmul.f32 %v3435, %v3523
    %v3556 = vmul.f32 %v3436, %v3524
    %v3557 = vmul.f32 %v3437, %v3525
    %v3559 = vlaneseq
    %v3560 = vshrl.u32 %v3559, 7
    %v3561 = vsub.s32 0, %v3560
    %v3562 = vrot.slane %v1976, %v3561
    %v3564 = vmul.f32 %v3542, %v3562
    %v3565 = vmul.f32 %v3543, %v3562
    %v3566 = vmul.f32 %v3544, %v3562
    %v3567 = vmul.f32 %v3545, %v3562
    %v3568 = vmul.f32 %v3546, %v3562
    %v3569 = vmul.f32 %v3547, %v3562
    %v3570 = vmul.f32 %v3548, %v3562
    %v3571 = vmul.f32 %v3549, %v3562
    %v3572 = vmul.f32 %v3550, %v3562
    %v3573 = vmul.f32 %v3551, %v3562
    %v3574 = vmul.f32 %v3552, %v3562
    %v3575 = vmul.f32 %v3553, %v3562
    %v3576 = vmul.f32 %v3554, %v3562
    %v3577 = vmul.f32 %v3555, %v3562
    %v3578 = vmul.f32 %v3556, %v3562
    %v3579 = vmul.f32 %v3557, %v3562
    %v3581 = vlaneseq
    %v3582 = vshrl.u32 %v3581, 7
    %v3583 = vsub.s32 0, %v3582
    %v3584 = vrot.slane %v1977, %v3583
    %v3586 = vadd.f32 %v3564, %v3584
    %v3587 = vadd.f32 %v3565, %v3584
    %v3588 = vadd.f32 %v3566, %v3584
    %v3589 = vadd.f32 %v3567, %v3584
    %v3590 = vadd.f32 %v3568, %v3584
    %v3591 = vadd.f32 %v3569, %v3584
    %v3592 = vadd.f32 %v3570, %v3584
    %v3593 = vadd.f32 %v3571, %v3584
    %v3594 = vadd.f32 %v3572, %v3584
    %v3595 = vadd.f32 %v3573, %v3584
    %v3596 = vadd.f32 %v3574, %v3584
    %v3597 = vadd.f32 %v3575, %v3584
    %v3598 = vadd.f32 %v3576, %v3584
    %v3599 = vadd.f32 %v3577, %v3584
    %v3600 = vadd.f32 %v3578, %v3584
    %v3601 = vadd.f32 %v3579, %v3584
    %v3602 = vmax.f32 %v3586, 0.0
    %v3603 = vmax.f32 %v3587, 0.0
    %v3604 = vmax.f32 %v3588, 0.0
    %v3605 = vmax.f32 %v3589, 0.0
    %v3606 = vmax.f32 %v3590, 0.0
    %v3607 = vmax.f32 %v3591, 0.0
    %v3608 = vmax.f32 %v3592, 0.0
    %v3609 = vmax.f32 %v3593, 0.0
    %v3610 = vmax.f32 %v3594, 0.0
    %v3611 = vmax.f32 %v3595, 0.0
    %v3612 = vmax.f32 %v3596, 0.0
    %v3613 = vmax.f32 %v3597, 0.0
    %v3614 = vmax.f32 %v3598, 0.0
    %v3615 = vmax.f32 %v3599, 0.0
    %v3616 = vmax.f32 %v3600, 0.0
    %v3617 = vmax.f32 %v3601, 0.0
    %v3618 = vld [vmem:[%s14] sm:$0xf]
    %v3619 = vpack.c.bf16 %v3602, %v3602
    %v3620 = vpack.c.bf16 %v3603, %v3603
    %v3621 = vpack.c.bf16 %v3604, %v3604
    %v3622 = vpack.c.bf16 %v3605, %v3605
    %v3623 = vpack.c.bf16 %v3606, %v3606
    %v3624 = vpack.c.bf16 %v3607, %v3607
    %v3625 = vpack.c.bf16 %v3608, %v3608
    %v3626 = vpack.c.bf16 %v3609, %v3609
    %v3627 = vpack.c.bf16 %v3610, %v3610
    %v3628 = vpack.c.bf16 %v3611, %v3611
    %v3629 = vpack.c.bf16 %v3612, %v3612
    %v3630 = vpack.c.bf16 %v3613, %v3613
    %v3631 = vpack.c.bf16 %v3614, %v3614
    %v3632 = vpack.c.bf16 %v3615, %v3615
    %v3633 = vpack.c.bf16 %v3616, %v3616
    %v3634 = vpack.c.bf16 %v3617, %v3617
    %v3651 = vunpack.c.l.b16 %v3619
    %v3652 = vunpack.c.l.b16 %v3620
    %v3653 = vunpack.c.l.b16 %v3621
    %v3654 = vunpack.c.l.b16 %v3622
    %v3655 = vunpack.c.l.b16 %v3623
    %v3656 = vunpack.c.l.b16 %v3624
    %v3657 = vunpack.c.l.b16 %v3625
    %v3658 = vunpack.c.l.b16 %v3626
    %v3659 = vunpack.c.l.b16 %v3627
    %v3660 = vunpack.c.l.b16 %v3628
    %v3661 = vunpack.c.l.b16 %v3629
    %v3662 = vunpack.c.l.b16 %v3630
    %v3663 = vunpack.c.l.b16 %v3631
    %v3664 = vunpack.c.l.b16 %v3632
    %v3665 = vunpack.c.l.b16 %v3633
    %v3666 = vunpack.c.l.b16 %v3634
    %v3667 = vrot.slane %v3652, 7
    %v3668 = vsel %vm1656, %v3667, %v3651
    %v3669 = vrot.slane %v3653, 6
    %v3670 = vsel %vm1659, %v3669, %v3668
    %v3671 = vrot.slane %v3654, 5
    %v3672 = vsel %vm1662, %v3671, %v3670
    %v3673 = vrot.slane %v3655, 4
    %v3674 = vsel %vm1665, %v3673, %v3672
    %v3675 = vrot.slane %v3656, 3
    %v3676 = vsel %vm1668, %v3675, %v3674
    %v3677 = vrot.slane %v3657, 2
    %v3678 = vsel %vm1671, %v3677, %v3676
    %v3679 = vrot.slane %v3658, 1
    %v3680 = vsel %vm1674, %v3679, %v3678
    %v3681 = vrot.slane %v3660, 7
    %v3682 = vsel %vm1656, %v3681, %v3659
    %v3683 = vrot.slane %v3661, 6
    %v3684 = vsel %vm1659, %v3683, %v3682
    %v3685 = vrot.slane %v3662, 5
    %v3686 = vsel %vm1662, %v3685, %v3684
    %v3687 = vrot.slane %v3663, 4
    %v3688 = vsel %vm1665, %v3687, %v3686
    %v3689 = vrot.slane %v3664, 3
    %v3690 = vsel %vm1668, %v3689, %v3688
    %v3691 = vrot.slane %v3665, 2
    %v3692 = vsel %vm1671, %v3691, %v3690
    %v3693 = vrot.slane %v3666, 1
    %v3694 = vsel %vm1674, %v3693, %v3692
    %v3695 = vpack.c.b16 %v3694, %v3680
    %vm3697 = vcmask 130048
    %v3699 = vsel %vm3697, %v3618, 0
    %3701 = vmatprep.subr.bf16.mxu0 0
    %3702 = vmatpush1.bf16.msra.mxu0 %v3695
    %3703 = vmatprep.subr.bf16.mxu0 0
    %3704 = vmatpush1.bf16.msra.mxu0 0
    %3705 = vmatprep.subr.bf16.mxu0 0
    %3706 = vmatpush1.bf16.msra.mxu0 0
    %3707 = vmatprep.subr.bf16.mxu0 0
    %3708 = vmatpush1.bf16.msra.mxu0 0
    %3709 = vmatprep.subr.bf16.mxu0 0
    %3710 = vmatpush1.bf16.msra.mxu0 0
    %3711 = vmatprep.subr.bf16.mxu0 0
    %3712 = vmatpush1.bf16.msra.mxu0 0
    %3713 = vmatprep.subr.bf16.mxu0 0
    %3714 = vmatpush1.bf16.msra.mxu0 0
    %3715 = vmatprep.subr.bf16.mxu0 0
    %3716 = vmatpush1.bf16.msra.mxu0 0
    %3717 = vmatprep.subr.bf16.mxu0 0
    %3718 = vmatpush1.bf16.msra.mxu0 0
    %3719 = vmatprep.subr.bf16.mxu0 0
    %3720 = vmatpush1.bf16.msra.mxu0 0
    %3721 = vmatprep.subr.bf16.mxu0 0
    %3722 = vmatpush1.bf16.msra.mxu0 0
    %3723 = vmatprep.subr.bf16.mxu0 0
    %3724 = vmatpush1.bf16.msra.mxu0 0
    %3725 = vmatprep.subr.bf16.mxu0 0
    %3726 = vmatpush1.bf16.msra.mxu0 0
    %3727 = vmatprep.subr.bf16.mxu0 0
    %3728 = vmatpush1.bf16.msra.mxu0 0
    %3729 = vmatprep.subr.bf16.mxu0 0
    %3730 = vmatpush1.bf16.msra.mxu0 0
    %3731 = vmatprep.subr.bf16.mxu0 0
    %3732 = vmatpush1.bf16.msra.mxu0 0
    %3733 = vmatprep.mubr.bf16.mxu0 0
    %3734 = vmatmul.mubr.bf16.gmra.mrb[0].mxu0 %v3699
    %v3735 = vpop.f32.mrb[0].mxu0
    %v3736 = vadd.f32 0.0, %v3735
    %v3737 = vpop.f32.mrb[0].mxu0
    %v3738 = vpop.f32.mrb[0].mxu0
    %v3739 = vpop.f32.mrb[0].mxu0
    %3740 = vdwg.mxu0
    %v3741 = vpack.c.bf16 %v3736, %v3736
    %v3742 = vld [vmem:[#allocation13] sm:$0xf]
    %v3743 = vld [vmem:[#allocation13 + $0x4] sm:$0xf]
    %v3744 = vld [vmem:[#allocation13 + $0x8] sm:$0xf]
    %v3745 = vld [vmem:[#allocation13 + $0xc] sm:$0xf]
    %v3746 = vld [vmem:[#allocation13 + $0x10] sm:$0xf]
    %v3747 = vld [vmem:[#allocation13 + $0x14] sm:$0xf]
    %v3748 = vld [vmem:[#allocation13 + $0x18] sm:$0xf]
    %v3749 = vld [vmem:[#allocation13 + $0x1c] sm:$0xf]
    %v3750 = vld [vmem:[#allocation13 + $0x20] sm:$0xf]
    %v3751 = vld [vmem:[#allocation13 + $0x24] sm:$0xf]
    %v3752 = vld [vmem:[#allocation13 + $0x28] sm:$0xf]
    %v3753 = vld [vmem:[#allocation13 + $0x2c] sm:$0xf]
    %v3754 = vld [vmem:[#allocation13 + $0x30] sm:$0xf]
    %v3755 = vld [vmem:[#allocation13 + $0x34] sm:$0xf]
    %v3756 = vld [vmem:[#allocation13 + $0x38] sm:$0xf]
    %v3757 = vld [vmem:[#allocation13 + $0x3c] sm:$0xf]
    %v3774 = vunpack.c.l.b16 %v3742
    %v3775 = vunpack.c.l.b16 %v3743
    %v3776 = vunpack.c.l.b16 %v3744
    %v3777 = vunpack.c.l.b16 %v3745
    %v3778 = vunpack.c.l.b16 %v3746
    %v3779 = vunpack.c.l.b16 %v3747
    %v3780 = vunpack.c.l.b16 %v3748
    %v3781 = vunpack.c.l.b16 %v3749
    %v3782 = vunpack.c.l.b16 %v3750
    %v3783 = vunpack.c.l.b16 %v3751
    %v3784 = vunpack.c.l.b16 %v3752
    %v3785 = vunpack.c.l.b16 %v3753
    %v3786 = vunpack.c.l.b16 %v3754
    %v3787 = vunpack.c.l.b16 %v3755
    %v3788 = vunpack.c.l.b16 %v3756
    %v3789 = vunpack.c.l.b16 %v3757
    %v3790 = vpack.c.b16 %v3775, %v3774
    %v3791 = vpack.c.b16 %v3777, %v3776
    %v3792 = vpack.c.b16 %v3779, %v3778
    %v3793 = vpack.c.b16 %v3781, %v3780
    %v3794 = vpack.c.b16 %v3783, %v3782
    %v3795 = vpack.c.b16 %v3785, %v3784
    %v3796 = vpack.c.b16 %v3787, %v3786
    %v3797 = vpack.c.b16 %v3789, %v3788
    %3806 = vmatprep.subr.bf16.mxu0 0
    %3807 = vmatpush1.bf16.msra.mxu0 %v3790
    %3808 = vmatprep.subr.bf16.mxu0 0
    %3809 = vmatpush1.bf16.msra.mxu0 %v3791
    %3810 = vmatprep.subr.bf16.mxu0 0
    %3811 = vmatpush1.bf16.msra.mxu0 %v3792
    %3812 = vmatprep.subr.bf16.mxu0 0
    %3813 = vmatpush1.bf16.msra.mxu0 %v3793
    %3814 = vmatprep.subr.bf16.mxu0 0
    %3815 = vmatpush1.bf16.msra.mxu0 %v3794
    %3816 = vmatprep.subr.bf16.mxu0 0
    %3817 = vmatpush1.bf16.msra.mxu0 %v3795
    %3818 = vmatprep.subr.bf16.mxu0 0
    %3819 = vmatpush1.bf16.msra.mxu0 %v3796
    %3820 = vmatprep.subr.bf16.mxu0 0
    %3821 = vmatpush1.bf16.msra.mxu0 %v3797
    %3822 = vmatprep.subr.bf16.mxu0 0
    %3823 = vmatpush1.bf16.msra.mxu0 0
    %3824 = vmatprep.subr.bf16.mxu0 0
    %3825 = vmatpush1.bf16.msra.mxu0 0
    %3826 = vmatprep.subr.bf16.mxu0 0
    %3827 = vmatpush1.bf16.msra.mxu0 0
    %3828 = vmatprep.subr.bf16.mxu0 0
    %3829 = vmatpush1.bf16.msra.mxu0 0
    %3830 = vmatprep.subr.bf16.mxu0 0
    %3831 = vmatpush1.bf16.msra.mxu0 0
    %3832 = vmatprep.subr.bf16.mxu0 0
    %3833 = vmatpush1.bf16.msra.mxu0 0
    %3834 = vmatprep.subr.bf16.mxu0 0
    %3835 = vmatpush1.bf16.msra.mxu0 0
    %3836 = vmatprep.subr.bf16.mxu0 0
    %3837 = vmatpush1.bf16.msra.mxu0 0
    %3838 = vmatprep.mubr.bf16.mxu0 0
    %3839 = vmatmul.mubr.bf16.gmra.mrb[0].mxu0 %v3741
    %v3840 = vpop.f32.mrb[0].mxu0
    %v3841 = vadd.f32 0.0, %v3840
    %v3842 = vpop.f32.mrb[0].mxu0
    %v3843 = vpop.f32.mrb[0].mxu0
    %v3844 = vpop.f32.mrb[0].mxu0
    %3845 = vdwg.mxu0
    %3846 = vst [vmem:[#allocation14] sm:$0xff] %v3841
    // Predicated region
    $region94: #{tpu_custom_call.1} parent=1 // pred_check
      _
    $region95: #{tpu_custom_call.1} parent=1 // pred_check_branch
      %3848 = sbr.rel (0) target = $region97
    $region96: #{tpu_custom_call.1} parent=1 // pred_region
      %s3850 = ssub.s32 128, 128
      %3851 = vsyncadd [#allocation4], %s3850
      %s3853 = sshll.u32 [#allocation14], 4
      %s3854 = int_to_ptr.vmem [resolvable:$true] %s3853
      %3856 = dma.vmem_to_hbm [thread:$0]  %s3854, 128, %s16, [#allocation4]
    $region97: #{tpu_custom_call.1} parent=1 // pred_fallthru
      _
    // Predicated region
    $region98: #{tpu_custom_call.1} parent=1 // pred_check
      _
    $region99: #{tpu_custom_call.1} parent=1 // pred_check_branch
      %3858 = sbr.rel (0) target = $region101
    $region100: #{tpu_custom_call.1} parent=1 // pred_region
      %3859 = dma.done [#allocation4], 128
    $region101: #{tpu_custom_call.1} parent=1 // pred_fallthru
      _
    %3860 = vsyncpa [#allocation3], 1
    %3861 = vsyncpa [#allocation6], 1
    %3862 = vsyncpa [#allocation9], 1
    %3863 = vsyncpa [#allocation12], 1
    %3864 = vsyncpa [#allocation4], 1

</llo_original>
